<compile_context>
chip_gen: v5e
topology: v5e:2x2
jax: 0.10.0
libtpu: 0.0.40
codegen_flags: <defaults>
</compile_context>

<pallas_src>
import math

import jax
import jax.numpy as jnp
from jax import lax
from jax.experimental import pallas as pl
from jax.experimental.pallas import tpu as pltpu  # noqa: F401  (TPU backend)

# ----- problem sizes (small, consistent with the module) -----
B, S, D_IN = 2, 8, 4          # batch, seq_len, input_dim
H = 32                        # hidden_dim
FF = 2048                     # nn.TransformerEncoderLayer default dim_feedforward
NHEAD = 4
DH = H // NHEAD
NUM_LAYERS = 2
COND = 16                     # cond_dim
EPS = 1e-5
L_OUT = (S + 2 * 1 - 3) // 2 + 1   # Conv1d(k=3, stride=2, pad=1) output length
FF_CHUNK = 512                # feed-forward fusion chunk width
PACK_W = 128                  # lane width of the packed small-parameter buffer

assert S == DH, "shared (8,8) block-diagonal mask relies on S == head_dim"


def _build_layout():
    """Row layout of the packed small-parameter buffer (all offsets static)."""
    layout = {}
    row = 0

    def add(name, nr, nc):
        nonlocal row
        layout[name] = (row, nr, nc)
        row += ((nr + 7) // 8) * 8        # keep every entry 8-sublane aligned

    add("fc_in_w", D_IN, H)
    add("fc_in_b", 1, H)
    for l in range(NUM_LAYERS):
        add(f"qkv_w{l}", H, 3 * H)
        add(f"qkv_b{l}", 1, 3 * H)
        add(f"out_w{l}", H, H)
        add(f"out_b{l}", 1, H)
        add(f"ln1_g{l}", 1, H)
        add(f"ln1_b{l}", 1, H)
        add(f"ff2_b{l}", 1, H)
        add(f"ln2_g{l}", 1, H)
        add(f"ln2_b{l}", 1, H)
    add("merge_fine_w", H, COND)
    add("coarse_w", S * D_IN, COND)
    add("cond_b", 1, COND)
    add("head_mask", H, H)
    add("avg_mat", B, B * S)
    return layout, row


LAYOUT, PACK_ROWS = _build_layout()


def _layer_norm(v, g, b):
    # single-pass LN: the two reductions (E[x], E[x^2]) are independent.
    mu = jnp.mean(v, axis=-1, keepdims=True)
    ms = jnp.mean(v * v, axis=-1, keepdims=True)
    return (v - mu) * lax.rsqrt(ms - mu * mu + EPS) * g + b


def encoder_kernel(x2d_ref, xflat_ref, smalls_ref, ffb1_ref, ffw1_ref, ffw2_ref,
                   o_ref):
    f32 = jnp.float32

    def get(name):
        r0, nr, nc = LAYOUT[name]
        return smalls_ref[r0:r0 + nr, 0:nc]          # static slice of packed buffer

    mask = get("head_mask")                          # (H, H) 0/1 block-diagonal
    x2d = x2d_ref[...]                               # (B*S, D_IN) f32

    # ---- fine branch: fc_in + transformer encoder, batch folded into rows ----
    h = jnp.dot(x2d, get("fc_in_w"), preferred_element_type=f32) + get("fc_in_b")

    for l in range(NUM_LAYERS):
        # -------- self-attention (1/sqrt(DH) pre-folded into Q weights/bias) ----
        qkv = (jnp.dot(h, get(f"qkv_w{l}"), preferred_element_type=f32)
               + get(f"qkv_b{l}"))                   # (B*S, 3H)
        q = qkv[:, 0:H]
        k = qkv[:, H:2 * H]
        v = qkv[:, 2 * H:3 * H]

        ctx_rows = []
        for b in range(B):                            # static 2-iteration loop
            r0 = b * S
            qb, kb, vb = q[r0:r0 + S, :], k[r0:r0 + S, :], v[r0:r0 + S, :]
            # block-diagonal packing: all NHEAD heads in a single MXU dot each
            kt = jnp.concatenate([kb] * NHEAD, axis=0) * mask     # (H, H)
            vt = jnp.concatenate([vb] * NHEAD, axis=0) * mask     # (H, H)
            sc = lax.dot_general(qb, kt, (((1,), (1,)), ((), ())),
                                 preferred_element_type=f32)      # (S, H) packed scores
            sc = sc - jnp.max(sc, axis=-1, keepdims=True)         # row-wide max is valid
            p = jnp.exp(sc)
            den = jnp.dot(p, mask, preferred_element_type=f32)    # per-head sums, bcast
            p = p * pl.reciprocal(den, approx=True)
            ctx_rows.append(jnp.dot(p, vt, preferred_element_type=f32))   # (S, H)
        ctx = jnp.concatenate(ctx_rows, axis=0)                    # (B*S, H)

        attn = (jnp.dot(ctx, get(f"out_w{l}"), preferred_element_type=f32)
                + get(f"out_b{l}"))
        h = _layer_norm(h + attn, get(f"ln1_g{l}"), get(f"ln1_b{l}"))

        # -------- feed-forward, chunk-fused over FF to bound live vregs --------
        h_bf = h.astype(jnp.bfloat16)
        acc = jnp.zeros((B * S, H), f32)
        for c in range(FF // FF_CHUNK):               # static, fully unrolled
            c0 = c * FF_CHUNK
            ff = jnp.dot(h_bf, ffw1_ref[l, :, c0:c0 + FF_CHUNK],
                         preferred_element_type=f32)              # (B*S, FF_CHUNK)
            ff = ff + ffb1_ref[l:l + 1, c0:c0 + FF_CHUNK]
            ff = jnp.maximum(ff, 0.0).astype(jnp.bfloat16)
            acc = acc + jnp.dot(ff, ffw2_ref[l, c0:c0 + FF_CHUNK, :],
                                preferred_element_type=f32)       # (B*S, H)
        h = _layer_norm(h + acc + get(f"ff2_b{l}"),
                        get(f"ln2_g{l}"), get(f"ln2_b{l}"))

    # mean over the sequence as one tiny matmul: (B, B*S) @ (B*S, H) -> (B, H)
    fine = jnp.dot(get("avg_mat"), h, preferred_element_type=f32)

    # fuse: fine @ merge_w[:H] + (folded coarse branch) + folded bias
    cond = (jnp.dot(fine, get("merge_fine_w"), preferred_element_type=f32)
            + jnp.dot(xflat_ref[...], get("coarse_w"), preferred_element_type=f32)
            + get("cond_b"))
    o_ref[...] = cond                                 # single (B, COND) store


def prepare_kernel_params(p):
    """One-time wrapper-side folding + packing (hoisted out of the per-call path)."""
    scale = 1.0 / math.sqrt(DH)
    # fold attention scale into the Q columns of the packed qkv projection
    qkv_w = p["qkv_w"].at[:, :, :H].multiply(scale)
    qkv_b = p["qkv_b"].at[:, :, :H].multiply(scale)

    mw_fine = p["merge_w"][:H, :]        # (H, COND)
    mw_coarse = p["merge_w"][H:, :]      # (H, COND)

    # Fold Conv1d(k=3, stride=2, pad=1) -> mean over L_OUT -> merge_w[H:2H]
    # into a single (S*D_IN, COND) matrix (the branch is linear in x).
    w_mean = jnp.zeros((S, D_IN, H), jnp.float32)
    for t in range(L_OUT):
        for tap in range(3):
            pidx = 2 * t + tap           # index into zero-padded sequence (len S+2)
            if 1 <= pidx <= S:           # padding taps contribute nothing
                w_mean = w_mean.at[pidx - 1].add(p["conv_w"][tap] / float(L_OUT))
    coarse_w = w_mean.reshape(S * D_IN, H) @ mw_coarse           # (S*D_IN, COND)
    cond_b = p["merge_b"] + p["conv_b"] @ mw_coarse              # (1, COND)

    # constants used by the kernel
    head_mask = jnp.kron(jnp.eye(NHEAD, dtype=jnp.float32),
                         jnp.ones((S, S), jnp.float32))          # (H, H)
    avg_mat = jnp.kron(jnp.eye(B, dtype=jnp.float32),
                       jnp.full((1, S), 1.0 / S, jnp.float32))   # (B, B*S)

    entries = {"fc_in_w": p["fc_in_w"], "fc_in_b": p["fc_in_b"],
               "merge_fine_w": mw_fine, "coarse_w": coarse_w, "cond_b": cond_b,
               "head_mask": head_mask, "avg_mat": avg_mat}
    for l in range(NUM_LAYERS):
        entries[f"qkv_w{l}"] = qkv_w[l]
        entries[f"qkv_b{l}"] = qkv_b[l]
        entries[f"out_w{l}"] = p["out_w"][l]
        entries[f"out_b{l}"] = p["out_b"][l]
        entries[f"ln1_g{l}"] = p["ln1_g"][l]
        entries[f"ln1_b{l}"] = p["ln1_b"][l]
        entries[f"ff2_b{l}"] = p["ff2_b"][l]
        entries[f"ln2_g{l}"] = p["ln2_g"][l]
        entries[f"ln2_b{l}"] = p["ln2_b"][l]

    pack = jnp.zeros((PACK_ROWS, PACK_W), jnp.float32)
    for name, (r0, nr, nc) in LAYOUT.items():
        val = jnp.asarray(entries[name], jnp.float32).reshape(nr, nc)
        pack = pack.at[r0:r0 + nr, 0:nc].set(val)

    return {
        "smalls": pack,                                              # 1 operand
        "ffb1": p["ff1_b"].reshape(NUM_LAYERS, FF).astype(jnp.float32),
        # dominant HBM traffic -> bf16 (accumulation stays f32 in-kernel)
        "ffw1": p["ff1_w"].astype(jnp.bfloat16),
        "ffw2": p["ff2_w"].astype(jnp.bfloat16),
    }


@jax.jit
def encoder_fwd(x, smalls, ffb1, ffw1, ffw2):
    x2d = x.reshape(B * S, D_IN)       # rows = batch*seq (fine branch)
    xflat = x.reshape(B, S * D_IN)     # rows = batch (folded coarse branch)
    # Single invocation, no grid: every operand resident in VMEM once
    # (full-array blocks); output is one (B, COND) store.
    return pl.pallas_call(
        encoder_kernel,
        out_shape=jax.ShapeDtypeStruct((B, COND), jnp.float32),
    )(x2d, xflat, smalls, ffb1, ffw1, ffw2)


def make_params(key):
    keys = jax.random.split(key, 16)

    def init(k, shape, scale=0.1):
        return (scale * jax.random.normal(k, shape)).astype(jnp.float32)

    p = {}
    p["fc_in_w"] = init(keys[0], (D_IN, H))                 # [in, out]
    p["fc_in_b"] = init(keys[1], (1, H))
    p["qkv_w"] = init(keys[2], (NUM_LAYERS, H, 3 * H))      # packed q,k,v, [in, out]
    p["qkv_b"] = init(keys[3], (NUM_LAYERS, 1, 3 * H))
    p["out_w"] = init(keys[4], (NUM_LAYERS, H, H))          # attn out_proj, [in, out]
    p["out_b"] = init(keys[5], (NUM_LAYERS, 1, H))
    p["ln1_g"] = jnp.ones((NUM_LAYERS, 1, H), jnp.float32)
    p["ln1_b"] = jnp.zeros((NUM_LAYERS, 1, H), jnp.float32)
    p["ff1_w"] = init(keys[6], (NUM_LAYERS, H, FF), 0.05)
    p["ff1_b"] = init(keys[7], (NUM_LAYERS, 1, FF))
    p["ff2_w"] = init(keys[8], (NUM_LAYERS, FF, H), 0.05)
    p["ff2_b"] = init(keys[9], (NUM_LAYERS, 1, H))
    p["ln2_g"] = jnp.ones((NUM_LAYERS, 1, H), jnp.float32)
    p["ln2_b"] = jnp.zeros((NUM_LAYERS, 1, H), jnp.float32)
    p["conv_w"] = init(keys[10], (3, D_IN, H))              # tap-major, [k][in][out]
    p["conv_b"] = init(keys[11], (1, H))
    p["merge_w"] = init(keys[12], (2 * H, COND))            # [in, out]
    p["merge_b"] = init(keys[13], (1, COND))
    return p


def reference(x, p):
    """Pure-JAX f32 reference mirroring the PyTorch forward (eval mode)."""
    def layer_norm(v, g, b):
        mu = v.mean(-1, keepdims=True)
        var = ((v - mu) ** 2).mean(-1, keepdims=True)
        return (v - mu) / jnp.sqrt(var + EPS) * g + b

    h = jnp.einsum("bsd,dh->bsh", x, p["fc_in_w"]) + p["fc_in_b"]
    scale = 1.0 / math.sqrt(DH)
    for l in range(NUM_LAYERS):
        qkv = jnp.einsum("bsh,hk->bsk", h, p["qkv_w"][l]) + p["qkv_b"][l]
        q, k, v = qkv[..., :H], qkv[..., H:2 * H], qkv[..., 2 * H:]
        q = q.reshape(B, S, NHEAD, DH)
        k = k.reshape(B, S, NHEAD, DH)
        v = v.reshape(B, S, NHEAD, DH)
        sc = jnp.einsum("bqnd,bknd->bnqk", q, k) * scale
        pa = jax.nn.softmax(sc, axis=-1)
        ctx = jnp.einsum("bnqk,bknd->bqnd", pa, v).reshape(B, S, H)
        attn = jnp.einsum("bsh,ho->bso", ctx, p["out_w"][l]) + p["out_b"][l]
        h = layer_norm(h + attn, p["ln1_g"][l], p["ln1_b"][l])
        ff = jax.nn.relu(jnp.einsum("bsh,hf->bsf", h, p["ff1_w"][l]) + p["ff1_b"][l])
        ff = jnp.einsum("bsf,fh->bsh", ff, p["ff2_w"][l]) + p["ff2_b"][l]
        h = layer_norm(h + ff, p["ln2_g"][l], p["ln2_b"][l])
    fine_feat = h.mean(axis=1)  # (B, H)

    conv_w_oik = jnp.transpose(p["conv_w"], (2, 1, 0))  # (H, D_IN, 3)
    coarse = lax.conv_general_dilated(
        jnp.transpose(x, (0, 2, 1)), conv_w_oik,
        window_strides=(2,), padding=[(1, 1)],
        dimension_numbers=("NCH", "OIH", "NCH"))        # (B, H, L_OUT)
    coarse = coarse + p["conv_b"].reshape(1, H, 1)
    coarse_feat = coarse.mean(axis=2)                   # (B, H)

    fused = jnp.concatenate([fine_feat, coarse_feat], axis=-1)
    return fused @ p["merge_w"] + p["merge_b"]


if __name__ == "__main__":
    key = jax.random.PRNGKey(0)
    kx, kparam = jax.random.split(key)
    x = jax.random.normal(kx, (B, S, D_IN), dtype=jnp.float32)
    params = make_params(kparam)

    kp = prepare_kernel_params(params)   # once per weight set, not per call

    out = encoder_fwd(x, kp["smalls"], kp["ffb1"], kp["ffw1"], kp["ffw2"])
    out = jax.block_until_ready(out)
    assert out.shape == (B, COND), out.shape

    ref = reference(x, params)
    err = float(jnp.max(jnp.abs(out - ref)))
    # Tolerance accounts for bf16-quantized FF weights/activations and the
    # approximate softmax reciprocal (reference stays pure f32).
    if not (err < 3e-2):
        raise AssertionError(f"kernel/reference mismatch: max abs err = {err}")

    print("KERNEL_OK")
</pallas_src>

<mosaic_0001>
module attributes {stable_mosaic.version = 11 : i64} {
  func.func @encoder_kernel(%arg0: memref<16x4xf32, #tpu.memory_space<vmem>>, %arg1: memref<2x32xf32, #tpu.memory_space<vmem>>, %arg2: memref<368x128xf32, #tpu.memory_space<vmem>>, %arg3: memref<2x2048xf32, #tpu.memory_space<vmem>>, %arg4: memref<2x32x2048xbf16, #tpu.memory_space<vmem>>, %arg5: memref<2x2048x32xbf16, #tpu.memory_space<vmem>>, %arg6: memref<2x16xf32, #tpu.memory_space<vmem>>) attributes {dimension_semantics = [], scalar_prefetch = 0 : i64, scratch_operands = 0 : i64, tpu.core_type = #tpu.core_type<tc>} {
    %c328 = arith.constant 328 : index
    %c0 = arith.constant 0 : index
    %0 = vector.load %arg2[%c328, %c0] : memref<368x128xf32, #tpu.memory_space<vmem>>, vector<32x32xf32>
    %c0_0 = arith.constant 0 : index
    %c0_1 = arith.constant 0 : index
    %1 = vector.load %arg0[%c0_0, %c0_1] : memref<16x4xf32, #tpu.memory_space<vmem>>, vector<16x4xf32>
    %c0_2 = arith.constant 0 : index
    %c0_3 = arith.constant 0 : index
    %2 = vector.load %arg2[%c0_2, %c0_3] : memref<368x128xf32, #tpu.memory_space<vmem>>, vector<4x32xf32>
    %cst = arith.constant dense<0.000000e+00> : vector<16x32xf32>
    %3 = tpu.matmul %1, %2, %cst {dimension_numbers = #tpu.dot_dimension_numbers<[1], [0], [0], [1], [0, 0, 1, 1], [], []>} : vector<16x4xf32>, vector<4x32xf32>, vector<16x32xf32> -> vector<16x32xf32>
    %c8 = arith.constant 8 : index
    %c0_4 = arith.constant 0 : index
    %4 = vector.load %arg2[%c8, %c0_4] : memref<368x128xf32, #tpu.memory_space<vmem>>, vector<1x32xf32>
    %5 = vector.broadcast %4 : vector<1x32xf32> to vector<16x32xf32>
    %6 = arith.addf %3, %5 : vector<16x32xf32>
    %c16 = arith.constant 16 : index
    %c0_5 = arith.constant 0 : index
    %7 = vector.load %arg2[%c16, %c0_5] : memref<368x128xf32, #tpu.memory_space<vmem>>, vector<32x96xf32>
    %cst_6 = arith.constant dense<0.000000e+00> : vector<16x96xf32>
    %8 = tpu.matmul %6, %7, %cst_6 {dimension_numbers = #tpu.dot_dimension_numbers<[1], [0], [0], [1], [0, 0, 1, 1], [], []>} : vector<16x32xf32>, vector<32x96xf32>, vector<16x96xf32> -> vector<16x96xf32>
    %c48 = arith.constant 48 : index
    %c0_7 = arith.constant 0 : index
    %9 = vector.load %arg2[%c48, %c0_7] : memref<368x128xf32, #tpu.memory_space<vmem>>, vector<1x96xf32>
    %10 = vector.broadcast %9 : vector<1x96xf32> to vector<16x96xf32>
    %11 = arith.addf %8, %10 : vector<16x96xf32>
    %12 = vector.extract_strided_slice %11 {offsets = [0, 0], sizes = [16, 32], strides = [1, 1]} : vector<16x96xf32> to vector<16x32xf32>
    %13 = vector.extract_strided_slice %11 {offsets = [0, 32], sizes = [16, 32], strides = [1, 1]} : vector<16x96xf32> to vector<16x32xf32>
    %14 = vector.extract_strided_slice %11 {offsets = [0, 64], sizes = [16, 32], strides = [1, 1]} : vector<16x96xf32> to vector<16x32xf32>
    %15 = vector.extract_strided_slice %12 {offsets = [0, 0], sizes = [8, 32], strides = [1, 1]} : vector<16x32xf32> to vector<8x32xf32>
    %16 = vector.extract_strided_slice %13 {offsets = [0, 0], sizes = [8, 32], strides = [1, 1]} : vector<16x32xf32> to vector<8x32xf32>
    %17 = vector.extract_strided_slice %14 {offsets = [0, 0], sizes = [8, 32], strides = [1, 1]} : vector<16x32xf32> to vector<8x32xf32>
    %18 = tpu.concatenate %16, %16, %16, %16 in 0 : vector<8x32xf32>, vector<8x32xf32>, vector<8x32xf32>, vector<8x32xf32> -> vector<32x32xf32>
    %19 = arith.mulf %18, %0 : vector<32x32xf32>
    %20 = tpu.concatenate %17, %17, %17, %17 in 0 : vector<8x32xf32>, vector<8x32xf32>, vector<8x32xf32>, vector<8x32xf32> -> vector<32x32xf32>
    %21 = arith.mulf %20, %0 : vector<32x32xf32>
    %cst_8 = arith.constant dense<0.000000e+00> : vector<8x32xf32>
    %22 = tpu.matmul %15, %19, %cst_8 {dimension_numbers = #tpu.dot_dimension_numbers<[1], [1], [0], [0], [0, 0, 1, 0], [], []>} : vector<8x32xf32>, vector<32x32xf32>, vector<8x32xf32> -> vector<8x32xf32>
    %cst_9 = arith.constant dense<0xFF800000> : vector<8xf32>
    %23 = vector.multi_reduction <maximumf>, %22, %cst_9 [1] : vector<8x32xf32> to vector<8xf32>
    %24 = vector.shape_cast %23 : vector<8xf32> to vector<8x1xf32>
    %25 = vector.broadcast %24 : vector<8x1xf32> to vector<8x32xf32>
    %26 = arith.subf %22, %25 : vector<8x32xf32>
    %27 = math.exp %26 : vector<8x32xf32>
    %cst_10 = arith.constant dense<0.000000e+00> : vector<8x32xf32>
    %28 = tpu.matmul %27, %0, %cst_10 {dimension_numbers = #tpu.dot_dimension_numbers<[1], [0], [0], [1], [0, 0, 1, 1], [], []>} : vector<8x32xf32>, vector<32x32xf32>, vector<8x32xf32> -> vector<8x32xf32>
    %29 = tpu.reciprocal %28 {approx = true} : vector<8x32xf32> -> vector<8x32xf32>
    %30 = arith.mulf %27, %29 : vector<8x32xf32>
    %cst_11 = arith.constant dense<0.000000e+00> : vector<8x32xf32>
    %31 = tpu.matmul %30, %21, %cst_11 {dimension_numbers = #tpu.dot_dimension_numbers<[1], [0], [0], [1], [0, 0, 1, 1], [], []>} : vector<8x32xf32>, vector<32x32xf32>, vector<8x32xf32> -> vector<8x32xf32>
    %32 = vector.extract_strided_slice %12 {offsets = [8, 0], sizes = [8, 32], strides = [1, 1]} : vector<16x32xf32> to vector<8x32xf32>
    %33 = vector.extract_strided_slice %13 {offsets = [8, 0], sizes = [8, 32], strides = [1, 1]} : vector<16x32xf32> to vector<8x32xf32>
    %34 = vector.extract_strided_slice %14 {offsets = [8, 0], sizes = [8, 32], strides = [1, 1]} : vector<16x32xf32> to vector<8x32xf32>
    %35 = tpu.concatenate %33, %33, %33, %33 in 0 : vector<8x32xf32>, vector<8x32xf32>, vector<8x32xf32>, vector<8x32xf32> -> vector<32x32xf32>
    %36 = arith.mulf %35, %0 : vector<32x32xf32>
    %37 = tpu.concatenate %34, %34, %34, %34 in 0 : vector<8x32xf32>, vector<8x32xf32>, vector<8x32xf32>, vector<8x32xf32> -> vector<32x32xf32>
    %38 = arith.mulf %37, %0 : vector<32x32xf32>
    %cst_12 = arith.constant dense<0.000000e+00> : vector<8x32xf32>
    %39 = tpu.matmul %32, %36, %cst_12 {dimension_numbers = #tpu.dot_dimension_numbers<[1], [1], [0], [0], [0, 0, 1, 0], [], []>} : vector<8x32xf32>, vector<32x32xf32>, vector<8x32xf32> -> vector<8x32xf32>
    %cst_13 = arith.constant dense<0xFF800000> : vector<8xf32>
    %40 = vector.multi_reduction <maximumf>, %39, %cst_13 [1] : vector<8x32xf32> to vector<8xf32>
    %41 = vector.shape_cast %40 : vector<8xf32> to vector<8x1xf32>
    %42 = vector.broadcast %41 : vector<8x1xf32> to vector<8x32xf32>
    %43 = arith.subf %39, %42 : vector<8x32xf32>
    %44 = math.exp %43 : vector<8x32xf32>
    %cst_14 = arith.constant dense<0.000000e+00> : vector<8x32xf32>
    %45 = tpu.matmul %44, %0, %cst_14 {dimension_numbers = #tpu.dot_dimension_numbers<[1], [0], [0], [1], [0, 0, 1, 1], [], []>} : vector<8x32xf32>, vector<32x32xf32>, vector<8x32xf32> -> vector<8x32xf32>
    %46 = tpu.reciprocal %45 {approx = true} : vector<8x32xf32> -> vector<8x32xf32>
    %47 = arith.mulf %44, %46 : vector<8x32xf32>
    %cst_15 = arith.constant dense<0.000000e+00> : vector<8x32xf32>
    %48 = tpu.matmul %47, %38, %cst_15 {dimension_numbers = #tpu.dot_dimension_numbers<[1], [0], [0], [1], [0, 0, 1, 1], [], []>} : vector<8x32xf32>, vector<32x32xf32>, vector<8x32xf32> -> vector<8x32xf32>
    %49 = tpu.concatenate %31, %48 in 0 : vector<8x32xf32>, vector<8x32xf32> -> vector<16x32xf32>
    %c56 = arith.constant 56 : index
    %c0_16 = arith.constant 0 : index
    %50 = vector.load %arg2[%c56, %c0_16] : memref<368x128xf32, #tpu.memory_space<vmem>>, vector<32x32xf32>
    %cst_17 = arith.constant dense<0.000000e+00> : vector<16x32xf32>
    %51 = tpu.matmul %49, %50, %cst_17 {dimension_numbers = #tpu.dot_dimension_numbers<[1], [0], [0], [1], [0, 0, 1, 1], [], []>} : vector<16x32xf32>, vector<32x32xf32>, vector<16x32xf32> -> vector<16x32xf32>
    %c88 = arith.constant 88 : index
    %c0_18 = arith.constant 0 : index
    %52 = vector.load %arg2[%c88, %c0_18] : memref<368x128xf32, #tpu.memory_space<vmem>>, vector<1x32xf32>
    %53 = vector.broadcast %52 : vector<1x32xf32> to vector<16x32xf32>
    %54 = arith.addf %51, %53 : vector<16x32xf32>
    %55 = arith.addf %6, %54 : vector<16x32xf32>
    %c96 = arith.constant 96 : index
    %c0_19 = arith.constant 0 : index
    %56 = vector.load %arg2[%c96, %c0_19] : memref<368x128xf32, #tpu.memory_space<vmem>>, vector<1x32xf32>
    %c104 = arith.constant 104 : index
    %c0_20 = arith.constant 0 : index
    %57 = vector.load %arg2[%c104, %c0_20] : memref<368x128xf32, #tpu.memory_space<vmem>>, vector<1x32xf32>
    %cst_21 = arith.constant dense<0.000000e+00> : vector<16xf32>
    %58 = vector.multi_reduction <add>, %55, %cst_21 [1] : vector<16x32xf32> to vector<16xf32>
    %59 = vector.shape_cast %58 : vector<16xf32> to vector<16x1xf32>
    %cst_22 = arith.constant 3.200000e+01 : f32
    %60 = vector.broadcast %cst_22 : f32 to vector<16x1xf32>
    %61 = arith.divf %59, %60 : vector<16x1xf32>
    %62 = arith.mulf %55, %55 : vector<16x32xf32>
    %cst_23 = arith.constant dense<0.000000e+00> : vector<16xf32>
    %63 = vector.multi_reduction <add>, %62, %cst_23 [1] : vector<16x32xf32> to vector<16xf32>
    %64 = vector.shape_cast %63 : vector<16xf32> to vector<16x1xf32>
    %cst_24 = arith.constant 3.200000e+01 : f32
    %65 = vector.broadcast %cst_24 : f32 to vector<16x1xf32>
    %66 = arith.divf %64, %65 : vector<16x1xf32>
    %67 = vector.broadcast %61 : vector<16x1xf32> to vector<16x32xf32>
    %68 = arith.subf %55, %67 : vector<16x32xf32>
    %69 = arith.mulf %61, %61 : vector<16x1xf32>
    %70 = arith.subf %66, %69 : vector<16x1xf32>
    %cst_25 = arith.constant 9.99999974E-6 : f32
    %71 = vector.broadcast %cst_25 : f32 to vector<16x1xf32>
    %72 = arith.addf %70, %71 : vector<16x1xf32>
    %73 = math.rsqrt %72 : vector<16x1xf32>
    %74 = vector.broadcast %73 : vector<16x1xf32> to vector<16x32xf32>
    %75 = arith.mulf %68, %74 : vector<16x32xf32>
    %76 = vector.broadcast %56 : vector<1x32xf32> to vector<16x32xf32>
    %77 = arith.mulf %75, %76 : vector<16x32xf32>
    %78 = vector.broadcast %57 : vector<1x32xf32> to vector<16x32xf32>
    %79 = arith.addf %77, %78 : vector<16x32xf32>
    %80 = arith.truncf %79 : vector<16x32xf32> to vector<16x32xbf16>
    %cst_26 = arith.constant 0.000000e+00 : f32
    %81 = vector.broadcast %cst_26 : f32 to vector<16x32xf32>
    %c0_27 = arith.constant 0 : index
    %c0_28 = arith.constant 0 : index
    %c0_29 = arith.constant 0 : index
    %82 = vector.load %arg4[%c0_27, %c0_28, %c0_29] : memref<2x32x2048xbf16, #tpu.memory_space<vmem>>, vector<1x32x512xbf16>
    %83 = vector.shape_cast %82 : vector<1x32x512xbf16> to vector<32x512xbf16>
    %cst_30 = arith.constant dense<0.000000e+00> : vector<16x512xf32>
    %84 = tpu.matmul %80, %83, %cst_30 {dimension_numbers = #tpu.dot_dimension_numbers<[1], [0], [0], [1], [0, 0, 1, 1], [], []>} : vector<16x32xbf16>, vector<32x512xbf16>, vector<16x512xf32> -> vector<16x512xf32>
    %c0_31 = arith.constant 0 : index
    %c0_32 = arith.constant 0 : index
    %85 = vector.load %arg3[%c0_31, %c0_32] : memref<2x2048xf32, #tpu.memory_space<vmem>>, vector<1x512xf32>
    %86 = vector.broadcast %85 : vector<1x512xf32> to vector<16x512xf32>
    %87 = arith.addf %84, %86 : vector<16x512xf32>
    %cst_33 = arith.constant 0.000000e+00 : f32
    %88 = vector.broadcast %cst_33 : f32 to vector<16x512xf32>
    %89 = arith.maximumf %87, %88 : vector<16x512xf32>
    %90 = arith.truncf %89 : vector<16x512xf32> to vector<16x512xbf16>
    %c0_34 = arith.constant 0 : index
    %c0_35 = arith.constant 0 : index
    %c0_36 = arith.constant 0 : index
    %91 = vector.load %arg5[%c0_34, %c0_35, %c0_36] : memref<2x2048x32xbf16, #tpu.memory_space<vmem>>, vector<1x512x32xbf16>
    %92 = vector.shape_cast %91 : vector<1x512x32xbf16> to vector<512x32xbf16>
    %cst_37 = arith.constant dense<0.000000e+00> : vector<16x32xf32>
    %93 = tpu.matmul %90, %92, %cst_37 {dimension_numbers = #tpu.dot_dimension_numbers<[1], [0], [0], [1], [0, 0, 1, 1], [], []>} : vector<16x512xbf16>, vector<512x32xbf16>, vector<16x32xf32> -> vector<16x32xf32>
    %94 = arith.addf %81, %93 : vector<16x32xf32>
    %c0_38 = arith.constant 0 : index
    %c0_39 = arith.constant 0 : index
    %c512 = arith.constant 512 : index
    %95 = vector.load %arg4[%c0_38, %c0_39, %c512] : memref<2x32x2048xbf16, #tpu.memory_space<vmem>>, vector<1x32x512xbf16>
    %96 = vector.shape_cast %95 : vector<1x32x512xbf16> to vector<32x512xbf16>
    %cst_40 = arith.constant dense<0.000000e+00> : vector<16x512xf32>
    %97 = tpu.matmul %80, %96, %cst_40 {dimension_numbers = #tpu.dot_dimension_numbers<[1], [0], [0], [1], [0, 0, 1, 1], [], []>} : vector<16x32xbf16>, vector<32x512xbf16>, vector<16x512xf32> -> vector<16x512xf32>
    %c0_41 = arith.constant 0 : index
    %c512_42 = arith.constant 512 : index
    %98 = vector.load %arg3[%c0_41, %c512_42] : memref<2x2048xf32, #tpu.memory_space<vmem>>, vector<1x512xf32>
    %99 = vector.broadcast %98 : vector<1x512xf32> to vector<16x512xf32>
    %100 = arith.addf %97, %99 : vector<16x512xf32>
    %cst_43 = arith.constant 0.000000e+00 : f32
    %101 = vector.broadcast %cst_43 : f32 to vector<16x512xf32>
    %102 = arith.maximumf %100, %101 : vector<16x512xf32>
    %103 = arith.truncf %102 : vector<16x512xf32> to vector<16x512xbf16>
    %c0_44 = arith.constant 0 : index
    %c512_45 = arith.constant 512 : index
    %c0_46 = arith.constant 0 : index
    %104 = vector.load %arg5[%c0_44, %c512_45, %c0_46] : memref<2x2048x32xbf16, #tpu.memory_space<vmem>>, vector<1x512x32xbf16>
    %105 = vector.shape_cast %104 : vector<1x512x32xbf16> to vector<512x32xbf16>
    %cst_47 = arith.constant dense<0.000000e+00> : vector<16x32xf32>
    %106 = tpu.matmul %103, %105, %cst_47 {dimension_numbers = #tpu.dot_dimension_numbers<[1], [0], [0], [1], [0, 0, 1, 1], [], []>} : vector<16x512xbf16>, vector<512x32xbf16>, vector<16x32xf32> -> vector<16x32xf32>
    %107 = arith.addf %94, %106 : vector<16x32xf32>
    %c0_48 = arith.constant 0 : index
    %c0_49 = arith.constant 0 : index
    %c1024 = arith.constant 1024 : index
    %108 = vector.load %arg4[%c0_48, %c0_49, %c1024] : memref<2x32x2048xbf16, #tpu.memory_space<vmem>>, vector<1x32x512xbf16>
    %109 = vector.shape_cast %108 : vector<1x32x512xbf16> to vector<32x512xbf16>
    %cst_50 = arith.constant dense<0.000000e+00> : vector<16x512xf32>
    %110 = tpu.matmul %80, %109, %cst_50 {dimension_numbers = #tpu.dot_dimension_numbers<[1], [0], [0], [1], [0, 0, 1, 1], [], []>} : vector<16x32xbf16>, vector<32x512xbf16>, vector<16x512xf32> -> vector<16x512xf32>
    %c0_51 = arith.constant 0 : index
    %c1024_52 = arith.constant 1024 : index
    %111 = vector.load %arg3[%c0_51, %c1024_52] : memref<2x2048xf32, #tpu.memory_space<vmem>>, vector<1x512xf32>
    %112 = vector.broadcast %111 : vector<1x512xf32> to vector<16x512xf32>
    %113 = arith.addf %110, %112 : vector<16x512xf32>
    %cst_53 = arith.constant 0.000000e+00 : f32
    %114 = vector.broadcast %cst_53 : f32 to vector<16x512xf32>
    %115 = arith.maximumf %113, %114 : vector<16x512xf32>
    %116 = arith.truncf %115 : vector<16x512xf32> to vector<16x512xbf16>
    %c0_54 = arith.constant 0 : index
    %c1024_55 = arith.constant 1024 : index
    %c0_56 = arith.constant 0 : index
    %117 = vector.load %arg5[%c0_54, %c1024_55, %c0_56] : memref<2x2048x32xbf16, #tpu.memory_space<vmem>>, vector<1x512x32xbf16>
    %118 = vector.shape_cast %117 : vector<1x512x32xbf16> to vector<512x32xbf16>
    %cst_57 = arith.constant dense<0.000000e+00> : vector<16x32xf32>
    %119 = tpu.matmul %116, %118, %cst_57 {dimension_numbers = #tpu.dot_dimension_numbers<[1], [0], [0], [1], [0, 0, 1, 1], [], []>} : vector<16x512xbf16>, vector<512x32xbf16>, vector<16x32xf32> -> vector<16x32xf32>
    %120 = arith.addf %107, %119 : vector<16x32xf32>
    %c0_58 = arith.constant 0 : index
    %c0_59 = arith.constant 0 : index
    %c1536 = arith.constant 1536 : index
    %121 = vector.load %arg4[%c0_58, %c0_59, %c1536] : memref<2x32x2048xbf16, #tpu.memory_space<vmem>>, vector<1x32x512xbf16>
    %122 = vector.shape_cast %121 : vector<1x32x512xbf16> to vector<32x512xbf16>
    %cst_60 = arith.constant dense<0.000000e+00> : vector<16x512xf32>
    %123 = tpu.matmul %80, %122, %cst_60 {dimension_numbers = #tpu.dot_dimension_numbers<[1], [0], [0], [1], [0, 0, 1, 1], [], []>} : vector<16x32xbf16>, vector<32x512xbf16>, vector<16x512xf32> -> vector<16x512xf32>
    %c0_61 = arith.constant 0 : index
    %c1536_62 = arith.constant 1536 : index
    %124 = vector.load %arg3[%c0_61, %c1536_62] : memref<2x2048xf32, #tpu.memory_space<vmem>>, vector<1x512xf32>
    %125 = vector.broadcast %124 : vector<1x512xf32> to vector<16x512xf32>
    %126 = arith.addf %123, %125 : vector<16x512xf32>
    %cst_63 = arith.constant 0.000000e+00 : f32
    %127 = vector.broadcast %cst_63 : f32 to vector<16x512xf32>
    %128 = arith.maximumf %126, %127 : vector<16x512xf32>
    %129 = arith.truncf %128 : vector<16x512xf32> to vector<16x512xbf16>
    %c0_64 = arith.constant 0 : index
    %c1536_65 = arith.constant 1536 : index
    %c0_66 = arith.constant 0 : index
    %130 = vector.load %arg5[%c0_64, %c1536_65, %c0_66] : memref<2x2048x32xbf16, #tpu.memory_space<vmem>>, vector<1x512x32xbf16>
    %131 = vector.shape_cast %130 : vector<1x512x32xbf16> to vector<512x32xbf16>
    %cst_67 = arith.constant dense<0.000000e+00> : vector<16x32xf32>
    %132 = tpu.matmul %129, %131, %cst_67 {dimension_numbers = #tpu.dot_dimension_numbers<[1], [0], [0], [1], [0, 0, 1, 1], [], []>} : vector<16x512xbf16>, vector<512x32xbf16>, vector<16x32xf32> -> vector<16x32xf32>
    %133 = arith.addf %120, %132 : vector<16x32xf32>
    %134 = arith.addf %79, %133 : vector<16x32xf32>
    %c112 = arith.constant 112 : index
    %c0_68 = arith.constant 0 : index
    %135 = vector.load %arg2[%c112, %c0_68] : memref<368x128xf32, #tpu.memory_space<vmem>>, vector<1x32xf32>
    %136 = vector.broadcast %135 : vector<1x32xf32> to vector<16x32xf32>
    %137 = arith.addf %134, %136 : vector<16x32xf32>
    %c120 = arith.constant 120 : index
    %c0_69 = arith.constant 0 : index
    %138 = vector.load %arg2[%c120, %c0_69] : memref<368x128xf32, #tpu.memory_space<vmem>>, vector<1x32xf32>
    %c128 = arith.constant 128 : index
    %c0_70 = arith.constant 0 : index
    %139 = vector.load %arg2[%c128, %c0_70] : memref<368x128xf32, #tpu.memory_space<vmem>>, vector<1x32xf32>
    %cst_71 = arith.constant dense<0.000000e+00> : vector<16xf32>
    %140 = vector.multi_reduction <add>, %137, %cst_71 [1] : vector<16x32xf32> to vector<16xf32>
    %141 = vector.shape_cast %140 : vector<16xf32> to vector<16x1xf32>
    %cst_72 = arith.constant 3.200000e+01 : f32
    %142 = vector.broadcast %cst_72 : f32 to vector<16x1xf32>
    %143 = arith.divf %141, %142 : vector<16x1xf32>
    %144 = arith.mulf %137, %137 : vector<16x32xf32>
    %cst_73 = arith.constant dense<0.000000e+00> : vector<16xf32>
    %145 = vector.multi_reduction <add>, %144, %cst_73 [1] : vector<16x32xf32> to vector<16xf32>
    %146 = vector.shape_cast %145 : vector<16xf32> to vector<16x1xf32>
    %cst_74 = arith.constant 3.200000e+01 : f32
    %147 = vector.broadcast %cst_74 : f32 to vector<16x1xf32>
    %148 = arith.divf %146, %147 : vector<16x1xf32>
    %149 = vector.broadcast %143 : vector<16x1xf32> to vector<16x32xf32>
    %150 = arith.subf %137, %149 : vector<16x32xf32>
    %151 = arith.mulf %143, %143 : vector<16x1xf32>
    %152 = arith.subf %148, %151 : vector<16x1xf32>
    %cst_75 = arith.constant 9.99999974E-6 : f32
    %153 = vector.broadcast %cst_75 : f32 to vector<16x1xf32>
    %154 = arith.addf %152, %153 : vector<16x1xf32>
    %155 = math.rsqrt %154 : vector<16x1xf32>
    %156 = vector.broadcast %155 : vector<16x1xf32> to vector<16x32xf32>
    %157 = arith.mulf %150, %156 : vector<16x32xf32>
    %158 = vector.broadcast %138 : vector<1x32xf32> to vector<16x32xf32>
    %159 = arith.mulf %157, %158 : vector<16x32xf32>
    %160 = vector.broadcast %139 : vector<1x32xf32> to vector<16x32xf32>
    %161 = arith.addf %159, %160 : vector<16x32xf32>
    %c136 = arith.constant 136 : index
    %c0_76 = arith.constant 0 : index
    %162 = vector.load %arg2[%c136, %c0_76] : memref<368x128xf32, #tpu.memory_space<vmem>>, vector<32x96xf32>
    %cst_77 = arith.constant dense<0.000000e+00> : vector<16x96xf32>
    %163 = tpu.matmul %161, %162, %cst_77 {dimension_numbers = #tpu.dot_dimension_numbers<[1], [0], [0], [1], [0, 0, 1, 1], [], []>} : vector<16x32xf32>, vector<32x96xf32>, vector<16x96xf32> -> vector<16x96xf32>
    %c168 = arith.constant 168 : index
    %c0_78 = arith.constant 0 : index
    %164 = vector.load %arg2[%c168, %c0_78] : memref<368x128xf32, #tpu.memory_space<vmem>>, vector<1x96xf32>
    %165 = vector.broadcast %164 : vector<1x96xf32> to vector<16x96xf32>
    %166 = arith.addf %163, %165 : vector<16x96xf32>
    %167 = vector.extract_strided_slice %166 {offsets = [0, 0], sizes = [16, 32], strides = [1, 1]} : vector<16x96xf32> to vector<16x32xf32>
    %168 = vector.extract_strided_slice %166 {offsets = [0, 32], sizes = [16, 32], strides = [1, 1]} : vector<16x96xf32> to vector<16x32xf32>
    %169 = vector.extract_strided_slice %166 {offsets = [0, 64], sizes = [16, 32], strides = [1, 1]} : vector<16x96xf32> to vector<16x32xf32>
    %170 = vector.extract_strided_slice %167 {offsets = [0, 0], sizes = [8, 32], strides = [1, 1]} : vector<16x32xf32> to vector<8x32xf32>
    %171 = vector.extract_strided_slice %168 {offsets = [0, 0], sizes = [8, 32], strides = [1, 1]} : vector<16x32xf32> to vector<8x32xf32>
    %172 = vector.extract_strided_slice %169 {offsets = [0, 0], sizes = [8, 32], strides = [1, 1]} : vector<16x32xf32> to vector<8x32xf32>
    %173 = tpu.concatenate %171, %171, %171, %171 in 0 : vector<8x32xf32>, vector<8x32xf32>, vector<8x32xf32>, vector<8x32xf32> -> vector<32x32xf32>
    %174 = arith.mulf %173, %0 : vector<32x32xf32>
    %175 = tpu.concatenate %172, %172, %172, %172 in 0 : vector<8x32xf32>, vector<8x32xf32>, vector<8x32xf32>, vector<8x32xf32> -> vector<32x32xf32>
    %176 = arith.mulf %175, %0 : vector<32x32xf32>
    %cst_79 = arith.constant dense<0.000000e+00> : vector<8x32xf32>
    %177 = tpu.matmul %170, %174, %cst_79 {dimension_numbers = #tpu.dot_dimension_numbers<[1], [1], [0], [0], [0, 0, 1, 0], [], []>} : vector<8x32xf32>, vector<32x32xf32>, vector<8x32xf32> -> vector<8x32xf32>
    %cst_80 = arith.constant dense<0xFF800000> : vector<8xf32>
    %178 = vector.multi_reduction <maximumf>, %177, %cst_80 [1] : vector<8x32xf32> to vector<8xf32>
    %179 = vector.shape_cast %178 : vector<8xf32> to vector<8x1xf32>
    %180 = vector.broadcast %179 : vector<8x1xf32> to vector<8x32xf32>
    %181 = arith.subf %177, %180 : vector<8x32xf32>
    %182 = math.exp %181 : vector<8x32xf32>
    %cst_81 = arith.constant dense<0.000000e+00> : vector<8x32xf32>
    %183 = tpu.matmul %182, %0, %cst_81 {dimension_numbers = #tpu.dot_dimension_numbers<[1], [0], [0], [1], [0, 0, 1, 1], [], []>} : vector<8x32xf32>, vector<32x32xf32>, vector<8x32xf32> -> vector<8x32xf32>
    %184 = tpu.reciprocal %183 {approx = true} : vector<8x32xf32> -> vector<8x32xf32>
    %185 = arith.mulf %182, %184 : vector<8x32xf32>
    %cst_82 = arith.constant dense<0.000000e+00> : vector<8x32xf32>
    %186 = tpu.matmul %185, %176, %cst_82 {dimension_numbers = #tpu.dot_dimension_numbers<[1], [0], [0], [1], [0, 0, 1, 1], [], []>} : vector<8x32xf32>, vector<32x32xf32>, vector<8x32xf32> -> vector<8x32xf32>
    %187 = vector.extract_strided_slice %167 {offsets = [8, 0], sizes = [8, 32], strides = [1, 1]} : vector<16x32xf32> to vector<8x32xf32>
    %188 = vector.extract_strided_slice %168 {offsets = [8, 0], sizes = [8, 32], strides = [1, 1]} : vector<16x32xf32> to vector<8x32xf32>
    %189 = vector.extract_strided_slice %169 {offsets = [8, 0], sizes = [8, 32], strides = [1, 1]} : vector<16x32xf32> to vector<8x32xf32>
    %190 = tpu.concatenate %188, %188, %188, %188 in 0 : vector<8x32xf32>, vector<8x32xf32>, vector<8x32xf32>, vector<8x32xf32> -> vector<32x32xf32>
    %191 = arith.mulf %190, %0 : vector<32x32xf32>
    %192 = tpu.concatenate %189, %189, %189, %189 in 0 : vector<8x32xf32>, vector<8x32xf32>, vector<8x32xf32>, vector<8x32xf32> -> vector<32x32xf32>
    %193 = arith.mulf %192, %0 : vector<32x32xf32>
    %cst_83 = arith.constant dense<0.000000e+00> : vector<8x32xf32>
    %194 = tpu.matmul %187, %191, %cst_83 {dimension_numbers = #tpu.dot_dimension_numbers<[1], [1], [0], [0], [0, 0, 1, 0], [], []>} : vector<8x32xf32>, vector<32x32xf32>, vector<8x32xf32> -> vector<8x32xf32>
    %cst_84 = arith.constant dense<0xFF800000> : vector<8xf32>
    %195 = vector.multi_reduction <maximumf>, %194, %cst_84 [1] : vector<8x32xf32> to vector<8xf32>
    %196 = vector.shape_cast %195 : vector<8xf32> to vector<8x1xf32>
    %197 = vector.broadcast %196 : vector<8x1xf32> to vector<8x32xf32>
    %198 = arith.subf %194, %197 : vector<8x32xf32>
    %199 = math.exp %198 : vector<8x32xf32>
    %cst_85 = arith.constant dense<0.000000e+00> : vector<8x32xf32>
    %200 = tpu.matmul %199, %0, %cst_85 {dimension_numbers = #tpu.dot_dimension_numbers<[1], [0], [0], [1], [0, 0, 1, 1], [], []>} : vector<8x32xf32>, vector<32x32xf32>, vector<8x32xf32> -> vector<8x32xf32>
    %201 = tpu.reciprocal %200 {approx = true} : vector<8x32xf32> -> vector<8x32xf32>
    %202 = arith.mulf %199, %201 : vector<8x32xf32>
    %cst_86 = arith.constant dense<0.000000e+00> : vector<8x32xf32>
    %203 = tpu.matmul %202, %193, %cst_86 {dimension_numbers = #tpu.dot_dimension_numbers<[1], [0], [0], [1], [0, 0, 1, 1], [], []>} : vector<8x32xf32>, vector<32x32xf32>, vector<8x32xf32> -> vector<8x32xf32>
    %204 = tpu.concatenate %186, %203 in 0 : vector<8x32xf32>, vector<8x32xf32> -> vector<16x32xf32>
    %c176 = arith.constant 176 : index
    %c0_87 = arith.constant 0 : index
    %205 = vector.load %arg2[%c176, %c0_87] : memref<368x128xf32, #tpu.memory_space<vmem>>, vector<32x32xf32>
    %cst_88 = arith.constant dense<0.000000e+00> : vector<16x32xf32>
    %206 = tpu.matmul %204, %205, %cst_88 {dimension_numbers = #tpu.dot_dimension_numbers<[1], [0], [0], [1], [0, 0, 1, 1], [], []>} : vector<16x32xf32>, vector<32x32xf32>, vector<16x32xf32> -> vector<16x32xf32>
    %c208 = arith.constant 208 : index
    %c0_89 = arith.constant 0 : index
    %207 = vector.load %arg2[%c208, %c0_89] : memref<368x128xf32, #tpu.memory_space<vmem>>, vector<1x32xf32>
    %208 = vector.broadcast %207 : vector<1x32xf32> to vector<16x32xf32>
    %209 = arith.addf %206, %208 : vector<16x32xf32>
    %210 = arith.addf %161, %209 : vector<16x32xf32>
    %c216 = arith.constant 216 : index
    %c0_90 = arith.constant 0 : index
    %211 = vector.load %arg2[%c216, %c0_90] : memref<368x128xf32, #tpu.memory_space<vmem>>, vector<1x32xf32>
    %c224 = arith.constant 224 : index
    %c0_91 = arith.constant 0 : index
    %212 = vector.load %arg2[%c224, %c0_91] : memref<368x128xf32, #tpu.memory_space<vmem>>, vector<1x32xf32>
    %cst_92 = arith.constant dense<0.000000e+00> : vector<16xf32>
    %213 = vector.multi_reduction <add>, %210, %cst_92 [1] : vector<16x32xf32> to vector<16xf32>
    %214 = vector.shape_cast %213 : vector<16xf32> to vector<16x1xf32>
    %cst_93 = arith.constant 3.200000e+01 : f32
    %215 = vector.broadcast %cst_93 : f32 to vector<16x1xf32>
    %216 = arith.divf %214, %215 : vector<16x1xf32>
    %217 = arith.mulf %210, %210 : vector<16x32xf32>
    %cst_94 = arith.constant dense<0.000000e+00> : vector<16xf32>
    %218 = vector.multi_reduction <add>, %217, %cst_94 [1] : vector<16x32xf32> to vector<16xf32>
    %219 = vector.shape_cast %218 : vector<16xf32> to vector<16x1xf32>
    %cst_95 = arith.constant 3.200000e+01 : f32
    %220 = vector.broadcast %cst_95 : f32 to vector<16x1xf32>
    %221 = arith.divf %219, %220 : vector<16x1xf32>
    %222 = vector.broadcast %216 : vector<16x1xf32> to vector<16x32xf32>
    %223 = arith.subf %210, %222 : vector<16x32xf32>
    %224 = arith.mulf %216, %216 : vector<16x1xf32>
    %225 = arith.subf %221, %224 : vector<16x1xf32>
    %cst_96 = arith.constant 9.99999974E-6 : f32
    %226 = vector.broadcast %cst_96 : f32 to vector<16x1xf32>
    %227 = arith.addf %225, %226 : vector<16x1xf32>
    %228 = math.rsqrt %227 : vector<16x1xf32>
    %229 = vector.broadcast %228 : vector<16x1xf32> to vector<16x32xf32>
    %230 = arith.mulf %223, %229 : vector<16x32xf32>
    %231 = vector.broadcast %211 : vector<1x32xf32> to vector<16x32xf32>
    %232 = arith.mulf %230, %231 : vector<16x32xf32>
    %233 = vector.broadcast %212 : vector<1x32xf32> to vector<16x32xf32>
    %234 = arith.addf %232, %233 : vector<16x32xf32>
    %235 = arith.truncf %234 : vector<16x32xf32> to vector<16x32xbf16>
    %cst_97 = arith.constant 0.000000e+00 : f32
    %236 = vector.broadcast %cst_97 : f32 to vector<16x32xf32>
    %c1 = arith.constant 1 : index
    %c0_98 = arith.constant 0 : index
    %c0_99 = arith.constant 0 : index
    %237 = vector.load %arg4[%c1, %c0_98, %c0_99] : memref<2x32x2048xbf16, #tpu.memory_space<vmem>>, vector<1x32x512xbf16>
    %238 = vector.shape_cast %237 : vector<1x32x512xbf16> to vector<32x512xbf16>
    %cst_100 = arith.constant dense<0.000000e+00> : vector<16x512xf32>
    %239 = tpu.matmul %235, %238, %cst_100 {dimension_numbers = #tpu.dot_dimension_numbers<[1], [0], [0], [1], [0, 0, 1, 1], [], []>} : vector<16x32xbf16>, vector<32x512xbf16>, vector<16x512xf32> -> vector<16x512xf32>
    %c1_101 = arith.constant 1 : index
    %c0_102 = arith.constant 0 : index
    %240 = vector.load %arg3[%c1_101, %c0_102] : memref<2x2048xf32, #tpu.memory_space<vmem>>, vector<1x512xf32>
    %241 = vector.broadcast %240 : vector<1x512xf32> to vector<16x512xf32>
    %242 = arith.addf %239, %241 : vector<16x512xf32>
    %cst_103 = arith.constant 0.000000e+00 : f32
    %243 = vector.broadcast %cst_103 : f32 to vector<16x512xf32>
    %244 = arith.maximumf %242, %243 : vector<16x512xf32>
    %245 = arith.truncf %244 : vector<16x512xf32> to vector<16x512xbf16>
    %c1_104 = arith.constant 1 : index
    %c0_105 = arith.constant 0 : index
    %c0_106 = arith.constant 0 : index
    %246 = vector.load %arg5[%c1_104, %c0_105, %c0_106] : memref<2x2048x32xbf16, #tpu.memory_space<vmem>>, vector<1x512x32xbf16>
    %247 = vector.shape_cast %246 : vector<1x512x32xbf16> to vector<512x32xbf16>
    %cst_107 = arith.constant dense<0.000000e+00> : vector<16x32xf32>
    %248 = tpu.matmul %245, %247, %cst_107 {dimension_numbers = #tpu.dot_dimension_numbers<[1], [0], [0], [1], [0, 0, 1, 1], [], []>} : vector<16x512xbf16>, vector<512x32xbf16>, vector<16x32xf32> -> vector<16x32xf32>
    %249 = arith.addf %236, %248 : vector<16x32xf32>
    %c1_108 = arith.constant 1 : index
    %c0_109 = arith.constant 0 : index
    %c512_110 = arith.constant 512 : index
    %250 = vector.load %arg4[%c1_108, %c0_109, %c512_110] : memref<2x32x2048xbf16, #tpu.memory_space<vmem>>, vector<1x32x512xbf16>
    %251 = vector.shape_cast %250 : vector<1x32x512xbf16> to vector<32x512xbf16>
    %cst_111 = arith.constant dense<0.000000e+00> : vector<16x512xf32>
    %252 = tpu.matmul %235, %251, %cst_111 {dimension_numbers = #tpu.dot_dimension_numbers<[1], [0], [0], [1], [0, 0, 1, 1], [], []>} : vector<16x32xbf16>, vector<32x512xbf16>, vector<16x512xf32> -> vector<16x512xf32>
    %c1_112 = arith.constant 1 : index
    %c512_113 = arith.constant 512 : index
    %253 = vector.load %arg3[%c1_112, %c512_113] : memref<2x2048xf32, #tpu.memory_space<vmem>>, vector<1x512xf32>
    %254 = vector.broadcast %253 : vector<1x512xf32> to vector<16x512xf32>
    %255 = arith.addf %252, %254 : vector<16x512xf32>
    %cst_114 = arith.constant 0.000000e+00 : f32
    %256 = vector.broadcast %cst_114 : f32 to vector<16x512xf32>
    %257 = arith.maximumf %255, %256 : vector<16x512xf32>
    %258 = arith.truncf %257 : vector<16x512xf32> to vector<16x512xbf16>
    %c1_115 = arith.constant 1 : index
    %c512_116 = arith.constant 512 : index
    %c0_117 = arith.constant 0 : index
    %259 = vector.load %arg5[%c1_115, %c512_116, %c0_117] : memref<2x2048x32xbf16, #tpu.memory_space<vmem>>, vector<1x512x32xbf16>
    %260 = vector.shape_cast %259 : vector<1x512x32xbf16> to vector<512x32xbf16>
    %cst_118 = arith.constant dense<0.000000e+00> : vector<16x32xf32>
    %261 = tpu.matmul %258, %260, %cst_118 {dimension_numbers = #tpu.dot_dimension_numbers<[1], [0], [0], [1], [0, 0, 1, 1], [], []>} : vector<16x512xbf16>, vector<512x32xbf16>, vector<16x32xf32> -> vector<16x32xf32>
    %262 = arith.addf %249, %261 : vector<16x32xf32>
    %c1_119 = arith.constant 1 : index
    %c0_120 = arith.constant 0 : index
    %c1024_121 = arith.constant 1024 : index
    %263 = vector.load %arg4[%c1_119, %c0_120, %c1024_121] : memref<2x32x2048xbf16, #tpu.memory_space<vmem>>, vector<1x32x512xbf16>
    %264 = vector.shape_cast %263 : vector<1x32x512xbf16> to vector<32x512xbf16>
    %cst_122 = arith.constant dense<0.000000e+00> : vector<16x512xf32>
    %265 = tpu.matmul %235, %264, %cst_122 {dimension_numbers = #tpu.dot_dimension_numbers<[1], [0], [0], [1], [0, 0, 1, 1], [], []>} : vector<16x32xbf16>, vector<32x512xbf16>, vector<16x512xf32> -> vector<16x512xf32>
    %c1_123 = arith.constant 1 : index
    %c1024_124 = arith.constant 1024 : index
    %266 = vector.load %arg3[%c1_123, %c1024_124] : memref<2x2048xf32, #tpu.memory_space<vmem>>, vector<1x512xf32>
    %267 = vector.broadcast %266 : vector<1x512xf32> to vector<16x512xf32>
    %268 = arith.addf %265, %267 : vector<16x512xf32>
    %cst_125 = arith.constant 0.000000e+00 : f32
    %269 = vector.broadcast %cst_125 : f32 to vector<16x512xf32>
    %270 = arith.maximumf %268, %269 : vector<16x512xf32>
    %271 = arith.truncf %270 : vector<16x512xf32> to vector<16x512xbf16>
    %c1_126 = arith.constant 1 : index
    %c1024_127 = arith.constant 1024 : index
    %c0_128 = arith.constant 0 : index
    %272 = vector.load %arg5[%c1_126, %c1024_127, %c0_128] : memref<2x2048x32xbf16, #tpu.memory_space<vmem>>, vector<1x512x32xbf16>
    %273 = vector.shape_cast %272 : vector<1x512x32xbf16> to vector<512x32xbf16>
    %cst_129 = arith.constant dense<0.000000e+00> : vector<16x32xf32>
    %274 = tpu.matmul %271, %273, %cst_129 {dimension_numbers = #tpu.dot_dimension_numbers<[1], [0], [0], [1], [0, 0, 1, 1], [], []>} : vector<16x512xbf16>, vector<512x32xbf16>, vector<16x32xf32> -> vector<16x32xf32>
    %275 = arith.addf %262, %274 : vector<16x32xf32>
    %c1_130 = arith.constant 1 : index
    %c0_131 = arith.constant 0 : index
    %c1536_132 = arith.constant 1536 : index
    %276 = vector.load %arg4[%c1_130, %c0_131, %c1536_132] : memref<2x32x2048xbf16, #tpu.memory_space<vmem>>, vector<1x32x512xbf16>
    %277 = vector.shape_cast %276 : vector<1x32x512xbf16> to vector<32x512xbf16>
    %cst_133 = arith.constant dense<0.000000e+00> : vector<16x512xf32>
    %278 = tpu.matmul %235, %277, %cst_133 {dimension_numbers = #tpu.dot_dimension_numbers<[1], [0], [0], [1], [0, 0, 1, 1], [], []>} : vector<16x32xbf16>, vector<32x512xbf16>, vector<16x512xf32> -> vector<16x512xf32>
    %c1_134 = arith.constant 1 : index
    %c1536_135 = arith.constant 1536 : index
    %279 = vector.load %arg3[%c1_134, %c1536_135] : memref<2x2048xf32, #tpu.memory_space<vmem>>, vector<1x512xf32>
    %280 = vector.broadcast %279 : vector<1x512xf32> to vector<16x512xf32>
    %281 = arith.addf %278, %280 : vector<16x512xf32>
    %cst_136 = arith.constant 0.000000e+00 : f32
    %282 = vector.broadcast %cst_136 : f32 to vector<16x512xf32>
    %283 = arith.maximumf %281, %282 : vector<16x512xf32>
    %284 = arith.truncf %283 : vector<16x512xf32> to vector<16x512xbf16>
    %c1_137 = arith.constant 1 : index
    %c1536_138 = arith.constant 1536 : index
    %c0_139 = arith.constant 0 : index
    %285 = vector.load %arg5[%c1_137, %c1536_138, %c0_139] : memref<2x2048x32xbf16, #tpu.memory_space<vmem>>, vector<1x512x32xbf16>
    %286 = vector.shape_cast %285 : vector<1x512x32xbf16> to vector<512x32xbf16>
    %cst_140 = arith.constant dense<0.000000e+00> : vector<16x32xf32>
    %287 = tpu.matmul %284, %286, %cst_140 {dimension_numbers = #tpu.dot_dimension_numbers<[1], [0], [0], [1], [0, 0, 1, 1], [], []>} : vector<16x512xbf16>, vector<512x32xbf16>, vector<16x32xf32> -> vector<16x32xf32>
    %288 = arith.addf %275, %287 : vector<16x32xf32>
    %289 = arith.addf %234, %288 : vector<16x32xf32>
    %c232 = arith.constant 232 : index
    %c0_141 = arith.constant 0 : index
    %290 = vector.load %arg2[%c232, %c0_141] : memref<368x128xf32, #tpu.memory_space<vmem>>, vector<1x32xf32>
    %291 = vector.broadcast %290 : vector<1x32xf32> to vector<16x32xf32>
    %292 = arith.addf %289, %291 : vector<16x32xf32>
    %c240 = arith.constant 240 : index
    %c0_142 = arith.constant 0 : index
    %293 = vector.load %arg2[%c240, %c0_142] : memref<368x128xf32, #tpu.memory_space<vmem>>, vector<1x32xf32>
    %c248 = arith.constant 248 : index
    %c0_143 = arith.constant 0 : index
    %294 = vector.load %arg2[%c248, %c0_143] : memref<368x128xf32, #tpu.memory_space<vmem>>, vector<1x32xf32>
    %cst_144 = arith.constant dense<0.000000e+00> : vector<16xf32>
    %295 = vector.multi_reduction <add>, %292, %cst_144 [1] : vector<16x32xf32> to vector<16xf32>
    %296 = vector.shape_cast %295 : vector<16xf32> to vector<16x1xf32>
    %cst_145 = arith.constant 3.200000e+01 : f32
    %297 = vector.broadcast %cst_145 : f32 to vector<16x1xf32>
    %298 = arith.divf %296, %297 : vector<16x1xf32>
    %299 = arith.mulf %292, %292 : vector<16x32xf32>
    %cst_146 = arith.constant dense<0.000000e+00> : vector<16xf32>
    %300 = vector.multi_reduction <add>, %299, %cst_146 [1] : vector<16x32xf32> to vector<16xf32>
    %301 = vector.shape_cast %300 : vector<16xf32> to vector<16x1xf32>
    %cst_147 = arith.constant 3.200000e+01 : f32
    %302 = vector.broadcast %cst_147 : f32 to vector<16x1xf32>
    %303 = arith.divf %301, %302 : vector<16x1xf32>
    %304 = vector.broadcast %298 : vector<16x1xf32> to vector<16x32xf32>
    %305 = arith.subf %292, %304 : vector<16x32xf32>
    %306 = arith.mulf %298, %298 : vector<16x1xf32>
    %307 = arith.subf %303, %306 : vector<16x1xf32>
    %cst_148 = arith.constant 9.99999974E-6 : f32
    %308 = vector.broadcast %cst_148 : f32 to vector<16x1xf32>
    %309 = arith.addf %307, %308 : vector<16x1xf32>
    %310 = math.rsqrt %309 : vector<16x1xf32>
    %311 = vector.broadcast %310 : vector<16x1xf32> to vector<16x32xf32>
    %312 = arith.mulf %305, %311 : vector<16x32xf32>
    %313 = vector.broadcast %293 : vector<1x32xf32> to vector<16x32xf32>
    %314 = arith.mulf %312, %313 : vector<16x32xf32>
    %315 = vector.broadcast %294 : vector<1x32xf32> to vector<16x32xf32>
    %316 = arith.addf %314, %315 : vector<16x32xf32>
    %c360 = arith.constant 360 : index
    %c0_149 = arith.constant 0 : index
    %317 = vector.load %arg2[%c360, %c0_149] : memref<368x128xf32, #tpu.memory_space<vmem>>, vector<2x16xf32>
    %cst_150 = arith.constant dense<0.000000e+00> : vector<2x32xf32>
    %318 = tpu.matmul %317, %316, %cst_150 {dimension_numbers = #tpu.dot_dimension_numbers<[1], [0], [0], [1], [0, 0, 1, 1], [], []>} : vector<2x16xf32>, vector<16x32xf32>, vector<2x32xf32> -> vector<2x32xf32>
    %c256 = arith.constant 256 : index
    %c0_151 = arith.constant 0 : index
    %319 = vector.load %arg2[%c256, %c0_151] : memref<368x128xf32, #tpu.memory_space<vmem>>, vector<32x16xf32>
    %cst_152 = arith.constant dense<0.000000e+00> : vector<2x16xf32>
    %320 = tpu.matmul %318, %319, %cst_152 {dimension_numbers = #tpu.dot_dimension_numbers<[1], [0], [0], [1], [0, 0, 1, 1], [], []>} : vector<2x32xf32>, vector<32x16xf32>, vector<2x16xf32> -> vector<2x16xf32>
    %c0_153 = arith.constant 0 : index
    %c0_154 = arith.constant 0 : index
    %321 = vector.load %arg1[%c0_153, %c0_154] : memref<2x32xf32, #tpu.memory_space<vmem>>, vector<2x32xf32>
    %c288 = arith.constant 288 : index
    %c0_155 = arith.constant 0 : index
    %322 = vector.load %arg2[%c288, %c0_155] : memref<368x128xf32, #tpu.memory_space<vmem>>, vector<32x16xf32>
    %cst_156 = arith.constant dense<0.000000e+00> : vector<2x16xf32>
    %323 = tpu.matmul %321, %322, %cst_156 {dimension_numbers = #tpu.dot_dimension_numbers<[1], [0], [0], [1], [0, 0, 1, 1], [], []>} : vector<2x32xf32>, vector<32x16xf32>, vector<2x16xf32> -> vector<2x16xf32>
    %324 = arith.addf %320, %323 : vector<2x16xf32>
    %c320 = arith.constant 320 : index
    %c0_157 = arith.constant 0 : index
    %325 = vector.load %arg2[%c320, %c0_157] : memref<368x128xf32, #tpu.memory_space<vmem>>, vector<1x16xf32>
    %326 = vector.broadcast %325 : vector<1x16xf32> to vector<2x16xf32>
    %327 = arith.addf %324, %326 : vector<2x16xf32>
    %c0_158 = arith.constant 0 : index
    %c0_159 = arith.constant 0 : index
    %328 = vector.load %arg6[%c0_158, %c0_159] : memref<2x16xf32, #tpu.memory_space<vmem>>, vector<2x16xf32>
    tpu.vector_store %arg6[%c0_158, %c0_159], %327 {strides = array<i32>} : memref<2x16xf32, #tpu.memory_space<vmem>>, vector<2x16xf32>,
    return
  }
}

</mosaic_0001>

<llo_original>
// kernel: encoder_fwd.1
$region0: #{encoder_fwd.1}
  #allocation0 [shape = 'u32[]', space=smem, size = 0x4, offset = 0x4, fixed_abs, tag = 'smem constant byte address 0x4 - core index']
  #allocation1 [shape = 'u32[72,128]{1,0:T(1,128)}', space=vmem, size = 0x9000, scoped, tag = 'internal scratch']
  %s0 = inlined_call_operand.vmem [shape: f32[16,4], index: 0, kind: input, shape index: {}]
  %s1 = inlined_call_operand.vmem [shape: f32[2,32], index: 1, kind: input, shape index: {}]
  %s2 = inlined_call_operand.vmem [shape: f32[368,128], index: 2, kind: input, shape index: {}]
  %s3 = inlined_call_operand.vmem [shape: f32[2,2048], index: 3, kind: input, shape index: {}]
  %s4 = inlined_call_operand.vmem [shape: bf16[2,32,2048], index: 4, kind: input, shape index: {}]
  %s5 = inlined_call_operand.vmem [shape: bf16[2,2048,32], index: 5, kind: input, shape index: {}]
  %s6 = inlined_call_operand.hbm [shape: f32[2,16], index: 6, kind: output, shape index: {}]
  %s7 = sld [smem:[#allocation0]]
  $region34: #{encoder_fwd.1} parent=0
    _
  %s9 = ssub.s32 1, %s7
  %s10 = scalar_select 0, %s9, %s7
  $region1: #{encoder_fwd.1} parent=0
    #allocation2 [shape = 'u8[1024]{0}', space=vmem, size = 0x400, scoped, tag = 'output window, operand 0, single buffered']
    #allocation3 [shape = 's32[1]{0}', space=sflag, size = 0x4, scoped, tag = 'scoped memory for encoder_fwd.1']
    %11 = vsyncpa [#allocation3], 0
    // Predicated region
    $region2: #{encoder_fwd.1} parent=1 // pred_check
      _
    $region3: #{encoder_fwd.1} parent=1 // pred_check_branch
      %13 = sbr.rel (0) target = $region5
    $region4: #{encoder_fwd.1} parent=1 // pred_region
      _
    $region5: #{encoder_fwd.1} parent=1 // pred_fallthru
      _
    // Predicated region
    $region6: #{encoder_fwd.1} parent=1 // pred_check
      _
    $region7: #{encoder_fwd.1} parent=1 // pred_check_branch
      %15 = sbr.rel (0) target = $region9
    $region8: #{encoder_fwd.1} parent=1 // pred_region
      _
    $region9: #{encoder_fwd.1} parent=1 // pred_fallthru
      _
    // Predicated region
    $region10: #{encoder_fwd.1} parent=1 // pred_check
      _
    $region11: #{encoder_fwd.1} parent=1 // pred_check_branch
      %17 = sbr.rel (0) target = $region13
    $region12: #{encoder_fwd.1} parent=1 // pred_region
      _
    $region13: #{encoder_fwd.1} parent=1 // pred_fallthru
      _
    // Predicated region
    $region14: #{encoder_fwd.1} parent=1 // pred_check
      _
    $region15: #{encoder_fwd.1} parent=1 // pred_check_branch
      %19 = sbr.rel (0) target = $region17
    $region16: #{encoder_fwd.1} parent=1 // pred_region
      _
    $region17: #{encoder_fwd.1} parent=1 // pred_fallthru
      _
    // Predicated region
    $region18: #{encoder_fwd.1} parent=1 // pred_check
      _
    $region19: #{encoder_fwd.1} parent=1 // pred_check_branch
      %21 = sbr.rel (0) target = $region21
    $region20: #{encoder_fwd.1} parent=1 // pred_region
      _
    $region21: #{encoder_fwd.1} parent=1 // pred_fallthru
      _
    // Predicated region
    $region22: #{encoder_fwd.1} parent=1 // pred_check
      _
    $region23: #{encoder_fwd.1} parent=1 // pred_check_branch
      %23 = sbr.rel (0) target = $region25
    $region24: #{encoder_fwd.1} parent=1 // pred_region
      _
    $region25: #{encoder_fwd.1} parent=1 // pred_fallthru
      _
    %v25 = vld [vmem:[%s2 + $0x148] sm:$0xff]
    %v26 = vld [vmem:[%s2 + $0x150] sm:$0xff]
    %v27 = vld [vmem:[%s2 + $0x158] sm:$0xff]
    %v28 = vld [vmem:[%s2 + $0x160] sm:$0xff]
    %v29 = vld [vmem:[%s0] sm:$0xff]
    %v30 = vld [vmem:[%s0 + $0x8] sm:$0xff]
    %v31 = vld [vmem:[%s2] sm:$0xf]
    %v32 = vld [vmem:[%s2 + $0x8] sm:$0x1]
    %v33 = vperm.slane %v32, 0
    %vm34 = vcmask 31744
    %v36 = vsel %vm34, %v29, 0
    %v39 = vsel %vm34, %v30, 0
    %vm41 = vcmask 1043456
    %v43 = vsel %vm41, %v31, 0
    %45 = vmatpush.msra.mxu0 0.0
    %46 = vmatpush.msra.mxu0 0.0
    %47 = vmatpush.msra.mxu0 0.0
    %48 = vmatpush.msra.mxu0 0.0
    %49 = vmatpush.msra.mxu0 0.0
    %50 = vmatpush.msra.mxu0 0.0
    %51 = vmatpush.msra.mxu0 0.0
    %52 = vmatpush.msra.mxu0 0.0
    %53 = vmatpush.msra.mxu0 0.0
    %54 = vmatpush.msra.mxu0 0.0
    %55 = vmatpush.msra.mxu0 0.0
    %56 = vmatpush.msra.mxu0 0.0
    %57 = vmatpush.msra.mxu0 0.0
    %58 = vmatpush.msra.mxu0 0.0
    %59 = vmatpush.msra.mxu0 0.0
    %60 = vmatpush.msra.mxu0 %v43
    %61 = vmatmul.f32.gmra.mxu0 %v36
    %v62 = vpop.f32.mrf.mxu0
    %v63 = vadd.f32 %v33, %v62
    %64 = vmatmul.f32.gmra.mxu0 %v39
    %v65 = vpop.f32.mrf.mxu0
    %v66 = vadd.f32 %v33, %v65
    %67 = vdwg.mxu0
    %v68 = vld [vmem:[%s2 + $0x10] sm:$0xff]
    %v69 = vld [vmem:[%s2 + $0x18] sm:$0xff]
    %v70 = vld [vmem:[%s2 + $0x20] sm:$0xff]
    %v71 = vld [vmem:[%s2 + $0x28] sm:$0xff]
    %v72 = vld [vmem:[%s2 + $0x30] sm:$0x1]
    %v73 = vperm.slane %v72, 0
    %vm74 = vcmask 261120
    %v76 = vsel %vm74, %v63, 0
    %v79 = vsel %vm74, %v66, 0
    %81 = vmatpush.msra.mxu0 0.0
    %82 = vmatpush.msra.mxu0 0.0
    %83 = vmatpush.msra.mxu0 0.0
    %84 = vmatpush.msra.mxu0 0.0
    %85 = vmatpush.msra.mxu0 0.0
    %86 = vmatpush.msra.mxu0 0.0
    %87 = vmatpush.msra.mxu0 0.0
    %88 = vmatpush.msra.mxu0 0.0
    %89 = vmatpush.msra.mxu0 0.0
    %90 = vmatpush.msra.mxu0 0.0
    %91 = vmatpush.msra.mxu0 0.0
    %92 = vmatpush.msra.mxu0 0.0
    %93 = vmatpush.msra.mxu0 %v71
    %94 = vmatpush.msra.mxu0 %v70
    %95 = vmatpush.msra.mxu0 %v69
    %96 = vmatpush.msra.mxu0 %v68
    %97 = vmatmul.f32.gmra.mxu0 %v76
    %v98 = vpop.f32.mrf.mxu0
    %v99 = vadd.f32 %v73, %v98
    %100 = vmatmul.f32.gmra.mxu0 %v79
    %v101 = vpop.f32.mrf.mxu0
    %v102 = vadd.f32 %v73, %v101
    %103 = vdwg.mxu0
    %108 = vrot.lane.b32.xlu0 %v25, 32
    %v109 = vpop.permute.xlu0 %108
    %110 = vrot.lane.b32.xlu0 %v26, 32
    %v111 = vpop.permute.xlu0 %110
    %112 = vrot.lane.b32.xlu0 %v27, 32
    %v113 = vpop.permute.xlu0 %112
    %114 = vrot.lane.b32.xlu0 %v28, 32
    %v115 = vpop.permute.xlu0 %114
    %v120 = vmul.f32 %v99, %v109
    %v121 = vmul.f32 %v99, %v111
    %v122 = vmul.f32 %v99, %v113
    %v123 = vmul.f32 %v99, %v115
    %124 = vrot.lane.b32.xlu0 %v25, 64
    %v125 = vpop.permute.xlu0 %124
    %126 = vrot.lane.b32.xlu0 %v26, 64
    %v127 = vpop.permute.xlu0 %126
    %128 = vrot.lane.b32.xlu0 %v27, 64
    %v129 = vpop.permute.xlu0 %128
    %130 = vrot.lane.b32.xlu0 %v28, 64
    %v131 = vpop.permute.xlu0 %130
    %v136 = vmul.f32 %v99, %v125
    %v137 = vmul.f32 %v99, %v127
    %v138 = vmul.f32 %v99, %v129
    %v139 = vmul.f32 %v99, %v131
    %144 = vrot.lane.b32.xlu0 %v120, 96
    %v145 = vpop.permute.xlu0 %144
    %146 = vrot.lane.b32.xlu0 %v121, 96
    %v147 = vpop.permute.xlu0 %146
    %148 = vrot.lane.b32.xlu0 %v122, 96
    %v149 = vpop.permute.xlu0 %148
    %150 = vrot.lane.b32.xlu0 %v123, 96
    %v151 = vpop.permute.xlu0 %150
    %v153 = vsel %vm74, %v99, 0
    %v155 = vsel %vm74, %v145, 0
    %v157 = vsel %vm74, %v147, 0
    %v159 = vsel %vm74, %v149, 0
    %v161 = vsel %vm74, %v151, 0
    %163 = vmatpush.xpose.msra.mxu0 0.0
    %164 = vmatpush.xpose.msra.mxu0 0.0
    %165 = vmatpush.xpose.msra.mxu0 0.0
    %166 = vmatpush.xpose.msra.mxu0 0.0
    %167 = vmatpush.xpose.msra.mxu0 0.0
    %168 = vmatpush.xpose.msra.mxu0 0.0
    %169 = vmatpush.xpose.msra.mxu0 0.0
    %170 = vmatpush.xpose.msra.mxu0 0.0
    %171 = vmatpush.xpose.msra.mxu0 0.0
    %172 = vmatpush.xpose.msra.mxu0 0.0
    %173 = vmatpush.xpose.msra.mxu0 0.0
    %174 = vmatpush.xpose.msra.mxu0 0.0
    %175 = vmatpush.xpose.msra.mxu0 %v161
    %176 = vmatpush.xpose.msra.mxu0 %v159
    %177 = vmatpush.xpose.msra.mxu0 %v157
    %178 = vmatpush.xpose.msra.mxu0 %v155
    %179 = vmatmul.f32.gmra.mxu0 %v153
    %v180 = vpop.f32.mrf.mxu0
    %v181 = vadd.f32 0.0, %v180
    %182 = vdwg.mxu0
    %v183 = vsel %vm74, %v181, -inf
    %184 = vmax.xlane.f32.xlu0 %v183
    %v185 = vpop.xlane.xlu0 %184
    %v186 = vsub.f32 %v181, %v185
    %v187 = vmul.f32 %v186, 1.442695
    %v188 = vpow.pop %v187
    %v190 = vsel %vm74, %v188, 0
    %192 = vmatpush.msra.mxu0 0.0
    %193 = vmatpush.msra.mxu0 0.0
    %194 = vmatpush.msra.mxu0 0.0
    %195 = vmatpush.msra.mxu0 0.0
    %196 = vmatpush.msra.mxu0 0.0
    %197 = vmatpush.msra.mxu0 0.0
    %198 = vmatpush.msra.mxu0 0.0
    %199 = vmatpush.msra.mxu0 0.0
    %200 = vmatpush.msra.mxu0 0.0
    %201 = vmatpush.msra.mxu0 0.0
    %202 = vmatpush.msra.mxu0 0.0
    %203 = vmatpush.msra.mxu0 0.0
    %204 = vmatpush.msra.mxu0 %v28
    %205 = vmatpush.msra.mxu0 %v27
    %206 = vmatpush.msra.mxu0 %v26
    %207 = vmatpush.msra.mxu0 %v25
    %208 = vmatmul.f32.gmra.mxu0 %v190
    %v209 = vpop.f32.mrf.mxu0
    %v210 = vadd.f32 0.0, %v209
    %211 = vdwg.mxu0
    %v212 = vrcp.pop %v210
    %v213 = vmul.f32 %v188, %v212
    %218 = vrot.lane.b32.xlu0 %v136, 64
    %v219 = vpop.permute.xlu0 %218
    %220 = vrot.lane.b32.xlu0 %v137, 64
    %v221 = vpop.permute.xlu0 %220
    %222 = vrot.lane.b32.xlu0 %v138, 64
    %v223 = vpop.permute.xlu0 %222
    %224 = vrot.lane.b32.xlu0 %v139, 64
    %v225 = vpop.permute.xlu0 %224
    %v231 = vsel %vm74, %v213, 0
    %233 = vmatpush.msra.mxu0 0.0
    %234 = vmatpush.msra.mxu0 0.0
    %235 = vmatpush.msra.mxu0 0.0
    %236 = vmatpush.msra.mxu0 0.0
    %237 = vmatpush.msra.mxu0 0.0
    %238 = vmatpush.msra.mxu0 0.0
    %239 = vmatpush.msra.mxu0 0.0
    %240 = vmatpush.msra.mxu0 0.0
    %241 = vmatpush.msra.mxu0 0.0
    %242 = vmatpush.msra.mxu0 0.0
    %243 = vmatpush.msra.mxu0 0.0
    %244 = vmatpush.msra.mxu0 0.0
    %245 = vmatpush.msra.mxu0 %v225
    %246 = vmatpush.msra.mxu0 %v223
    %247 = vmatpush.msra.mxu0 %v221
    %248 = vmatpush.msra.mxu0 %v219
    %249 = vmatmul.f32.gmra.mxu0 %v231
    %v250 = vpop.f32.mrf.mxu0
    %v251 = vadd.f32 0.0, %v250
    %252 = vdwg.mxu0
    %v253 = vmul.f32 %v102, %v109
    %v254 = vmul.f32 %v102, %v111
    %v255 = vmul.f32 %v102, %v113
    %v256 = vmul.f32 %v102, %v115
    %v257 = vmul.f32 %v102, %v125
    %v258 = vmul.f32 %v102, %v127
    %v259 = vmul.f32 %v102, %v129
    %v260 = vmul.f32 %v102, %v131
    %265 = vrot.lane.b32.xlu0 %v253, 96
    %v266 = vpop.permute.xlu0 %265
    %267 = vrot.lane.b32.xlu0 %v254, 96
    %v268 = vpop.permute.xlu0 %267
    %269 = vrot.lane.b32.xlu0 %v255, 96
    %v270 = vpop.permute.xlu0 %269
    %271 = vrot.lane.b32.xlu0 %v256, 96
    %v272 = vpop.permute.xlu0 %271
    %v274 = vsel %vm74, %v102, 0
    %v276 = vsel %vm74, %v266, 0
    %v278 = vsel %vm74, %v268, 0
    %v280 = vsel %vm74, %v270, 0
    %v282 = vsel %vm74, %v272, 0
    %284 = vmatpush.xpose.msra.mxu0 0.0
    %285 = vmatpush.xpose.msra.mxu0 0.0
    %286 = vmatpush.xpose.msra.mxu0 0.0
    %287 = vmatpush.xpose.msra.mxu0 0.0
    %288 = vmatpush.xpose.msra.mxu0 0.0
    %289 = vmatpush.xpose.msra.mxu0 0.0
    %290 = vmatpush.xpose.msra.mxu0 0.0
    %291 = vmatpush.xpose.msra.mxu0 0.0
    %292 = vmatpush.xpose.msra.mxu0 0.0
    %293 = vmatpush.xpose.msra.mxu0 0.0
    %294 = vmatpush.xpose.msra.mxu0 0.0
    %295 = vmatpush.xpose.msra.mxu0 0.0
    %296 = vmatpush.xpose.msra.mxu0 %v282
    %297 = vmatpush.xpose.msra.mxu0 %v280
    %298 = vmatpush.xpose.msra.mxu0 %v278
    %299 = vmatpush.xpose.msra.mxu0 %v276
    %300 = vmatmul.f32.gmra.mxu0 %v274
    %v301 = vpop.f32.mrf.mxu0
    %v302 = vadd.f32 0.0, %v301
    %303 = vdwg.mxu0
    %v304 = vsel %vm74, %v302, -inf
    %305 = vmax.xlane.f32.xlu0 %v304
    %v306 = vpop.xlane.xlu0 %305
    %v307 = vsub.f32 %v302, %v306
    %v308 = vmul.f32 %v307, 1.442695
    %v309 = vpow.pop %v308
    %v311 = vsel %vm74, %v309, 0
    %313 = vmatpush.msra.mxu0 0.0
    %314 = vmatpush.msra.mxu0 0.0
    %315 = vmatpush.msra.mxu0 0.0
    %316 = vmatpush.msra.mxu0 0.0
    %317 = vmatpush.msra.mxu0 0.0
    %318 = vmatpush.msra.mxu0 0.0
    %319 = vmatpush.msra.mxu0 0.0
    %320 = vmatpush.msra.mxu0 0.0
    %321 = vmatpush.msra.mxu0 0.0
    %322 = vmatpush.msra.mxu0 0.0
    %323 = vmatpush.msra.mxu0 0.0
    %324 = vmatpush.msra.mxu0 0.0
    %325 = vmatpush.msra.mxu0 %v28
    %326 = vmatpush.msra.mxu0 %v27
    %327 = vmatpush.msra.mxu0 %v26
    %328 = vmatpush.msra.mxu0 %v25
    %329 = vmatmul.f32.gmra.mxu0 %v311
    %v330 = vpop.f32.mrf.mxu0
    %v331 = vadd.f32 0.0, %v330
    %332 = vdwg.mxu0
    %v333 = vrcp.pop %v331
    %v334 = vmul.f32 %v309, %v333
    %339 = vrot.lane.b32.xlu0 %v257, 64
    %v340 = vpop.permute.xlu0 %339
    %341 = vrot.lane.b32.xlu0 %v258, 64
    %v342 = vpop.permute.xlu0 %341
    %343 = vrot.lane.b32.xlu0 %v259, 64
    %v344 = vpop.permute.xlu0 %343
    %345 = vrot.lane.b32.xlu0 %v260, 64
    %v346 = vpop.permute.xlu0 %345
    %v352 = vsel %vm74, %v334, 0
    %354 = vmatpush.msra.mxu0 0.0
    %355 = vmatpush.msra.mxu0 0.0
    %356 = vmatpush.msra.mxu0 0.0
    %357 = vmatpush.msra.mxu0 0.0
    %358 = vmatpush.msra.mxu0 0.0
    %359 = vmatpush.msra.mxu0 0.0
    %360 = vmatpush.msra.mxu0 0.0
    %361 = vmatpush.msra.mxu0 0.0
    %362 = vmatpush.msra.mxu0 0.0
    %363 = vmatpush.msra.mxu0 0.0
    %364 = vmatpush.msra.mxu0 0.0
    %365 = vmatpush.msra.mxu0 0.0
    %366 = vmatpush.msra.mxu0 %v346
    %367 = vmatpush.msra.mxu0 %v344
    %368 = vmatpush.msra.mxu0 %v342
    %369 = vmatpush.msra.mxu0 %v340
    %370 = vmatmul.f32.gmra.mxu0 %v352
    %v371 = vpop.f32.mrf.mxu0
    %v372 = vadd.f32 0.0, %v371
    %373 = vdwg.mxu0
    %v374 = vld [vmem:[%s2 + $0x38] sm:$0xff]
    %v375 = vld [vmem:[%s2 + $0x40] sm:$0xff]
    %v376 = vld [vmem:[%s2 + $0x48] sm:$0xff]
    %v377 = vld [vmem:[%s2 + $0x50] sm:$0xff]
    %v378 = vld [vmem:[%s2 + $0x58] sm:$0x1]
    %v379 = vperm.slane %v378, 0
    %v381 = vsel %vm74, %v251, 0
    %v384 = vsel %vm74, %v372, 0
    %386 = vmatpush.msra.mxu0 0.0
    %387 = vmatpush.msra.mxu0 0.0
    %388 = vmatpush.msra.mxu0 0.0
    %389 = vmatpush.msra.mxu0 0.0
    %390 = vmatpush.msra.mxu0 0.0
    %391 = vmatpush.msra.mxu0 0.0
    %392 = vmatpush.msra.mxu0 0.0
    %393 = vmatpush.msra.mxu0 0.0
    %394 = vmatpush.msra.mxu0 0.0
    %395 = vmatpush.msra.mxu0 0.0
    %396 = vmatpush.msra.mxu0 0.0
    %397 = vmatpush.msra.mxu0 0.0
    %398 = vmatpush.msra.mxu0 %v377
    %399 = vmatpush.msra.mxu0 %v376
    %400 = vmatpush.msra.mxu0 %v375
    %401 = vmatpush.msra.mxu0 %v374
    %402 = vmatmul.f32.gmra.mxu0 %v381
    %v403 = vpop.f32.mrf.mxu0
    %v404 = vadd.f32 %v379, %v403
    %405 = vmatmul.f32.gmra.mxu0 %v384
    %v406 = vpop.f32.mrf.mxu0
    %v407 = vadd.f32 %v379, %v406
    %408 = vdwg.mxu0
    %v409 = vadd.f32 %v63, %v404
    %v410 = vadd.f32 %v66, %v407
    %v411 = vld [vmem:[%s2 + $0x60] sm:$0x1]
    %v412 = vld [vmem:[%s2 + $0x68] sm:$0x1]
    %v413 = vsel %vm74, %v409, 0.0
    %414 = vadd.xlane.f32.xlu0 %v413
    %v415 = vpop.xlane.xlu0 %414
    %v416 = vsel %vm74, %v410, 0.0
    %417 = vadd.xlane.f32.xlu0 %v416
    %v418 = vpop.xlane.xlu0 %417
    %v419 = vrcp.pop 32.0
    %v420 = vmul.f32 32.0, %v419
    %v421 = vsub.f32 1.0, %v420
    %v422 = vmul.f32 %v419, %v421
    %v423 = vadd.f32 %v419, %v422
    %vm424 = vweird.f32 %v419
    %v425 = vsel %vm424, %v419, %v423
    %v426 = vmul.f32 %v415, %v425
    %v427 = vmul.f32 %v418, %v425
    %v428 = vmul.f32 %v409, %v409
    %v429 = vmul.f32 %v410, %v410
    %v430 = vsel %vm74, %v428, 0.0
    %431 = vadd.xlane.f32.xlu0 %v430
    %v432 = vpop.xlane.xlu0 %431
    %v433 = vsel %vm74, %v429, 0.0
    %434 = vadd.xlane.f32.xlu0 %v433
    %v435 = vpop.xlane.xlu0 %434
    %v436 = vmul.f32 %v432, %v425
    %v437 = vmul.f32 %v435, %v425
    %v438 = vsub.f32 %v409, %v426
    %v439 = vsub.f32 %v410, %v427
    %v440 = vmul.f32 %v426, %v426
    %v441 = vmul.f32 %v427, %v427
    %v442 = vsub.f32 %v436, %v440
    %v443 = vsub.f32 %v437, %v441
    %v444 = vadd.f32 %v442, 1e-05
    %v445 = vadd.f32 %v443, 1e-05
    %v446 = vrsqrt.pop %v444
    %v447 = vmul.f32 %v446, %v444
    %v448 = vmul.f32 %v447, %v446
    %v449 = vmul.f32 0.5, %v448
    %v450 = vsub.f32 1.5, %v449
    %v451 = vmul.f32 %v446, %v450
    %vm452 = vweird.f32 %v444
    %vm453 = vweird.f32 %v446
    %vm454 = vmor %vm452, %vm453
    %v455 = vsel %vm454, %v446, %v451
    %v456 = vrsqrt.pop %v445
    %v457 = vmul.f32 %v456, %v445
    %v458 = vmul.f32 %v457, %v456
    %v459 = vmul.f32 0.5, %v458
    %v460 = vsub.f32 1.5, %v459
    %v461 = vmul.f32 %v456, %v460
    %vm462 = vweird.f32 %v445
    %vm463 = vweird.f32 %v456
    %vm464 = vmor %vm462, %vm463
    %v465 = vsel %vm464, %v456, %v461
    %v466 = vmul.f32 %v438, %v455
    %v467 = vmul.f32 %v439, %v465
    %v468 = vperm.slane %v411, 0
    %v469 = vmul.f32 %v466, %v468
    %v470 = vmul.f32 %v467, %v468
    %v471 = vperm.slane %v412, 0
    %v472 = vadd.f32 %v469, %v471
    %v473 = vadd.f32 %v470, %v471
    %v474 = vpack.c.bf16 %v473, %v472
    %v475 = vld [vmem:[%s4] sm:$0xff]
    %v476 = vld [vmem:[%s4 + $0x8] sm:$0xff]
    %v477 = vld [vmem:[%s4 + $0x40] sm:$0xff]
    %v478 = vld [vmem:[%s4 + $0x48] sm:$0xff]
    %v479 = vld [vmem:[%s4 + $0x80] sm:$0xff]
    %v480 = vld [vmem:[%s4 + $0x88] sm:$0xff]
    %v481 = vld [vmem:[%s4 + $0xc0] sm:$0xff]
    %v482 = vld [vmem:[%s4 + $0xc8] sm:$0xff]
    %v483 = vld [vmem:[%s3] ss:$2 sm:$0xf]
    %v485 = vperm.slane %v483, 0
    %v486 = vperm.slane %v483, 1
    %v487 = vperm.slane %v483, 2
    %v488 = vperm.slane %v483, 3
    %v501 = vunpack.c.l.b16 %v475
    %v502 = vunpack.c.h.b16 %v475
    %v503 = vunpack.c.l.b16 %v476
    %v504 = vunpack.c.h.b16 %v476
    %v505 = vunpack.c.l.b16 %v477
    %v506 = vunpack.c.h.b16 %v477
    %v507 = vunpack.c.l.b16 %v478
    %v508 = vunpack.c.h.b16 %v478
    %v509 = vunpack.c.l.b16 %v479
    %v510 = vunpack.c.h.b16 %v479
    %v511 = vunpack.c.l.b16 %v480
    %v512 = vunpack.c.h.b16 %v480
    %v513 = vunpack.c.l.b16 %v481
    %v514 = vunpack.c.h.b16 %v481
    %v515 = vunpack.c.l.b16 %v482
    %v516 = vunpack.c.h.b16 %v482
    %v517 = vpack.c.b16 %v505, %v501
    %v518 = vpack.c.b16 %v506, %v502
    %v519 = vpack.c.b16 %v507, %v503
    %v520 = vpack.c.b16 %v508, %v504
    %v521 = vpack.c.b16 %v513, %v509
    %v522 = vpack.c.b16 %v514, %v510
    %v523 = vpack.c.b16 %v515, %v511
    %v524 = vpack.c.b16 %v516, %v512
    %v534 = vsel %vm74, %v474, 0
    %536 = vmatpush.bf16.msra.mxu0 0
    %537 = vmatpush.bf16.msra.mxu0 0
    %538 = vmatpush.bf16.msra.mxu0 0
    %539 = vmatpush.bf16.msra.mxu0 0
    %540 = vmatpush.bf16.msra.mxu0 0
    %541 = vmatpush.bf16.msra.mxu0 0
    %542 = vmatpush.bf16.msra.mxu0 %v521
    %543 = vmatpush.bf16.msra.mxu0 %v517
    %544 = vmatmul.bf16.gmra.mxu0 %v534
    %v545 = vpop.f32.mrf.mxu0
    %v546 = vadd.f32 %v485, %v545
    %v547 = vpop.f32.mrf.mxu0
    %v548 = vadd.f32 %v485, %v547
    %549 = vdwg.mxu0
    %550 = vmatpush.bf16.msra.mxu0 0
    %551 = vmatpush.bf16.msra.mxu0 0
    %552 = vmatpush.bf16.msra.mxu0 0
    %553 = vmatpush.bf16.msra.mxu0 0
    %554 = vmatpush.bf16.msra.mxu0 0
    %555 = vmatpush.bf16.msra.mxu0 0
    %556 = vmatpush.bf16.msra.mxu0 %v522
    %557 = vmatpush.bf16.msra.mxu0 %v518
    %558 = vmatmul.bf16.gmra.mxu0 %v534
    %v559 = vpop.f32.mrf.mxu0
    %v560 = vadd.f32 %v486, %v559
    %v561 = vpop.f32.mrf.mxu0
    %v562 = vadd.f32 %v486, %v561
    %563 = vdwg.mxu0
    %564 = vmatpush.bf16.msra.mxu0 0
    %565 = vmatpush.bf16.msra.mxu0 0
    %566 = vmatpush.bf16.msra.mxu0 0
    %567 = vmatpush.bf16.msra.mxu0 0
    %568 = vmatpush.bf16.msra.mxu0 0
    %569 = vmatpush.bf16.msra.mxu0 0
    %570 = vmatpush.bf16.msra.mxu0 %v523
    %571 = vmatpush.bf16.msra.mxu0 %v519
    %572 = vmatmul.bf16.gmra.mxu0 %v534
    %v573 = vpop.f32.mrf.mxu0
    %v574 = vadd.f32 %v487, %v573
    %v575 = vpop.f32.mrf.mxu0
    %v576 = vadd.f32 %v487, %v575
    %577 = vdwg.mxu0
    %578 = vmatpush.bf16.msra.mxu0 0
    %579 = vmatpush.bf16.msra.mxu0 0
    %580 = vmatpush.bf16.msra.mxu0 0
    %581 = vmatpush.bf16.msra.mxu0 0
    %582 = vmatpush.bf16.msra.mxu0 0
    %583 = vmatpush.bf16.msra.mxu0 0
    %584 = vmatpush.bf16.msra.mxu0 %v524
    %585 = vmatpush.bf16.msra.mxu0 %v520
    %586 = vmatmul.bf16.gmra.mxu0 %v534
    %v587 = vpop.f32.mrf.mxu0
    %v588 = vadd.f32 %v488, %v587
    %v589 = vpop.f32.mrf.mxu0
    %v590 = vadd.f32 %v488, %v589
    %591 = vdwg.mxu0
    %v592 = vmax.f32 %v546, 0.0
    %v593 = vmax.f32 %v560, 0.0
    %v594 = vmax.f32 %v574, 0.0
    %v595 = vmax.f32 %v588, 0.0
    %v596 = vmax.f32 %v548, 0.0
    %v597 = vmax.f32 %v562, 0.0
    %v598 = vmax.f32 %v576, 0.0
    %v599 = vmax.f32 %v590, 0.0
    %v600 = vpack.c.bf16 %v596, %v592
    %v601 = vpack.c.bf16 %v597, %v593
    %v602 = vpack.c.bf16 %v598, %v594
    %v603 = vpack.c.bf16 %v599, %v595
    %v604 = vld [vmem:[%s5] sm:$0xf]
    %v605 = vld [vmem:[%s5 + $0x4] sm:$0xf]
    %v606 = vld [vmem:[%s5 + $0x8] sm:$0xf]
    %v607 = vld [vmem:[%s5 + $0xc] sm:$0xf]
    %v608 = vld [vmem:[%s5 + $0x10] sm:$0xf]
    %v609 = vld [vmem:[%s5 + $0x14] sm:$0xf]
    %v610 = vld [vmem:[%s5 + $0x18] sm:$0xf]
    %v611 = vld [vmem:[%s5 + $0x1c] sm:$0xf]
    %v612 = vld [vmem:[%s5 + $0x20] sm:$0xf]
    %v613 = vld [vmem:[%s5 + $0x24] sm:$0xf]
    %v614 = vld [vmem:[%s5 + $0x28] sm:$0xf]
    %v615 = vld [vmem:[%s5 + $0x2c] sm:$0xf]
    %v616 = vld [vmem:[%s5 + $0x30] sm:$0xf]
    %v617 = vld [vmem:[%s5 + $0x34] sm:$0xf]
    %v618 = vld [vmem:[%s5 + $0x38] sm:$0xf]
    %v619 = vld [vmem:[%s5 + $0x3c] sm:$0xf]
    %v620 = vld [vmem:[%s5 + $0x40] sm:$0xf]
    %v621 = vld [vmem:[%s5 + $0x44] sm:$0xf]
    %v622 = vld [vmem:[%s5 + $0x48] sm:$0xf]
    %v623 = vld [vmem:[%s5 + $0x4c] sm:$0xf]
    %v624 = vld [vmem:[%s5 + $0x50] sm:$0xf]
    %v625 = vld [vmem:[%s5 + $0x54] sm:$0xf]
    %v626 = vld [vmem:[%s5 + $0x58] sm:$0xf]
    %v627 = vld [vmem:[%s5 + $0x5c] sm:$0xf]
    %v628 = vld [vmem:[%s5 + $0x60] sm:$0xf]
    %v629 = vld [vmem:[%s5 + $0x64] sm:$0xf]
    %v630 = vld [vmem:[%s5 + $0x68] sm:$0xf]
    %v631 = vld [vmem:[%s5 + $0x6c] sm:$0xf]
    %v632 = vld [vmem:[%s5 + $0x70] sm:$0xf]
    %v633 = vld [vmem:[%s5 + $0x74] sm:$0xf]
    %v634 = vld [vmem:[%s5 + $0x78] sm:$0xf]
    %v635 = vld [vmem:[%s5 + $0x7c] sm:$0xf]
    %v636 = vld [vmem:[%s5 + $0x80] sm:$0xf]
    %v637 = vld [vmem:[%s5 + $0x84] sm:$0xf]
    %v638 = vld [vmem:[%s5 + $0x88] sm:$0xf]
    %v639 = vld [vmem:[%s5 + $0x8c] sm:$0xf]
    %v640 = vld [vmem:[%s5 + $0x90] sm:$0xf]
    %v641 = vld [vmem:[%s5 + $0x94] sm:$0xf]
    %v642 = vld [vmem:[%s5 + $0x98] sm:$0xf]
    %v643 = vld [vmem:[%s5 + $0x9c] sm:$0xf]
    %v644 = vld [vmem:[%s5 + $0xa0] sm:$0xf]
    %v645 = vld [vmem:[%s5 + $0xa4] sm:$0xf]
    %v646 = vld [vmem:[%s5 + $0xa8] sm:$0xf]
    %v647 = vld [vmem:[%s5 + $0xac] sm:$0xf]
    %v648 = vld [vmem:[%s5 + $0xb0] sm:$0xf]
    %v649 = vld [vmem:[%s5 + $0xb4] sm:$0xf]
    %v650 = vld [vmem:[%s5 + $0xb8] sm:$0xf]
    %v651 = vld [vmem:[%s5 + $0xbc] sm:$0xf]
    %v652 = vld [vmem:[%s5 + $0xc0] sm:$0xf]
    %v653 = vld [vmem:[%s5 + $0xc4] sm:$0xf]
    %v654 = vld [vmem:[%s5 + $0xc8] sm:$0xf]
    %v655 = vld [vmem:[%s5 + $0xcc] sm:$0xf]
    %v656 = vld [vmem:[%s5 + $0xd0] sm:$0xf]
    %v657 = vld [vmem:[%s5 + $0xd4] sm:$0xf]
    %v658 = vld [vmem:[%s5 + $0xd8] sm:$0xf]
    %v659 = vld [vmem:[%s5 + $0xdc] sm:$0xf]
    %v660 = vld [vmem:[%s5 + $0xe0] sm:$0xf]
    %v661 = vld [vmem:[%s5 + $0xe4] sm:$0xf]
    %v662 = vld [vmem:[%s5 + $0xe8] sm:$0xf]
    %v663 = vld [vmem:[%s5 + $0xec] sm:$0xf]
    %v664 = vld [vmem:[%s5 + $0xf0] sm:$0xf]
    %v665 = vld [vmem:[%s5 + $0xf4] sm:$0xf]
    %v666 = vld [vmem:[%s5 + $0xf8] sm:$0xf]
    %v667 = vld [vmem:[%s5 + $0xfc] sm:$0xf]
    %v668 = vld [vmem:[%s4 + $0x10] sm:$0xff]
    %v669 = vld [vmem:[%s4 + $0x18] sm:$0xff]
    %v670 = vld [vmem:[%s4 + $0x50] sm:$0xff]
    %v671 = vld [vmem:[%s4 + $0x58] sm:$0xff]
    %v672 = vld [vmem:[%s4 + $0x90] sm:$0xff]
    %v673 = vld [vmem:[%s4 + $0x98] sm:$0xff]
    %v674 = vld [vmem:[%s4 + $0xd0] sm:$0xff]
    %v675 = vld [vmem:[%s4 + $0xd8] sm:$0xff]
    %s676 = scalar_lea.vmem %s3, 8
    %v677 = vld [vmem:[%s676] ss:$2 sm:$0xf]
    %v679 = vperm.slane %v677, 0
    %v680 = vperm.slane %v677, 1
    %v681 = vperm.slane %v677, 2
    %v682 = vperm.slane %v677, 3
    %v695 = vunpack.c.l.b16 %v668
    %v696 = vunpack.c.h.b16 %v668
    %v697 = vunpack.c.l.b16 %v669
    %v698 = vunpack.c.h.b16 %v669
    %v699 = vunpack.c.l.b16 %v670
    %v700 = vunpack.c.h.b16 %v670
    %v701 = vunpack.c.l.b16 %v671
    %v702 = vunpack.c.h.b16 %v671
    %v703 = vunpack.c.l.b16 %v672
    %v704 = vunpack.c.h.b16 %v672
    %v705 = vunpack.c.l.b16 %v673
    %v706 = vunpack.c.h.b16 %v673
    %v707 = vunpack.c.l.b16 %v674
    %v708 = vunpack.c.h.b16 %v674
    %v709 = vunpack.c.l.b16 %v675
    %v710 = vunpack.c.h.b16 %v675
    %v711 = vpack.c.b16 %v699, %v695
    %v712 = vpack.c.b16 %v700, %v696
    %v713 = vpack.c.b16 %v701, %v697
    %v714 = vpack.c.b16 %v702, %v698
    %v715 = vpack.c.b16 %v707, %v703
    %v716 = vpack.c.b16 %v708, %v704
    %v717 = vpack.c.b16 %v709, %v705
    %v718 = vpack.c.b16 %v710, %v706
    %727 = vmatpush.bf16.msra.mxu0 0
    %728 = vmatpush.bf16.msra.mxu0 0
    %729 = vmatpush.bf16.msra.mxu0 0
    %730 = vmatpush.bf16.msra.mxu0 0
    %731 = vmatpush.bf16.msra.mxu0 0
    %732 = vmatpush.bf16.msra.mxu0 0
    %733 = vmatpush.bf16.msra.mxu0 %v715
    %734 = vmatpush.bf16.msra.mxu0 %v711
    %735 = vmatmul.bf16.gmra.mxu0 %v534
    %v736 = vpop.f32.mrf.mxu0
    %v737 = vadd.f32 %v679, %v736
    %v738 = vpop.f32.mrf.mxu0
    %v739 = vadd.f32 %v679, %v738
    %740 = vdwg.mxu0
    %741 = vmatpush.bf16.msra.mxu0 0
    %742 = vmatpush.bf16.msra.mxu0 0
    %743 = vmatpush.bf16.msra.mxu0 0
    %744 = vmatpush.bf16.msra.mxu0 0
    %745 = vmatpush.bf16.msra.mxu0 0
    %746 = vmatpush.bf16.msra.mxu0 0
    %747 = vmatpush.bf16.msra.mxu0 %v716
    %748 = vmatpush.bf16.msra.mxu0 %v712
    %749 = vmatmul.bf16.gmra.mxu0 %v534
    %v750 = vpop.f32.mrf.mxu0
    %v751 = vadd.f32 %v680, %v750
    %v752 = vpop.f32.mrf.mxu0
    %v753 = vadd.f32 %v680, %v752
    %754 = vdwg.mxu0
    %755 = vmatpush.bf16.msra.mxu0 0
    %756 = vmatpush.bf16.msra.mxu0 0
    %757 = vmatpush.bf16.msra.mxu0 0
    %758 = vmatpush.bf16.msra.mxu0 0
    %759 = vmatpush.bf16.msra.mxu0 0
    %760 = vmatpush.bf16.msra.mxu0 0
    %761 = vmatpush.bf16.msra.mxu0 %v717
    %762 = vmatpush.bf16.msra.mxu0 %v713
    %763 = vmatmul.bf16.gmra.mxu0 %v534
    %v764 = vpop.f32.mrf.mxu0
    %v765 = vadd.f32 %v681, %v764
    %v766 = vpop.f32.mrf.mxu0
    %v767 = vadd.f32 %v681, %v766
    %768 = vdwg.mxu0
    %769 = vmatpush.bf16.msra.mxu0 0
    %770 = vmatpush.bf16.msra.mxu0 0
    %771 = vmatpush.bf16.msra.mxu0 0
    %772 = vmatpush.bf16.msra.mxu0 0
    %773 = vmatpush.bf16.msra.mxu0 0
    %774 = vmatpush.bf16.msra.mxu0 0
    %775 = vmatpush.bf16.msra.mxu0 %v718
    %776 = vmatpush.bf16.msra.mxu0 %v714
    %777 = vmatmul.bf16.gmra.mxu0 %v534
    %v778 = vpop.f32.mrf.mxu0
    %v779 = vadd.f32 %v682, %v778
    %v780 = vpop.f32.mrf.mxu0
    %v781 = vadd.f32 %v682, %v780
    %782 = vdwg.mxu0
    %v783 = vmax.f32 %v737, 0.0
    %v784 = vmax.f32 %v751, 0.0
    %v785 = vmax.f32 %v765, 0.0
    %v786 = vmax.f32 %v779, 0.0
    %v787 = vmax.f32 %v739, 0.0
    %v788 = vmax.f32 %v753, 0.0
    %v789 = vmax.f32 %v767, 0.0
    %v790 = vmax.f32 %v781, 0.0
    %v791 = vpack.c.bf16 %v787, %v783
    %v792 = vpack.c.bf16 %v788, %v784
    %v793 = vpack.c.bf16 %v789, %v785
    %v794 = vpack.c.bf16 %v790, %v786
    %v795 = vld [vmem:[%s5 + $0x100] sm:$0xf]
    %v796 = vld [vmem:[%s5 + $0x104] sm:$0xf]
    %v797 = vld [vmem:[%s5 + $0x108] sm:$0xf]
    %v798 = vld [vmem:[%s5 + $0x10c] sm:$0xf]
    %v799 = vld [vmem:[%s5 + $0x110] sm:$0xf]
    %v800 = vld [vmem:[%s5 + $0x114] sm:$0xf]
    %v801 = vld [vmem:[%s5 + $0x118] sm:$0xf]
    %v802 = vld [vmem:[%s5 + $0x11c] sm:$0xf]
    %v803 = vld [vmem:[%s5 + $0x120] sm:$0xf]
    %v804 = vld [vmem:[%s5 + $0x124] sm:$0xf]
    %v805 = vld [vmem:[%s5 + $0x128] sm:$0xf]
    %v806 = vld [vmem:[%s5 + $0x12c] sm:$0xf]
    %v807 = vld [vmem:[%s5 + $0x130] sm:$0xf]
    %v808 = vld [vmem:[%s5 + $0x134] sm:$0xf]
    %v809 = vld [vmem:[%s5 + $0x138] sm:$0xf]
    %v810 = vld [vmem:[%s5 + $0x13c] sm:$0xf]
    %v811 = vld [vmem:[%s5 + $0x140] sm:$0xf]
    %v812 = vld [vmem:[%s5 + $0x144] sm:$0xf]
    %v813 = vld [vmem:[%s5 + $0x148] sm:$0xf]
    %v814 = vld [vmem:[%s5 + $0x14c] sm:$0xf]
    %v815 = vld [vmem:[%s5 + $0x150] sm:$0xf]
    %v816 = vld [vmem:[%s5 + $0x154] sm:$0xf]
    %v817 = vld [vmem:[%s5 + $0x158] sm:$0xf]
    %v818 = vld [vmem:[%s5 + $0x15c] sm:$0xf]
    %v819 = vld [vmem:[%s5 + $0x160] sm:$0xf]
    %v820 = vld [vmem:[%s5 + $0x164] sm:$0xf]
    %v821 = vld [vmem:[%s5 + $0x168] sm:$0xf]
    %v822 = vld [vmem:[%s5 + $0x16c] sm:$0xf]
    %v823 = vld [vmem:[%s5 + $0x170] sm:$0xf]
    %v824 = vld [vmem:[%s5 + $0x174] sm:$0xf]
    %v825 = vld [vmem:[%s5 + $0x178] sm:$0xf]
    %v826 = vld [vmem:[%s5 + $0x17c] sm:$0xf]
    %v827 = vld [vmem:[%s5 + $0x180] sm:$0xf]
    %v828 = vld [vmem:[%s5 + $0x184] sm:$0xf]
    %v829 = vld [vmem:[%s5 + $0x188] sm:$0xf]
    %v830 = vld [vmem:[%s5 + $0x18c] sm:$0xf]
    %v831 = vld [vmem:[%s5 + $0x190] sm:$0xf]
    %v832 = vld [vmem:[%s5 + $0x194] sm:$0xf]
    %v833 = vld [vmem:[%s5 + $0x198] sm:$0xf]
    %v834 = vld [vmem:[%s5 + $0x19c] sm:$0xf]
    %v835 = vld [vmem:[%s5 + $0x1a0] sm:$0xf]
    %v836 = vld [vmem:[%s5 + $0x1a4] sm:$0xf]
    %v837 = vld [vmem:[%s5 + $0x1a8] sm:$0xf]
    %v838 = vld [vmem:[%s5 + $0x1ac] sm:$0xf]
    %v839 = vld [vmem:[%s5 + $0x1b0] sm:$0xf]
    %v840 = vld [vmem:[%s5 + $0x1b4] sm:$0xf]
    %v841 = vld [vmem:[%s5 + $0x1b8] sm:$0xf]
    %v842 = vld [vmem:[%s5 + $0x1bc] sm:$0xf]
    %v843 = vld [vmem:[%s5 + $0x1c0] sm:$0xf]
    %v844 = vld [vmem:[%s5 + $0x1c4] sm:$0xf]
    %v845 = vld [vmem:[%s5 + $0x1c8] sm:$0xf]
    %v846 = vld [vmem:[%s5 + $0x1cc] sm:$0xf]
    %v847 = vld [vmem:[%s5 + $0x1d0] sm:$0xf]
    %v848 = vld [vmem:[%s5 + $0x1d4] sm:$0xf]
    %v849 = vld [vmem:[%s5 + $0x1d8] sm:$0xf]
    %v850 = vld [vmem:[%s5 + $0x1dc] sm:$0xf]
    %v851 = vld [vmem:[%s5 + $0x1e0] sm:$0xf]
    %v852 = vld [vmem:[%s5 + $0x1e4] sm:$0xf]
    %v853 = vld [vmem:[%s5 + $0x1e8] sm:$0xf]
    %v854 = vld [vmem:[%s5 + $0x1ec] sm:$0xf]
    %v855 = vld [vmem:[%s5 + $0x1f0] sm:$0xf]
    %v856 = vld [vmem:[%s5 + $0x1f4] sm:$0xf]
    %v857 = vld [vmem:[%s5 + $0x1f8] sm:$0xf]
    %v858 = vld [vmem:[%s5 + $0x1fc] sm:$0xf]
    %v923 = vunpack.c.l.b16 %v795
    %v924 = vunpack.c.l.b16 %v796
    %v925 = vunpack.c.l.b16 %v797
    %v926 = vunpack.c.l.b16 %v798
    %v927 = vunpack.c.l.b16 %v799
    %v928 = vunpack.c.l.b16 %v800
    %v929 = vunpack.c.l.b16 %v801
    %v930 = vunpack.c.l.b16 %v802
    %v931 = vunpack.c.l.b16 %v803
    %v932 = vunpack.c.l.b16 %v804
    %v933 = vunpack.c.l.b16 %v805
    %v934 = vunpack.c.l.b16 %v806
    %v935 = vunpack.c.l.b16 %v807
    %v936 = vunpack.c.l.b16 %v808
    %v937 = vunpack.c.l.b16 %v809
    %v938 = vunpack.c.l.b16 %v810
    %v939 = vunpack.c.l.b16 %v811
    %v940 = vunpack.c.l.b16 %v812
    %v941 = vunpack.c.l.b16 %v813
    %v942 = vunpack.c.l.b16 %v814
    %v943 = vunpack.c.l.b16 %v815
    %v944 = vunpack.c.l.b16 %v816
    %v945 = vunpack.c.l.b16 %v817
    %v946 = vunpack.c.l.b16 %v818
    %v947 = vunpack.c.l.b16 %v819
    %v948 = vunpack.c.l.b16 %v820
    %v949 = vunpack.c.l.b16 %v821
    %v950 = vunpack.c.l.b16 %v822
    %v951 = vunpack.c.l.b16 %v823
    %v952 = vunpack.c.l.b16 %v824
    %v953 = vunpack.c.l.b16 %v825
    %v954 = vunpack.c.l.b16 %v826
    %v955 = vunpack.c.l.b16 %v827
    %v956 = vunpack.c.l.b16 %v828
    %v957 = vunpack.c.l.b16 %v829
    %v958 = vunpack.c.l.b16 %v830
    %v959 = vunpack.c.l.b16 %v831
    %v960 = vunpack.c.l.b16 %v832
    %v961 = vunpack.c.l.b16 %v833
    %v962 = vunpack.c.l.b16 %v834
    %v963 = vunpack.c.l.b16 %v835
    %v964 = vunpack.c.l.b16 %v836
    %v965 = vunpack.c.l.b16 %v837
    %v966 = vunpack.c.l.b16 %v838
    %v967 = vunpack.c.l.b16 %v839
    %v968 = vunpack.c.l.b16 %v840
    %v969 = vunpack.c.l.b16 %v841
    %v970 = vunpack.c.l.b16 %v842
    %v971 = vunpack.c.l.b16 %v843
    %v972 = vunpack.c.l.b16 %v844
    %v973 = vunpack.c.l.b16 %v845
    %v974 = vunpack.c.l.b16 %v846
    %v975 = vunpack.c.l.b16 %v847
    %v976 = vunpack.c.l.b16 %v848
    %v977 = vunpack.c.l.b16 %v849
    %v978 = vunpack.c.l.b16 %v850
    %v979 = vunpack.c.l.b16 %v851
    %v980 = vunpack.c.l.b16 %v852
    %v981 = vunpack.c.l.b16 %v853
    %v982 = vunpack.c.l.b16 %v854
    %v983 = vunpack.c.l.b16 %v855
    %v984 = vunpack.c.l.b16 %v856
    %v985 = vunpack.c.l.b16 %v857
    %v986 = vunpack.c.l.b16 %v858
    %v987 = vpack.c.b16 %v924, %v923
    %v988 = vpack.c.b16 %v926, %v925
    %v989 = vpack.c.b16 %v928, %v927
    %v990 = vpack.c.b16 %v930, %v929
    %v991 = vpack.c.b16 %v932, %v931
    %v992 = vpack.c.b16 %v934, %v933
    %v993 = vpack.c.b16 %v936, %v935
    %v994 = vpack.c.b16 %v938, %v937
    %v995 = vpack.c.b16 %v940, %v939
    %v996 = vpack.c.b16 %v942, %v941
    %v997 = vpack.c.b16 %v944, %v943
    %v998 = vpack.c.b16 %v946, %v945
    %v999 = vpack.c.b16 %v948, %v947
    %v1000 = vpack.c.b16 %v950, %v949
    %v1001 = vpack.c.b16 %v952, %v951
    %v1002 = vpack.c.b16 %v954, %v953
    %v1003 = vpack.c.b16 %v956, %v955
    %v1004 = vpack.c.b16 %v958, %v957
    %v1005 = vpack.c.b16 %v960, %v959
    %v1006 = vpack.c.b16 %v962, %v961
    %v1007 = vpack.c.b16 %v964, %v963
    %v1008 = vpack.c.b16 %v966, %v965
    %v1009 = vpack.c.b16 %v968, %v967
    %v1010 = vpack.c.b16 %v970, %v969
    %v1011 = vpack.c.b16 %v972, %v971
    %v1012 = vpack.c.b16 %v974, %v973
    %v1013 = vpack.c.b16 %v976, %v975
    %v1014 = vpack.c.b16 %v978, %v977
    %v1015 = vpack.c.b16 %v980, %v979
    %v1016 = vpack.c.b16 %v982, %v981
    %v1017 = vpack.c.b16 %v984, %v983
    %v1018 = vpack.c.b16 %v986, %v985
    %1051 = vmatpush.bf16.msra.mxu0 %v994
    %1052 = vmatpush.bf16.msra.mxu0 %v993
    %1053 = vmatpush.bf16.msra.mxu0 %v992
    %1054 = vmatpush.bf16.msra.mxu0 %v991
    %1055 = vmatpush.bf16.msra.mxu0 %v990
    %1056 = vmatpush.bf16.msra.mxu0 %v989
    %1057 = vmatpush.bf16.msra.mxu0 %v988
    %1058 = vmatpush.bf16.msra.mxu0 %v987
    %1059 = vmatmul.bf16.gmra.mxu0 %v791
    %v1060 = vpop.f32.mrf.mxu0
    %v1061 = vadd.f32 0.0, %v1060
    %v1062 = vpop.f32.mrf.mxu0
    %v1063 = vadd.f32 0.0, %v1062
    %1064 = vdwg.mxu0
    %1065 = vmatpush.bf16.msra.mxu0 %v1002
    %1066 = vmatpush.bf16.msra.mxu0 %v1001
    %1067 = vmatpush.bf16.msra.mxu0 %v1000
    %1068 = vmatpush.bf16.msra.mxu0 %v999
    %1069 = vmatpush.bf16.msra.mxu0 %v998
    %1070 = vmatpush.bf16.msra.mxu0 %v997
    %1071 = vmatpush.bf16.msra.mxu0 %v996
    %1072 = vmatpush.bf16.msra.mxu0 %v995
    %1073 = vmatmul.bf16.gmra.mxu0 %v792
    %v1074 = vpop.f32.mrf.mxu0
    %v1075 = vadd.f32 %v1061, %v1074
    %v1076 = vpop.f32.mrf.mxu0
    %v1077 = vadd.f32 %v1063, %v1076
    %1078 = vdwg.mxu0
    %1079 = vmatpush.bf16.msra.mxu0 %v1010
    %1080 = vmatpush.bf16.msra.mxu0 %v1009
    %1081 = vmatpush.bf16.msra.mxu0 %v1008
    %1082 = vmatpush.bf16.msra.mxu0 %v1007
    %1083 = vmatpush.bf16.msra.mxu0 %v1006
    %1084 = vmatpush.bf16.msra.mxu0 %v1005
    %1085 = vmatpush.bf16.msra.mxu0 %v1004
    %1086 = vmatpush.bf16.msra.mxu0 %v1003
    %1087 = vmatmul.bf16.gmra.mxu0 %v793
    %v1088 = vpop.f32.mrf.mxu0
    %v1089 = vadd.f32 %v1075, %v1088
    %v1090 = vpop.f32.mrf.mxu0
    %v1091 = vadd.f32 %v1077, %v1090
    %1092 = vdwg.mxu0
    %1093 = vmatpush.bf16.msra.mxu0 %v1018
    %1094 = vmatpush.bf16.msra.mxu0 %v1017
    %1095 = vmatpush.bf16.msra.mxu0 %v1016
    %1096 = vmatpush.bf16.msra.mxu0 %v1015
    %1097 = vmatpush.bf16.msra.mxu0 %v1014
    %1098 = vmatpush.bf16.msra.mxu0 %v1013
    %1099 = vmatpush.bf16.msra.mxu0 %v1012
    %1100 = vmatpush.bf16.msra.mxu0 %v1011
    %1101 = vmatmul.bf16.gmra.mxu0 %v794
    %v1102 = vpop.f32.mrf.mxu0
    %v1103 = vadd.f32 %v1089, %v1102
    %v1104 = vpop.f32.mrf.mxu0
    %v1105 = vadd.f32 %v1091, %v1104
    %1106 = vdwg.mxu0
    %v1171 = vunpack.c.l.b16 %v604
    %v1172 = vunpack.c.l.b16 %v605
    %v1173 = vunpack.c.l.b16 %v606
    %v1174 = vunpack.c.l.b16 %v607
    %v1175 = vunpack.c.l.b16 %v608
    %v1176 = vunpack.c.l.b16 %v609
    %v1177 = vunpack.c.l.b16 %v610
    %v1178 = vunpack.c.l.b16 %v611
    %v1179 = vunpack.c.l.b16 %v612
    %v1180 = vunpack.c.l.b16 %v613
    %v1181 = vunpack.c.l.b16 %v614
    %v1182 = vunpack.c.l.b16 %v615
    %v1183 = vunpack.c.l.b16 %v616
    %v1184 = vunpack.c.l.b16 %v617
    %v1185 = vunpack.c.l.b16 %v618
    %v1186 = vunpack.c.l.b16 %v619
    %v1187 = vunpack.c.l.b16 %v620
    %v1188 = vunpack.c.l.b16 %v621
    %v1189 = vunpack.c.l.b16 %v622
    %v1190 = vunpack.c.l.b16 %v623
    %v1191 = vunpack.c.l.b16 %v624
    %v1192 = vunpack.c.l.b16 %v625
    %v1193 = vunpack.c.l.b16 %v626
    %v1194 = vunpack.c.l.b16 %v627
    %v1195 = vunpack.c.l.b16 %v628
    %v1196 = vunpack.c.l.b16 %v629
    %v1197 = vunpack.c.l.b16 %v630
    %v1198 = vunpack.c.l.b16 %v631
    %v1199 = vunpack.c.l.b16 %v632
    %v1200 = vunpack.c.l.b16 %v633
    %v1201 = vunpack.c.l.b16 %v634
    %v1202 = vunpack.c.l.b16 %v635
    %v1203 = vunpack.c.l.b16 %v636
    %v1204 = vunpack.c.l.b16 %v637
    %v1205 = vunpack.c.l.b16 %v638
    %v1206 = vunpack.c.l.b16 %v639
    %v1207 = vunpack.c.l.b16 %v640
    %v1208 = vunpack.c.l.b16 %v641
    %v1209 = vunpack.c.l.b16 %v642
    %v1210 = vunpack.c.l.b16 %v643
    %v1211 = vunpack.c.l.b16 %v644
    %v1212 = vunpack.c.l.b16 %v645
    %v1213 = vunpack.c.l.b16 %v646
    %v1214 = vunpack.c.l.b16 %v647
    %v1215 = vunpack.c.l.b16 %v648
    %v1216 = vunpack.c.l.b16 %v649
    %v1217 = vunpack.c.l.b16 %v650
    %v1218 = vunpack.c.l.b16 %v651
    %v1219 = vunpack.c.l.b16 %v652
    %v1220 = vunpack.c.l.b16 %v653
    %v1221 = vunpack.c.l.b16 %v654
    %v1222 = vunpack.c.l.b16 %v655
    %v1223 = vunpack.c.l.b16 %v656
    %v1224 = vunpack.c.l.b16 %v657
    %v1225 = vunpack.c.l.b16 %v658
    %v1226 = vunpack.c.l.b16 %v659
    %v1227 = vunpack.c.l.b16 %v660
    %v1228 = vunpack.c.l.b16 %v661
    %v1229 = vunpack.c.l.b16 %v662
    %v1230 = vunpack.c.l.b16 %v663
    %v1231 = vunpack.c.l.b16 %v664
    %v1232 = vunpack.c.l.b16 %v665
    %v1233 = vunpack.c.l.b16 %v666
    %v1234 = vunpack.c.l.b16 %v667
    %v1235 = vpack.c.b16 %v1172, %v1171
    %v1236 = vpack.c.b16 %v1174, %v1173
    %v1237 = vpack.c.b16 %v1176, %v1175
    %v1238 = vpack.c.b16 %v1178, %v1177
    %v1239 = vpack.c.b16 %v1180, %v1179
    %v1240 = vpack.c.b16 %v1182, %v1181
    %v1241 = vpack.c.b16 %v1184, %v1183
    %v1242 = vpack.c.b16 %v1186, %v1185
    %v1243 = vpack.c.b16 %v1188, %v1187
    %v1244 = vpack.c.b16 %v1190, %v1189
    %v1245 = vpack.c.b16 %v1192, %v1191
    %v1246 = vpack.c.b16 %v1194, %v1193
    %v1247 = vpack.c.b16 %v1196, %v1195
    %v1248 = vpack.c.b16 %v1198, %v1197
    %v1249 = vpack.c.b16 %v1200, %v1199
    %v1250 = vpack.c.b16 %v1202, %v1201
    %v1251 = vpack.c.b16 %v1204, %v1203
    %v1252 = vpack.c.b16 %v1206, %v1205
    %v1253 = vpack.c.b16 %v1208, %v1207
    %v1254 = vpack.c.b16 %v1210, %v1209
    %v1255 = vpack.c.b16 %v1212, %v1211
    %v1256 = vpack.c.b16 %v1214, %v1213
    %v1257 = vpack.c.b16 %v1216, %v1215
    %v1258 = vpack.c.b16 %v1218, %v1217
    %v1259 = vpack.c.b16 %v1220, %v1219
    %v1260 = vpack.c.b16 %v1222, %v1221
    %v1261 = vpack.c.b16 %v1224, %v1223
    %v1262 = vpack.c.b16 %v1226, %v1225
    %v1263 = vpack.c.b16 %v1228, %v1227
    %v1264 = vpack.c.b16 %v1230, %v1229
    %v1265 = vpack.c.b16 %v1232, %v1231
    %v1266 = vpack.c.b16 %v1234, %v1233
    %1299 = vmatpush.bf16.msra.mxu0 %v1242
    %1300 = vmatpush.bf16.msra.mxu0 %v1241
    %1301 = vmatpush.bf16.msra.mxu0 %v1240
    %1302 = vmatpush.bf16.msra.mxu0 %v1239
    %1303 = vmatpush.bf16.msra.mxu0 %v1238
    %1304 = vmatpush.bf16.msra.mxu0 %v1237
    %1305 = vmatpush.bf16.msra.mxu0 %v1236
    %1306 = vmatpush.bf16.msra.mxu0 %v1235
    %1307 = vmatmul.bf16.gmra.mxu0 %v600
    %v1308 = vpop.f32.mrf.mxu0
    %v1309 = vadd.f32 %v1103, %v1308
    %v1310 = vpop.f32.mrf.mxu0
    %v1311 = vadd.f32 %v1105, %v1310
    %1312 = vdwg.mxu0
    %1313 = vmatpush.bf16.msra.mxu0 %v1250
    %1314 = vmatpush.bf16.msra.mxu0 %v1249
    %1315 = vmatpush.bf16.msra.mxu0 %v1248
    %1316 = vmatpush.bf16.msra.mxu0 %v1247
    %1317 = vmatpush.bf16.msra.mxu0 %v1246
    %1318 = vmatpush.bf16.msra.mxu0 %v1245
    %1319 = vmatpush.bf16.msra.mxu0 %v1244
    %1320 = vmatpush.bf16.msra.mxu0 %v1243
    %1321 = vmatmul.bf16.gmra.mxu0 %v601
    %v1322 = vpop.f32.mrf.mxu0
    %v1323 = vadd.f32 %v1309, %v1322
    %v1324 = vpop.f32.mrf.mxu0
    %v1325 = vadd.f32 %v1311, %v1324
    %1326 = vdwg.mxu0
    %1327 = vmatpush.bf16.msra.mxu0 %v1258
    %1328 = vmatpush.bf16.msra.mxu0 %v1257
    %1329 = vmatpush.bf16.msra.mxu0 %v1256
    %1330 = vmatpush.bf16.msra.mxu0 %v1255
    %1331 = vmatpush.bf16.msra.mxu0 %v1254
    %1332 = vmatpush.bf16.msra.mxu0 %v1253
    %1333 = vmatpush.bf16.msra.mxu0 %v1252
    %1334 = vmatpush.bf16.msra.mxu0 %v1251
    %1335 = vmatmul.bf16.gmra.mxu0 %v602
    %v1336 = vpop.f32.mrf.mxu0
    %v1337 = vadd.f32 %v1323, %v1336
    %v1338 = vpop.f32.mrf.mxu0
    %v1339 = vadd.f32 %v1325, %v1338
    %1340 = vdwg.mxu0
    %1341 = vmatpush.bf16.msra.mxu0 %v1266
    %1342 = vmatpush.bf16.msra.mxu0 %v1265
    %1343 = vmatpush.bf16.msra.mxu0 %v1264
    %1344 = vmatpush.bf16.msra.mxu0 %v1263
    %1345 = vmatpush.bf16.msra.mxu0 %v1262
    %1346 = vmatpush.bf16.msra.mxu0 %v1261
    %1347 = vmatpush.bf16.msra.mxu0 %v1260
    %1348 = vmatpush.bf16.msra.mxu0 %v1259
    %1349 = vmatmul.bf16.gmra.mxu0 %v603
    %v1350 = vpop.f32.mrf.mxu0
    %v1351 = vadd.f32 %v1337, %v1350
    %v1352 = vpop.f32.mrf.mxu0
    %v1353 = vadd.f32 %v1339, %v1352
    %1354 = vdwg.mxu0
    %v1355 = vld [vmem:[%s4 + $0x20] sm:$0xff]
    %v1356 = vld [vmem:[%s4 + $0x28] sm:$0xff]
    %v1357 = vld [vmem:[%s4 + $0x60] sm:$0xff]
    %v1358 = vld [vmem:[%s4 + $0x68] sm:$0xff]
    %v1359 = vld [vmem:[%s4 + $0xa0] sm:$0xff]
    %v1360 = vld [vmem:[%s4 + $0xa8] sm:$0xff]
    %v1361 = vld [vmem:[%s4 + $0xe0] sm:$0xff]
    %v1362 = vld [vmem:[%s4 + $0xe8] sm:$0xff]
    %s1363 = scalar_lea.vmem %s3, 16
    %v1364 = vld [vmem:[%s1363] ss:$2 sm:$0xf]
    %v1366 = vperm.slane %v1364, 0
    %v1367 = vperm.slane %v1364, 1
    %v1368 = vperm.slane %v1364, 2
    %v1369 = vperm.slane %v1364, 3
    %v1382 = vunpack.c.l.b16 %v1355
    %v1383 = vunpack.c.h.b16 %v1355
    %v1384 = vunpack.c.l.b16 %v1356
    %v1385 = vunpack.c.h.b16 %v1356
    %v1386 = vunpack.c.l.b16 %v1357
    %v1387 = vunpack.c.h.b16 %v1357
    %v1388 = vunpack.c.l.b16 %v1358
    %v1389 = vunpack.c.h.b16 %v1358
    %v1390 = vunpack.c.l.b16 %v1359
    %v1391 = vunpack.c.h.b16 %v1359
    %v1392 = vunpack.c.l.b16 %v1360
    %v1393 = vunpack.c.h.b16 %v1360
    %v1394 = vunpack.c.l.b16 %v1361
    %v1395 = vunpack.c.h.b16 %v1361
    %v1396 = vunpack.c.l.b16 %v1362
    %v1397 = vunpack.c.h.b16 %v1362
    %v1398 = vpack.c.b16 %v1386, %v1382
    %v1399 = vpack.c.b16 %v1387, %v1383
    %v1400 = vpack.c.b16 %v1388, %v1384
    %v1401 = vpack.c.b16 %v1389, %v1385
    %v1402 = vpack.c.b16 %v1394, %v1390
    %v1403 = vpack.c.b16 %v1395, %v1391
    %v1404 = vpack.c.b16 %v1396, %v1392
    %v1405 = vpack.c.b16 %v1397, %v1393
    %1414 = vmatpush.bf16.msra.mxu0 0
    %1415 = vmatpush.bf16.msra.mxu0 0
    %1416 = vmatpush.bf16.msra.mxu0 0
    %1417 = vmatpush.bf16.msra.mxu0 0
    %1418 = vmatpush.bf16.msra.mxu0 0
    %1419 = vmatpush.bf16.msra.mxu0 0
    %1420 = vmatpush.bf16.msra.mxu0 %v1402
    %1421 = vmatpush.bf16.msra.mxu0 %v1398
    %1422 = vmatmul.bf16.gmra.mxu0 %v534
    %v1423 = vpop.f32.mrf.mxu0
    %v1424 = vadd.f32 %v1366, %v1423
    %v1425 = vpop.f32.mrf.mxu0
    %v1426 = vadd.f32 %v1366, %v1425
    %1427 = vdwg.mxu0
    %1428 = vmatpush.bf16.msra.mxu0 0
    %1429 = vmatpush.bf16.msra.mxu0 0
    %1430 = vmatpush.bf16.msra.mxu0 0
    %1431 = vmatpush.bf16.msra.mxu0 0
    %1432 = vmatpush.bf16.msra.mxu0 0
    %1433 = vmatpush.bf16.msra.mxu0 0
    %1434 = vmatpush.bf16.msra.mxu0 %v1403
    %1435 = vmatpush.bf16.msra.mxu0 %v1399
    %1436 = vmatmul.bf16.gmra.mxu0 %v534
    %v1437 = vpop.f32.mrf.mxu0
    %v1438 = vadd.f32 %v1367, %v1437
    %v1439 = vpop.f32.mrf.mxu0
    %v1440 = vadd.f32 %v1367, %v1439
    %1441 = vdwg.mxu0
    %1442 = vmatpush.bf16.msra.mxu0 0
    %1443 = vmatpush.bf16.msra.mxu0 0
    %1444 = vmatpush.bf16.msra.mxu0 0
    %1445 = vmatpush.bf16.msra.mxu0 0
    %1446 = vmatpush.bf16.msra.mxu0 0
    %1447 = vmatpush.bf16.msra.mxu0 0
    %1448 = vmatpush.bf16.msra.mxu0 %v1404
    %1449 = vmatpush.bf16.msra.mxu0 %v1400
    %1450 = vmatmul.bf16.gmra.mxu0 %v534
    %v1451 = vpop.f32.mrf.mxu0
    %v1452 = vadd.f32 %v1368, %v1451
    %v1453 = vpop.f32.mrf.mxu0
    %v1454 = vadd.f32 %v1368, %v1453
    %1455 = vdwg.mxu0
    %1456 = vmatpush.bf16.msra.mxu0 0
    %1457 = vmatpush.bf16.msra.mxu0 0
    %1458 = vmatpush.bf16.msra.mxu0 0
    %1459 = vmatpush.bf16.msra.mxu0 0
    %1460 = vmatpush.bf16.msra.mxu0 0
    %1461 = vmatpush.bf16.msra.mxu0 0
    %1462 = vmatpush.bf16.msra.mxu0 %v1405
    %1463 = vmatpush.bf16.msra.mxu0 %v1401
    %1464 = vmatmul.bf16.gmra.mxu0 %v534
    %v1465 = vpop.f32.mrf.mxu0
    %v1466 = vadd.f32 %v1369, %v1465
    %v1467 = vpop.f32.mrf.mxu0
    %v1468 = vadd.f32 %v1369, %v1467
    %1469 = vdwg.mxu0
    %v1470 = vmax.f32 %v1424, 0.0
    %v1471 = vmax.f32 %v1438, 0.0
    %v1472 = vmax.f32 %v1452, 0.0
    %v1473 = vmax.f32 %v1466, 0.0
    %v1474 = vmax.f32 %v1426, 0.0
    %v1475 = vmax.f32 %v1440, 0.0
    %v1476 = vmax.f32 %v1454, 0.0
    %v1477 = vmax.f32 %v1468, 0.0
    %v1478 = vpack.c.bf16 %v1474, %v1470
    %v1479 = vpack.c.bf16 %v1475, %v1471
    %v1480 = vpack.c.bf16 %v1476, %v1472
    %v1481 = vpack.c.bf16 %v1477, %v1473
    %v1482 = vld [vmem:[%s5 + $0x200] sm:$0xf]
    %v1483 = vld [vmem:[%s5 + $0x204] sm:$0xf]
    %v1484 = vld [vmem:[%s5 + $0x208] sm:$0xf]
    %v1485 = vld [vmem:[%s5 + $0x20c] sm:$0xf]
    %v1486 = vld [vmem:[%s5 + $0x210] sm:$0xf]
    %v1487 = vld [vmem:[%s5 + $0x214] sm:$0xf]
    %v1488 = vld [vmem:[%s5 + $0x218] sm:$0xf]
    %v1489 = vld [vmem:[%s5 + $0x21c] sm:$0xf]
    %v1490 = vld [vmem:[%s5 + $0x220] sm:$0xf]
    %v1491 = vld [vmem:[%s5 + $0x224] sm:$0xf]
    %v1492 = vld [vmem:[%s5 + $0x228] sm:$0xf]
    %v1493 = vld [vmem:[%s5 + $0x22c] sm:$0xf]
    %v1494 = vld [vmem:[%s5 + $0x230] sm:$0xf]
    %v1495 = vld [vmem:[%s5 + $0x234] sm:$0xf]
    %v1496 = vld [vmem:[%s5 + $0x238] sm:$0xf]
    %v1497 = vld [vmem:[%s5 + $0x23c] sm:$0xf]
    %v1498 = vld [vmem:[%s5 + $0x240] sm:$0xf]
    %v1499 = vld [vmem:[%s5 + $0x244] sm:$0xf]
    %v1500 = vld [vmem:[%s5 + $0x248] sm:$0xf]
    %v1501 = vld [vmem:[%s5 + $0x24c] sm:$0xf]
    %v1502 = vld [vmem:[%s5 + $0x250] sm:$0xf]
    %v1503 = vld [vmem:[%s5 + $0x254] sm:$0xf]
    %v1504 = vld [vmem:[%s5 + $0x258] sm:$0xf]
    %v1505 = vld [vmem:[%s5 + $0x25c] sm:$0xf]
    %v1506 = vld [vmem:[%s5 + $0x260] sm:$0xf]
    %v1507 = vld [vmem:[%s5 + $0x264] sm:$0xf]
    %v1508 = vld [vmem:[%s5 + $0x268] sm:$0xf]
    %v1509 = vld [vmem:[%s5 + $0x26c] sm:$0xf]
    %v1510 = vld [vmem:[%s5 + $0x270] sm:$0xf]
    %v1511 = vld [vmem:[%s5 + $0x274] sm:$0xf]
    %v1512 = vld [vmem:[%s5 + $0x278] sm:$0xf]
    %v1513 = vld [vmem:[%s5 + $0x27c] sm:$0xf]
    %v1514 = vld [vmem:[%s5 + $0x280] sm:$0xf]
    %v1515 = vld [vmem:[%s5 + $0x284] sm:$0xf]
    %v1516 = vld [vmem:[%s5 + $0x288] sm:$0xf]
    %v1517 = vld [vmem:[%s5 + $0x28c] sm:$0xf]
    %v1518 = vld [vmem:[%s5 + $0x290] sm:$0xf]
    %v1519 = vld [vmem:[%s5 + $0x294] sm:$0xf]
    %v1520 = vld [vmem:[%s5 + $0x298] sm:$0xf]
    %v1521 = vld [vmem:[%s5 + $0x29c] sm:$0xf]
    %v1522 = vld [vmem:[%s5 + $0x2a0] sm:$0xf]
    %v1523 = vld [vmem:[%s5 + $0x2a4] sm:$0xf]
    %v1524 = vld [vmem:[%s5 + $0x2a8] sm:$0xf]
    %v1525 = vld [vmem:[%s5 + $0x2ac] sm:$0xf]
    %v1526 = vld [vmem:[%s5 + $0x2b0] sm:$0xf]
    %v1527 = vld [vmem:[%s5 + $0x2b4] sm:$0xf]
    %v1528 = vld [vmem:[%s5 + $0x2b8] sm:$0xf]
    %v1529 = vld [vmem:[%s5 + $0x2bc] sm:$0xf]
    %v1530 = vld [vmem:[%s5 + $0x2c0] sm:$0xf]
    %v1531 = vld [vmem:[%s5 + $0x2c4] sm:$0xf]
    %v1532 = vld [vmem:[%s5 + $0x2c8] sm:$0xf]
    %v1533 = vld [vmem:[%s5 + $0x2cc] sm:$0xf]
    %v1534 = vld [vmem:[%s5 + $0x2d0] sm:$0xf]
    %v1535 = vld [vmem:[%s5 + $0x2d4] sm:$0xf]
    %v1536 = vld [vmem:[%s5 + $0x2d8] sm:$0xf]
    %v1537 = vld [vmem:[%s5 + $0x2dc] sm:$0xf]
    %v1538 = vld [vmem:[%s5 + $0x2e0] sm:$0xf]
    %v1539 = vld [vmem:[%s5 + $0x2e4] sm:$0xf]
    %v1540 = vld [vmem:[%s5 + $0x2e8] sm:$0xf]
    %v1541 = vld [vmem:[%s5 + $0x2ec] sm:$0xf]
    %v1542 = vld [vmem:[%s5 + $0x2f0] sm:$0xf]
    %v1543 = vld [vmem:[%s5 + $0x2f4] sm:$0xf]
    %v1544 = vld [vmem:[%s5 + $0x2f8] sm:$0xf]
    %v1545 = vld [vmem:[%s5 + $0x2fc] sm:$0xf]
    %v1610 = vunpack.c.l.b16 %v1482
    %v1611 = vunpack.c.l.b16 %v1483
    %v1612 = vunpack.c.l.b16 %v1484
    %v1613 = vunpack.c.l.b16 %v1485
    %v1614 = vunpack.c.l.b16 %v1486
    %v1615 = vunpack.c.l.b16 %v1487
    %v1616 = vunpack.c.l.b16 %v1488
    %v1617 = vunpack.c.l.b16 %v1489
    %v1618 = vunpack.c.l.b16 %v1490
    %v1619 = vunpack.c.l.b16 %v1491
    %v1620 = vunpack.c.l.b16 %v1492
    %v1621 = vunpack.c.l.b16 %v1493
    %v1622 = vunpack.c.l.b16 %v1494
    %v1623 = vunpack.c.l.b16 %v1495
    %v1624 = vunpack.c.l.b16 %v1496
    %v1625 = vunpack.c.l.b16 %v1497
    %v1626 = vunpack.c.l.b16 %v1498
    %v1627 = vunpack.c.l.b16 %v1499
    %v1628 = vunpack.c.l.b16 %v1500
    %v1629 = vunpack.c.l.b16 %v1501
    %v1630 = vunpack.c.l.b16 %v1502
    %v1631 = vunpack.c.l.b16 %v1503
    %v1632 = vunpack.c.l.b16 %v1504
    %v1633 = vunpack.c.l.b16 %v1505
    %v1634 = vunpack.c.l.b16 %v1506
    %v1635 = vunpack.c.l.b16 %v1507
    %v1636 = vunpack.c.l.b16 %v1508
    %v1637 = vunpack.c.l.b16 %v1509
    %v1638 = vunpack.c.l.b16 %v1510
    %v1639 = vunpack.c.l.b16 %v1511
    %v1640 = vunpack.c.l.b16 %v1512
    %v1641 = vunpack.c.l.b16 %v1513
    %v1642 = vunpack.c.l.b16 %v1514
    %v1643 = vunpack.c.l.b16 %v1515
    %v1644 = vunpack.c.l.b16 %v1516
    %v1645 = vunpack.c.l.b16 %v1517
    %v1646 = vunpack.c.l.b16 %v1518
    %v1647 = vunpack.c.l.b16 %v1519
    %v1648 = vunpack.c.l.b16 %v1520
    %v1649 = vunpack.c.l.b16 %v1521
    %v1650 = vunpack.c.l.b16 %v1522
    %v1651 = vunpack.c.l.b16 %v1523
    %v1652 = vunpack.c.l.b16 %v1524
    %v1653 = vunpack.c.l.b16 %v1525
    %v1654 = vunpack.c.l.b16 %v1526
    %v1655 = vunpack.c.l.b16 %v1527
    %v1656 = vunpack.c.l.b16 %v1528
    %v1657 = vunpack.c.l.b16 %v1529
    %v1658 = vunpack.c.l.b16 %v1530
    %v1659 = vunpack.c.l.b16 %v1531
    %v1660 = vunpack.c.l.b16 %v1532
    %v1661 = vunpack.c.l.b16 %v1533
    %v1662 = vunpack.c.l.b16 %v1534
    %v1663 = vunpack.c.l.b16 %v1535
    %v1664 = vunpack.c.l.b16 %v1536
    %v1665 = vunpack.c.l.b16 %v1537
    %v1666 = vunpack.c.l.b16 %v1538
    %v1667 = vunpack.c.l.b16 %v1539
    %v1668 = vunpack.c.l.b16 %v1540
    %v1669 = vunpack.c.l.b16 %v1541
    %v1670 = vunpack.c.l.b16 %v1542
    %v1671 = vunpack.c.l.b16 %v1543
    %v1672 = vunpack.c.l.b16 %v1544
    %v1673 = vunpack.c.l.b16 %v1545
    %v1674 = vpack.c.b16 %v1611, %v1610
    %v1675 = vpack.c.b16 %v1613, %v1612
    %v1676 = vpack.c.b16 %v1615, %v1614
    %v1677 = vpack.c.b16 %v1617, %v1616
    %v1678 = vpack.c.b16 %v1619, %v1618
    %v1679 = vpack.c.b16 %v1621, %v1620
    %v1680 = vpack.c.b16 %v1623, %v1622
    %v1681 = vpack.c.b16 %v1625, %v1624
    %v1682 = vpack.c.b16 %v1627, %v1626
    %v1683 = vpack.c.b16 %v1629, %v1628
    %v1684 = vpack.c.b16 %v1631, %v1630
    %v1685 = vpack.c.b16 %v1633, %v1632
    %v1686 = vpack.c.b16 %v1635, %v1634
    %v1687 = vpack.c.b16 %v1637, %v1636
    %v1688 = vpack.c.b16 %v1639, %v1638
    %v1689 = vpack.c.b16 %v1641, %v1640
    %v1690 = vpack.c.b16 %v1643, %v1642
    %v1691 = vpack.c.b16 %v1645, %v1644
    %v1692 = vpack.c.b16 %v1647, %v1646
    %v1693 = vpack.c.b16 %v1649, %v1648
    %v1694 = vpack.c.b16 %v1651, %v1650
    %v1695 = vpack.c.b16 %v1653, %v1652
    %v1696 = vpack.c.b16 %v1655, %v1654
    %v1697 = vpack.c.b16 %v1657, %v1656
    %v1698 = vpack.c.b16 %v1659, %v1658
    %v1699 = vpack.c.b16 %v1661, %v1660
    %v1700 = vpack.c.b16 %v1663, %v1662
    %v1701 = vpack.c.b16 %v1665, %v1664
    %v1702 = vpack.c.b16 %v1667, %v1666
    %v1703 = vpack.c.b16 %v1669, %v1668
    %v1704 = vpack.c.b16 %v1671, %v1670
    %v1705 = vpack.c.b16 %v1673, %v1672
    %1738 = vmatpush.bf16.msra.mxu0 %v1681
    %1739 = vmatpush.bf16.msra.mxu0 %v1680
    %1740 = vmatpush.bf16.msra.mxu0 %v1679
    %1741 = vmatpush.bf16.msra.mxu0 %v1678
    %1742 = vmatpush.bf16.msra.mxu0 %v1677
    %1743 = vmatpush.bf16.msra.mxu0 %v1676
    %1744 = vmatpush.bf16.msra.mxu0 %v1675
    %1745 = vmatpush.bf16.msra.mxu0 %v1674
    %1746 = vmatmul.bf16.gmra.mxu0 %v1478
    %v1747 = vpop.f32.mrf.mxu0
    %v1748 = vadd.f32 0.0, %v1747
    %v1749 = vpop.f32.mrf.mxu0
    %v1750 = vadd.f32 0.0, %v1749
    %1751 = vdwg.mxu0
    %1752 = vmatpush.bf16.msra.mxu0 %v1689
    %1753 = vmatpush.bf16.msra.mxu0 %v1688
    %1754 = vmatpush.bf16.msra.mxu0 %v1687
    %1755 = vmatpush.bf16.msra.mxu0 %v1686
    %1756 = vmatpush.bf16.msra.mxu0 %v1685
    %1757 = vmatpush.bf16.msra.mxu0 %v1684
    %1758 = vmatpush.bf16.msra.mxu0 %v1683
    %1759 = vmatpush.bf16.msra.mxu0 %v1682
    %1760 = vmatmul.bf16.gmra.mxu0 %v1479
    %v1761 = vpop.f32.mrf.mxu0
    %v1762 = vadd.f32 %v1748, %v1761
    %v1763 = vpop.f32.mrf.mxu0
    %v1764 = vadd.f32 %v1750, %v1763
    %1765 = vdwg.mxu0
    %1766 = vmatpush.bf16.msra.mxu0 %v1697
    %1767 = vmatpush.bf16.msra.mxu0 %v1696
    %1768 = vmatpush.bf16.msra.mxu0 %v1695
    %1769 = vmatpush.bf16.msra.mxu0 %v1694
    %1770 = vmatpush.bf16.msra.mxu0 %v1693
    %1771 = vmatpush.bf16.msra.mxu0 %v1692
    %1772 = vmatpush.bf16.msra.mxu0 %v1691
    %1773 = vmatpush.bf16.msra.mxu0 %v1690
    %1774 = vmatmul.bf16.gmra.mxu0 %v1480
    %v1775 = vpop.f32.mrf.mxu0
    %v1776 = vadd.f32 %v1762, %v1775
    %v1777 = vpop.f32.mrf.mxu0
    %v1778 = vadd.f32 %v1764, %v1777
    %1779 = vdwg.mxu0
    %1780 = vmatpush.bf16.msra.mxu0 %v1705
    %1781 = vmatpush.bf16.msra.mxu0 %v1704
    %1782 = vmatpush.bf16.msra.mxu0 %v1703
    %1783 = vmatpush.bf16.msra.mxu0 %v1702
    %1784 = vmatpush.bf16.msra.mxu0 %v1701
    %1785 = vmatpush.bf16.msra.mxu0 %v1700
    %1786 = vmatpush.bf16.msra.mxu0 %v1699
    %1787 = vmatpush.bf16.msra.mxu0 %v1698
    %1788 = vmatmul.bf16.gmra.mxu0 %v1481
    %v1789 = vpop.f32.mrf.mxu0
    %v1790 = vadd.f32 %v1776, %v1789
    %v1791 = vpop.f32.mrf.mxu0
    %v1792 = vadd.f32 %v1778, %v1791
    %1793 = vdwg.mxu0
    %v1794 = vadd.f32 %v1351, %v1790
    %v1795 = vadd.f32 %v1353, %v1792
    %v1796 = vld [vmem:[%s4 + $0x30] sm:$0xff]
    %v1797 = vld [vmem:[%s4 + $0x38] sm:$0xff]
    %v1798 = vld [vmem:[%s4 + $0x70] sm:$0xff]
    %v1799 = vld [vmem:[%s4 + $0x78] sm:$0xff]
    %v1800 = vld [vmem:[%s4 + $0xb0] sm:$0xff]
    %v1801 = vld [vmem:[%s4 + $0xb8] sm:$0xff]
    %v1802 = vld [vmem:[%s4 + $0xf0] sm:$0xff]
    %v1803 = vld [vmem:[%s4 + $0xf8] sm:$0xff]
    %s1804 = scalar_lea.vmem %s3, 24
    %v1805 = vld [vmem:[%s1804] ss:$2 sm:$0xf]
    %v1807 = vperm.slane %v1805, 0
    %v1808 = vperm.slane %v1805, 1
    %v1809 = vperm.slane %v1805, 2
    %v1810 = vperm.slane %v1805, 3
    %v1823 = vunpack.c.l.b16 %v1796
    %v1824 = vunpack.c.h.b16 %v1796
    %v1825 = vunpack.c.l.b16 %v1797
    %v1826 = vunpack.c.h.b16 %v1797
    %v1827 = vunpack.c.l.b16 %v1798
    %v1828 = vunpack.c.h.b16 %v1798
    %v1829 = vunpack.c.l.b16 %v1799
    %v1830 = vunpack.c.h.b16 %v1799
    %v1831 = vunpack.c.l.b16 %v1800
    %v1832 = vunpack.c.h.b16 %v1800
    %v1833 = vunpack.c.l.b16 %v1801
    %v1834 = vunpack.c.h.b16 %v1801
    %v1835 = vunpack.c.l.b16 %v1802
    %v1836 = vunpack.c.h.b16 %v1802
    %v1837 = vunpack.c.l.b16 %v1803
    %v1838 = vunpack.c.h.b16 %v1803
    %v1839 = vpack.c.b16 %v1827, %v1823
    %v1840 = vpack.c.b16 %v1828, %v1824
    %v1841 = vpack.c.b16 %v1829, %v1825
    %v1842 = vpack.c.b16 %v1830, %v1826
    %v1843 = vpack.c.b16 %v1835, %v1831
    %v1844 = vpack.c.b16 %v1836, %v1832
    %v1845 = vpack.c.b16 %v1837, %v1833
    %v1846 = vpack.c.b16 %v1838, %v1834
    %1855 = vmatpush.bf16.msra.mxu0 0
    %1856 = vmatpush.bf16.msra.mxu0 0
    %1857 = vmatpush.bf16.msra.mxu0 0
    %1858 = vmatpush.bf16.msra.mxu0 0
    %1859 = vmatpush.bf16.msra.mxu0 0
    %1860 = vmatpush.bf16.msra.mxu0 0
    %1861 = vmatpush.bf16.msra.mxu0 %v1843
    %1862 = vmatpush.bf16.msra.mxu0 %v1839
    %1863 = vmatmul.bf16.gmra.mxu0 %v534
    %v1864 = vpop.f32.mrf.mxu0
    %v1865 = vadd.f32 %v1807, %v1864
    %v1866 = vpop.f32.mrf.mxu0
    %v1867 = vadd.f32 %v1807, %v1866
    %1868 = vdwg.mxu0
    %1869 = vmatpush.bf16.msra.mxu0 0
    %1870 = vmatpush.bf16.msra.mxu0 0
    %1871 = vmatpush.bf16.msra.mxu0 0
    %1872 = vmatpush.bf16.msra.mxu0 0
    %1873 = vmatpush.bf16.msra.mxu0 0
    %1874 = vmatpush.bf16.msra.mxu0 0
    %1875 = vmatpush.bf16.msra.mxu0 %v1844
    %1876 = vmatpush.bf16.msra.mxu0 %v1840
    %1877 = vmatmul.bf16.gmra.mxu0 %v534
    %v1878 = vpop.f32.mrf.mxu0
    %v1879 = vadd.f32 %v1808, %v1878
    %v1880 = vpop.f32.mrf.mxu0
    %v1881 = vadd.f32 %v1808, %v1880
    %1882 = vdwg.mxu0
    %1883 = vmatpush.bf16.msra.mxu0 0
    %1884 = vmatpush.bf16.msra.mxu0 0
    %1885 = vmatpush.bf16.msra.mxu0 0
    %1886 = vmatpush.bf16.msra.mxu0 0
    %1887 = vmatpush.bf16.msra.mxu0 0
    %1888 = vmatpush.bf16.msra.mxu0 0
    %1889 = vmatpush.bf16.msra.mxu0 %v1845
    %1890 = vmatpush.bf16.msra.mxu0 %v1841
    %1891 = vmatmul.bf16.gmra.mxu0 %v534
    %v1892 = vpop.f32.mrf.mxu0
    %v1893 = vadd.f32 %v1809, %v1892
    %v1894 = vpop.f32.mrf.mxu0
    %v1895 = vadd.f32 %v1809, %v1894
    %1896 = vdwg.mxu0
    %1897 = vmatpush.bf16.msra.mxu0 0
    %1898 = vmatpush.bf16.msra.mxu0 0
    %1899 = vmatpush.bf16.msra.mxu0 0
    %1900 = vmatpush.bf16.msra.mxu0 0
    %1901 = vmatpush.bf16.msra.mxu0 0
    %1902 = vmatpush.bf16.msra.mxu0 0
    %1903 = vmatpush.bf16.msra.mxu0 %v1846
    %1904 = vmatpush.bf16.msra.mxu0 %v1842
    %1905 = vmatmul.bf16.gmra.mxu0 %v534
    %v1906 = vpop.f32.mrf.mxu0
    %v1907 = vadd.f32 %v1810, %v1906
    %v1908 = vpop.f32.mrf.mxu0
    %v1909 = vadd.f32 %v1810, %v1908
    %1910 = vdwg.mxu0
    %v1911 = vmax.f32 %v1865, 0.0
    %v1912 = vmax.f32 %v1879, 0.0
    %v1913 = vmax.f32 %v1893, 0.0
    %v1914 = vmax.f32 %v1907, 0.0
    %v1915 = vmax.f32 %v1867, 0.0
    %v1916 = vmax.f32 %v1881, 0.0
    %v1917 = vmax.f32 %v1895, 0.0
    %v1918 = vmax.f32 %v1909, 0.0
    %v1919 = vpack.c.bf16 %v1915, %v1911
    %v1920 = vpack.c.bf16 %v1916, %v1912
    %v1921 = vpack.c.bf16 %v1917, %v1913
    %v1922 = vpack.c.bf16 %v1918, %v1914
    %v1923 = vld [vmem:[%s5 + $0x300] sm:$0xf]
    %v1924 = vld [vmem:[%s5 + $0x304] sm:$0xf]
    %v1925 = vld [vmem:[%s5 + $0x308] sm:$0xf]
    %v1926 = vld [vmem:[%s5 + $0x30c] sm:$0xf]
    %v1927 = vld [vmem:[%s5 + $0x310] sm:$0xf]
    %v1928 = vld [vmem:[%s5 + $0x314] sm:$0xf]
    %v1929 = vld [vmem:[%s5 + $0x318] sm:$0xf]
    %v1930 = vld [vmem:[%s5 + $0x31c] sm:$0xf]
    %v1931 = vld [vmem:[%s5 + $0x320] sm:$0xf]
    %v1932 = vld [vmem:[%s5 + $0x324] sm:$0xf]
    %v1933 = vld [vmem:[%s5 + $0x328] sm:$0xf]
    %v1934 = vld [vmem:[%s5 + $0x32c] sm:$0xf]
    %v1935 = vld [vmem:[%s5 + $0x330] sm:$0xf]
    %v1936 = vld [vmem:[%s5 + $0x334] sm:$0xf]
    %v1937 = vld [vmem:[%s5 + $0x338] sm:$0xf]
    %v1938 = vld [vmem:[%s5 + $0x33c] sm:$0xf]
    %v1939 = vld [vmem:[%s5 + $0x340] sm:$0xf]
    %v1940 = vld [vmem:[%s5 + $0x344] sm:$0xf]
    %v1941 = vld [vmem:[%s5 + $0x348] sm:$0xf]
    %v1942 = vld [vmem:[%s5 + $0x34c] sm:$0xf]
    %v1943 = vld [vmem:[%s5 + $0x350] sm:$0xf]
    %v1944 = vld [vmem:[%s5 + $0x354] sm:$0xf]
    %v1945 = vld [vmem:[%s5 + $0x358] sm:$0xf]
    %v1946 = vld [vmem:[%s5 + $0x35c] sm:$0xf]
    %v1947 = vld [vmem:[%s5 + $0x360] sm:$0xf]
    %v1948 = vld [vmem:[%s5 + $0x364] sm:$0xf]
    %v1949 = vld [vmem:[%s5 + $0x368] sm:$0xf]
    %v1950 = vld [vmem:[%s5 + $0x36c] sm:$0xf]
    %v1951 = vld [vmem:[%s5 + $0x370] sm:$0xf]
    %v1952 = vld [vmem:[%s5 + $0x374] sm:$0xf]
    %v1953 = vld [vmem:[%s5 + $0x378] sm:$0xf]
    %v1954 = vld [vmem:[%s5 + $0x37c] sm:$0xf]
    %v1955 = vld [vmem:[%s5 + $0x380] sm:$0xf]
    %v1956 = vld [vmem:[%s5 + $0x384] sm:$0xf]
    %v1957 = vld [vmem:[%s5 + $0x388] sm:$0xf]
    %v1958 = vld [vmem:[%s5 + $0x38c] sm:$0xf]
    %v1959 = vld [vmem:[%s5 + $0x390] sm:$0xf]
    %v1960 = vld [vmem:[%s5 + $0x394] sm:$0xf]
    %v1961 = vld [vmem:[%s5 + $0x398] sm:$0xf]
    %v1962 = vld [vmem:[%s5 + $0x39c] sm:$0xf]
    %v1963 = vld [vmem:[%s5 + $0x3a0] sm:$0xf]
    %v1964 = vld [vmem:[%s5 + $0x3a4] sm:$0xf]
    %v1965 = vld [vmem:[%s5 + $0x3a8] sm:$0xf]
    %v1966 = vld [vmem:[%s5 + $0x3ac] sm:$0xf]
    %v1967 = vld [vmem:[%s5 + $0x3b0] sm:$0xf]
    %v1968 = vld [vmem:[%s5 + $0x3b4] sm:$0xf]
    %v1969 = vld [vmem:[%s5 + $0x3b8] sm:$0xf]
    %v1970 = vld [vmem:[%s5 + $0x3bc] sm:$0xf]
    %v1971 = vld [vmem:[%s5 + $0x3c0] sm:$0xf]
    %v1972 = vld [vmem:[%s5 + $0x3c4] sm:$0xf]
    %v1973 = vld [vmem:[%s5 + $0x3c8] sm:$0xf]
    %v1974 = vld [vmem:[%s5 + $0x3cc] sm:$0xf]
    %v1975 = vld [vmem:[%s5 + $0x3d0] sm:$0xf]
    %v1976 = vld [vmem:[%s5 + $0x3d4] sm:$0xf]
    %v1977 = vld [vmem:[%s5 + $0x3d8] sm:$0xf]
    %v1978 = vld [vmem:[%s5 + $0x3dc] sm:$0xf]
    %v1979 = vld [vmem:[%s5 + $0x3e0] sm:$0xf]
    %v1980 = vld [vmem:[%s5 + $0x3e4] sm:$0xf]
    %v1981 = vld [vmem:[%s5 + $0x3e8] sm:$0xf]
    %v1982 = vld [vmem:[%s5 + $0x3ec] sm:$0xf]
    %v1983 = vld [vmem:[%s5 + $0x3f0] sm:$0xf]
    %v1984 = vld [vmem:[%s5 + $0x3f4] sm:$0xf]
    %v1985 = vld [vmem:[%s5 + $0x3f8] sm:$0xf]
    %v1986 = vld [vmem:[%s5 + $0x3fc] sm:$0xf]
    %v2051 = vunpack.c.l.b16 %v1923
    %v2052 = vunpack.c.l.b16 %v1924
    %v2053 = vunpack.c.l.b16 %v1925
    %v2054 = vunpack.c.l.b16 %v1926
    %v2055 = vunpack.c.l.b16 %v1927
    %v2056 = vunpack.c.l.b16 %v1928
    %v2057 = vunpack.c.l.b16 %v1929
    %v2058 = vunpack.c.l.b16 %v1930
    %v2059 = vunpack.c.l.b16 %v1931
    %v2060 = vunpack.c.l.b16 %v1932
    %v2061 = vunpack.c.l.b16 %v1933
    %v2062 = vunpack.c.l.b16 %v1934
    %v2063 = vunpack.c.l.b16 %v1935
    %v2064 = vunpack.c.l.b16 %v1936
    %v2065 = vunpack.c.l.b16 %v1937
    %v2066 = vunpack.c.l.b16 %v1938
    %v2067 = vunpack.c.l.b16 %v1939
    %v2068 = vunpack.c.l.b16 %v1940
    %v2069 = vunpack.c.l.b16 %v1941
    %v2070 = vunpack.c.l.b16 %v1942
    %v2071 = vunpack.c.l.b16 %v1943
    %v2072 = vunpack.c.l.b16 %v1944
    %v2073 = vunpack.c.l.b16 %v1945
    %v2074 = vunpack.c.l.b16 %v1946
    %v2075 = vunpack.c.l.b16 %v1947
    %v2076 = vunpack.c.l.b16 %v1948
    %v2077 = vunpack.c.l.b16 %v1949
    %v2078 = vunpack.c.l.b16 %v1950
    %v2079 = vunpack.c.l.b16 %v1951
    %v2080 = vunpack.c.l.b16 %v1952
    %v2081 = vunpack.c.l.b16 %v1953
    %v2082 = vunpack.c.l.b16 %v1954
    %v2083 = vunpack.c.l.b16 %v1955
    %v2084 = vunpack.c.l.b16 %v1956
    %v2085 = vunpack.c.l.b16 %v1957
    %v2086 = vunpack.c.l.b16 %v1958
    %v2087 = vunpack.c.l.b16 %v1959
    %v2088 = vunpack.c.l.b16 %v1960
    %v2089 = vunpack.c.l.b16 %v1961
    %v2090 = vunpack.c.l.b16 %v1962
    %v2091 = vunpack.c.l.b16 %v1963
    %v2092 = vunpack.c.l.b16 %v1964
    %v2093 = vunpack.c.l.b16 %v1965
    %v2094 = vunpack.c.l.b16 %v1966
    %v2095 = vunpack.c.l.b16 %v1967
    %v2096 = vunpack.c.l.b16 %v1968
    %v2097 = vunpack.c.l.b16 %v1969
    %v2098 = vunpack.c.l.b16 %v1970
    %v2099 = vunpack.c.l.b16 %v1971
    %v2100 = vunpack.c.l.b16 %v1972
    %v2101 = vunpack.c.l.b16 %v1973
    %v2102 = vunpack.c.l.b16 %v1974
    %v2103 = vunpack.c.l.b16 %v1975
    %v2104 = vunpack.c.l.b16 %v1976
    %v2105 = vunpack.c.l.b16 %v1977
    %v2106 = vunpack.c.l.b16 %v1978
    %v2107 = vunpack.c.l.b16 %v1979
    %v2108 = vunpack.c.l.b16 %v1980
    %v2109 = vunpack.c.l.b16 %v1981
    %v2110 = vunpack.c.l.b16 %v1982
    %v2111 = vunpack.c.l.b16 %v1983
    %v2112 = vunpack.c.l.b16 %v1984
    %v2113 = vunpack.c.l.b16 %v1985
    %v2114 = vunpack.c.l.b16 %v1986
    %v2115 = vpack.c.b16 %v2052, %v2051
    %v2116 = vpack.c.b16 %v2054, %v2053
    %v2117 = vpack.c.b16 %v2056, %v2055
    %v2118 = vpack.c.b16 %v2058, %v2057
    %v2119 = vpack.c.b16 %v2060, %v2059
    %v2120 = vpack.c.b16 %v2062, %v2061
    %v2121 = vpack.c.b16 %v2064, %v2063
    %v2122 = vpack.c.b16 %v2066, %v2065
    %v2123 = vpack.c.b16 %v2068, %v2067
    %v2124 = vpack.c.b16 %v2070, %v2069
    %v2125 = vpack.c.b16 %v2072, %v2071
    %v2126 = vpack.c.b16 %v2074, %v2073
    %v2127 = vpack.c.b16 %v2076, %v2075
    %v2128 = vpack.c.b16 %v2078, %v2077
    %v2129 = vpack.c.b16 %v2080, %v2079
    %v2130 = vpack.c.b16 %v2082, %v2081
    %v2131 = vpack.c.b16 %v2084, %v2083
    %v2132 = vpack.c.b16 %v2086, %v2085
    %v2133 = vpack.c.b16 %v2088, %v2087
    %v2134 = vpack.c.b16 %v2090, %v2089
    %v2135 = vpack.c.b16 %v2092, %v2091
    %v2136 = vpack.c.b16 %v2094, %v2093
    %v2137 = vpack.c.b16 %v2096, %v2095
    %v2138 = vpack.c.b16 %v2098, %v2097
    %v2139 = vpack.c.b16 %v2100, %v2099
    %v2140 = vpack.c.b16 %v2102, %v2101
    %v2141 = vpack.c.b16 %v2104, %v2103
    %v2142 = vpack.c.b16 %v2106, %v2105
    %v2143 = vpack.c.b16 %v2108, %v2107
    %v2144 = vpack.c.b16 %v2110, %v2109
    %v2145 = vpack.c.b16 %v2112, %v2111
    %v2146 = vpack.c.b16 %v2114, %v2113
    %2179 = vmatpush.bf16.msra.mxu0 %v2122
    %2180 = vmatpush.bf16.msra.mxu0 %v2121
    %2181 = vmatpush.bf16.msra.mxu0 %v2120
    %2182 = vmatpush.bf16.msra.mxu0 %v2119
    %2183 = vmatpush.bf16.msra.mxu0 %v2118
    %2184 = vmatpush.bf16.msra.mxu0 %v2117
    %2185 = vmatpush.bf16.msra.mxu0 %v2116
    %2186 = vmatpush.bf16.msra.mxu0 %v2115
    %2187 = vmatmul.bf16.gmra.mxu0 %v1919
    %v2188 = vpop.f32.mrf.mxu0
    %v2189 = vadd.f32 0.0, %v2188
    %v2190 = vpop.f32.mrf.mxu0
    %v2191 = vadd.f32 0.0, %v2190
    %2192 = vdwg.mxu0
    %2193 = vmatpush.bf16.msra.mxu0 %v2130
    %2194 = vmatpush.bf16.msra.mxu0 %v2129
    %2195 = vmatpush.bf16.msra.mxu0 %v2128
    %2196 = vmatpush.bf16.msra.mxu0 %v2127
    %2197 = vmatpush.bf16.msra.mxu0 %v2126
    %2198 = vmatpush.bf16.msra.mxu0 %v2125
    %2199 = vmatpush.bf16.msra.mxu0 %v2124
    %2200 = vmatpush.bf16.msra.mxu0 %v2123
    %2201 = vmatmul.bf16.gmra.mxu0 %v1920
    %v2202 = vpop.f32.mrf.mxu0
    %v2203 = vadd.f32 %v2189, %v2202
    %v2204 = vpop.f32.mrf.mxu0
    %v2205 = vadd.f32 %v2191, %v2204
    %2206 = vdwg.mxu0
    %2207 = vmatpush.bf16.msra.mxu0 %v2138
    %2208 = vmatpush.bf16.msra.mxu0 %v2137
    %2209 = vmatpush.bf16.msra.mxu0 %v2136
    %2210 = vmatpush.bf16.msra.mxu0 %v2135
    %2211 = vmatpush.bf16.msra.mxu0 %v2134
    %2212 = vmatpush.bf16.msra.mxu0 %v2133
    %2213 = vmatpush.bf16.msra.mxu0 %v2132
    %2214 = vmatpush.bf16.msra.mxu0 %v2131
    %2215 = vmatmul.bf16.gmra.mxu0 %v1921
    %v2216 = vpop.f32.mrf.mxu0
    %v2217 = vadd.f32 %v2203, %v2216
    %v2218 = vpop.f32.mrf.mxu0
    %v2219 = vadd.f32 %v2205, %v2218
    %2220 = vdwg.mxu0
    %2221 = vmatpush.bf16.msra.mxu0 %v2146
    %2222 = vmatpush.bf16.msra.mxu0 %v2145
    %2223 = vmatpush.bf16.msra.mxu0 %v2144
    %2224 = vmatpush.bf16.msra.mxu0 %v2143
    %2225 = vmatpush.bf16.msra.mxu0 %v2142
    %2226 = vmatpush.bf16.msra.mxu0 %v2141
    %2227 = vmatpush.bf16.msra.mxu0 %v2140
    %2228 = vmatpush.bf16.msra.mxu0 %v2139
    %2229 = vmatmul.bf16.gmra.mxu0 %v1922
    %v2230 = vpop.f32.mrf.mxu0
    %v2231 = vadd.f32 %v2217, %v2230
    %v2232 = vpop.f32.mrf.mxu0
    %v2233 = vadd.f32 %v2219, %v2232
    %2234 = vdwg.mxu0
    %v2235 = vadd.f32 %v1794, %v2231
    %v2236 = vadd.f32 %v1795, %v2233
    %v2237 = vadd.f32 %v472, %v2235
    %v2238 = vadd.f32 %v473, %v2236
    %v2239 = vld [vmem:[%s2 + $0x70] sm:$0x1]
    %v2240 = vperm.slane %v2239, 0
    %v2241 = vadd.f32 %v2237, %v2240
    %v2242 = vadd.f32 %v2238, %v2240
    %v2243 = vld [vmem:[%s2 + $0x78] sm:$0x1]
    %v2244 = vld [vmem:[%s2 + $0x80] sm:$0x1]
    %v2245 = vsel %vm74, %v2241, 0.0
    %2246 = vadd.xlane.f32.xlu0 %v2245
    %v2247 = vpop.xlane.xlu0 %2246
    %v2248 = vsel %vm74, %v2242, 0.0
    %2249 = vadd.xlane.f32.xlu0 %v2248
    %v2250 = vpop.xlane.xlu0 %2249
    %v2251 = vmul.f32 %v2247, %v425
    %v2252 = vmul.f32 %v2250, %v425
    %v2253 = vmul.f32 %v2241, %v2241
    %v2254 = vmul.f32 %v2242, %v2242
    %v2255 = vsel %vm74, %v2253, 0.0
    %2256 = vadd.xlane.f32.xlu0 %v2255
    %v2257 = vpop.xlane.xlu0 %2256
    %v2258 = vsel %vm74, %v2254, 0.0
    %2259 = vadd.xlane.f32.xlu0 %v2258
    %v2260 = vpop.xlane.xlu0 %2259
    %v2261 = vmul.f32 %v2257, %v425
    %v2262 = vmul.f32 %v2260, %v425
    %v2263 = vsub.f32 %v2241, %v2251
    %v2264 = vsub.f32 %v2242, %v2252
    %v2265 = vmul.f32 %v2251, %v2251
    %v2266 = vmul.f32 %v2252, %v2252
    %v2267 = vsub.f32 %v2261, %v2265
    %v2268 = vsub.f32 %v2262, %v2266
    %v2269 = vadd.f32 %v2267, 1e-05
    %v2270 = vadd.f32 %v2268, 1e-05
    %v2271 = vrsqrt.pop %v2269
    %v2272 = vmul.f32 %v2271, %v2269
    %v2273 = vmul.f32 %v2272, %v2271
    %v2274 = vmul.f32 0.5, %v2273
    %v2275 = vsub.f32 1.5, %v2274
    %v2276 = vmul.f32 %v2271, %v2275
    %vm2277 = vweird.f32 %v2269
    %vm2278 = vweird.f32 %v2271
    %vm2279 = vmor %vm2277, %vm2278
    %v2280 = vsel %vm2279, %v2271, %v2276
    %v2281 = vrsqrt.pop %v2270
    %v2282 = vmul.f32 %v2281, %v2270
    %v2283 = vmul.f32 %v2282, %v2281
    %v2284 = vmul.f32 0.5, %v2283
    %v2285 = vsub.f32 1.5, %v2284
    %v2286 = vmul.f32 %v2281, %v2285
    %vm2287 = vweird.f32 %v2270
    %vm2288 = vweird.f32 %v2281
    %vm2289 = vmor %vm2287, %vm2288
    %v2290 = vsel %vm2289, %v2281, %v2286
    %v2291 = vmul.f32 %v2263, %v2280
    %v2292 = vmul.f32 %v2264, %v2290
    %v2293 = vperm.slane %v2243, 0
    %v2294 = vmul.f32 %v2291, %v2293
    %v2295 = vmul.f32 %v2292, %v2293
    %v2296 = vperm.slane %v2244, 0
    %v2297 = vadd.f32 %v2294, %v2296
    %v2298 = vadd.f32 %v2295, %v2296
    %v2299 = vld [vmem:[%s2 + $0x88] sm:$0xff]
    %v2300 = vld [vmem:[%s2 + $0x90] sm:$0xff]
    %v2301 = vld [vmem:[%s2 + $0x98] sm:$0xff]
    %v2302 = vld [vmem:[%s2 + $0xa0] sm:$0xff]
    %v2303 = vld [vmem:[%s2 + $0xa8] sm:$0x1]
    %v2304 = vperm.slane %v2303, 0
    %v2306 = vsel %vm74, %v2297, 0
    %v2309 = vsel %vm74, %v2298, 0
    %2311 = vmatpush.msra.mxu0 0.0
    %2312 = vmatpush.msra.mxu0 0.0
    %2313 = vmatpush.msra.mxu0 0.0
    %2314 = vmatpush.msra.mxu0 0.0
    %2315 = vmatpush.msra.mxu0 0.0
    %2316 = vmatpush.msra.mxu0 0.0
    %2317 = vmatpush.msra.mxu0 0.0
    %2318 = vmatpush.msra.mxu0 0.0
    %2319 = vmatpush.msra.mxu0 0.0
    %2320 = vmatpush.msra.mxu0 0.0
    %2321 = vmatpush.msra.mxu0 0.0
    %2322 = vmatpush.msra.mxu0 0.0
    %2323 = vmatpush.msra.mxu0 %v2302
    %2324 = vmatpush.msra.mxu0 %v2301
    %2325 = vmatpush.msra.mxu0 %v2300
    %2326 = vmatpush.msra.mxu0 %v2299
    %2327 = vmatmul.f32.gmra.mxu0 %v2306
    %v2328 = vpop.f32.mrf.mxu0
    %v2329 = vadd.f32 %v2304, %v2328
    %2330 = vmatmul.f32.gmra.mxu0 %v2309
    %v2331 = vpop.f32.mrf.mxu0
    %v2332 = vadd.f32 %v2304, %v2331
    %2333 = vdwg.mxu0
    %v2334 = vmul.f32 %v2329, %v109
    %v2335 = vmul.f32 %v2329, %v111
    %v2336 = vmul.f32 %v2329, %v113
    %v2337 = vmul.f32 %v2329, %v115
    %v2338 = vmul.f32 %v2329, %v125
    %v2339 = vmul.f32 %v2329, %v127
    %v2340 = vmul.f32 %v2329, %v129
    %v2341 = vmul.f32 %v2329, %v131
    %2346 = vrot.lane.b32.xlu0 %v2334, 96
    %v2347 = vpop.permute.xlu0 %2346
    %2348 = vrot.lane.b32.xlu0 %v2335, 96
    %v2349 = vpop.permute.xlu0 %2348
    %2350 = vrot.lane.b32.xlu0 %v2336, 96
    %v2351 = vpop.permute.xlu0 %2350
    %2352 = vrot.lane.b32.xlu0 %v2337, 96
    %v2353 = vpop.permute.xlu0 %2352
    %v2355 = vsel %vm74, %v2329, 0
    %v2357 = vsel %vm74, %v2347, 0
    %v2359 = vsel %vm74, %v2349, 0
    %v2361 = vsel %vm74, %v2351, 0
    %v2363 = vsel %vm74, %v2353, 0
    %2365 = vmatpush.xpose.msra.mxu0 0.0
    %2366 = vmatpush.xpose.msra.mxu0 0.0
    %2367 = vmatpush.xpose.msra.mxu0 0.0
    %2368 = vmatpush.xpose.msra.mxu0 0.0
    %2369 = vmatpush.xpose.msra.mxu0 0.0
    %2370 = vmatpush.xpose.msra.mxu0 0.0
    %2371 = vmatpush.xpose.msra.mxu0 0.0
    %2372 = vmatpush.xpose.msra.mxu0 0.0
    %2373 = vmatpush.xpose.msra.mxu0 0.0
    %2374 = vmatpush.xpose.msra.mxu0 0.0
    %2375 = vmatpush.xpose.msra.mxu0 0.0
    %2376 = vmatpush.xpose.msra.mxu0 0.0
    %2377 = vmatpush.xpose.msra.mxu0 %v2363
    %2378 = vmatpush.xpose.msra.mxu0 %v2361
    %2379 = vmatpush.xpose.msra.mxu0 %v2359
    %2380 = vmatpush.xpose.msra.mxu0 %v2357
    %2381 = vmatmul.f32.gmra.mxu0 %v2355
    %v2382 = vpop.f32.mrf.mxu0
    %v2383 = vadd.f32 0.0, %v2382
    %2384 = vdwg.mxu0
    %v2385 = vsel %vm74, %v2383, -inf
    %2386 = vmax.xlane.f32.xlu0 %v2385
    %v2387 = vpop.xlane.xlu0 %2386
    %v2388 = vsub.f32 %v2383, %v2387
    %v2389 = vmul.f32 %v2388, 1.442695
    %v2390 = vpow.pop %v2389
    %v2392 = vsel %vm74, %v2390, 0
    %2394 = vmatpush.msra.mxu0 0.0
    %2395 = vmatpush.msra.mxu0 0.0
    %2396 = vmatpush.msra.mxu0 0.0
    %2397 = vmatpush.msra.mxu0 0.0
    %2398 = vmatpush.msra.mxu0 0.0
    %2399 = vmatpush.msra.mxu0 0.0
    %2400 = vmatpush.msra.mxu0 0.0
    %2401 = vmatpush.msra.mxu0 0.0
    %2402 = vmatpush.msra.mxu0 0.0
    %2403 = vmatpush.msra.mxu0 0.0
    %2404 = vmatpush.msra.mxu0 0.0
    %2405 = vmatpush.msra.mxu0 0.0
    %2406 = vmatpush.msra.mxu0 %v28
    %2407 = vmatpush.msra.mxu0 %v27
    %2408 = vmatpush.msra.mxu0 %v26
    %2409 = vmatpush.msra.mxu0 %v25
    %2410 = vmatmul.f32.gmra.mxu0 %v2392
    %v2411 = vpop.f32.mrf.mxu0
    %v2412 = vadd.f32 0.0, %v2411
    %2413 = vdwg.mxu0
    %v2414 = vrcp.pop %v2412
    %v2415 = vmul.f32 %v2390, %v2414
    %2420 = vrot.lane.b32.xlu0 %v2338, 64
    %v2421 = vpop.permute.xlu0 %2420
    %2422 = vrot.lane.b32.xlu0 %v2339, 64
    %v2423 = vpop.permute.xlu0 %2422
    %2424 = vrot.lane.b32.xlu0 %v2340, 64
    %v2425 = vpop.permute.xlu0 %2424
    %2426 = vrot.lane.b32.xlu0 %v2341, 64
    %v2427 = vpop.permute.xlu0 %2426
    %v2433 = vsel %vm74, %v2415, 0
    %2435 = vmatpush.msra.mxu0 0.0
    %2436 = vmatpush.msra.mxu0 0.0
    %2437 = vmatpush.msra.mxu0 0.0
    %2438 = vmatpush.msra.mxu0 0.0
    %2439 = vmatpush.msra.mxu0 0.0
    %2440 = vmatpush.msra.mxu0 0.0
    %2441 = vmatpush.msra.mxu0 0.0
    %2442 = vmatpush.msra.mxu0 0.0
    %2443 = vmatpush.msra.mxu0 0.0
    %2444 = vmatpush.msra.mxu0 0.0
    %2445 = vmatpush.msra.mxu0 0.0
    %2446 = vmatpush.msra.mxu0 0.0
    %2447 = vmatpush.msra.mxu0 %v2427
    %2448 = vmatpush.msra.mxu0 %v2425
    %2449 = vmatpush.msra.mxu0 %v2423
    %2450 = vmatpush.msra.mxu0 %v2421
    %2451 = vmatmul.f32.gmra.mxu0 %v2433
    %v2452 = vpop.f32.mrf.mxu0
    %v2453 = vadd.f32 0.0, %v2452
    %2454 = vdwg.mxu0
    %v2455 = vmul.f32 %v2332, %v109
    %v2456 = vmul.f32 %v2332, %v111
    %v2457 = vmul.f32 %v2332, %v113
    %v2458 = vmul.f32 %v2332, %v115
    %v2459 = vmul.f32 %v2332, %v125
    %v2460 = vmul.f32 %v2332, %v127
    %v2461 = vmul.f32 %v2332, %v129
    %v2462 = vmul.f32 %v2332, %v131
    %2467 = vrot.lane.b32.xlu0 %v2455, 96
    %v2468 = vpop.permute.xlu0 %2467
    %2469 = vrot.lane.b32.xlu0 %v2456, 96
    %v2470 = vpop.permute.xlu0 %2469
    %2471 = vrot.lane.b32.xlu0 %v2457, 96
    %v2472 = vpop.permute.xlu0 %2471
    %2473 = vrot.lane.b32.xlu0 %v2458, 96
    %v2474 = vpop.permute.xlu0 %2473
    %v2476 = vsel %vm74, %v2332, 0
    %v2478 = vsel %vm74, %v2468, 0
    %v2480 = vsel %vm74, %v2470, 0
    %v2482 = vsel %vm74, %v2472, 0
    %v2484 = vsel %vm74, %v2474, 0
    %2486 = vmatpush.xpose.msra.mxu0 0.0
    %2487 = vmatpush.xpose.msra.mxu0 0.0
    %2488 = vmatpush.xpose.msra.mxu0 0.0
    %2489 = vmatpush.xpose.msra.mxu0 0.0
    %2490 = vmatpush.xpose.msra.mxu0 0.0
    %2491 = vmatpush.xpose.msra.mxu0 0.0
    %2492 = vmatpush.xpose.msra.mxu0 0.0
    %2493 = vmatpush.xpose.msra.mxu0 0.0
    %2494 = vmatpush.xpose.msra.mxu0 0.0
    %2495 = vmatpush.xpose.msra.mxu0 0.0
    %2496 = vmatpush.xpose.msra.mxu0 0.0
    %2497 = vmatpush.xpose.msra.mxu0 0.0
    %2498 = vmatpush.xpose.msra.mxu0 %v2484
    %2499 = vmatpush.xpose.msra.mxu0 %v2482
    %2500 = vmatpush.xpose.msra.mxu0 %v2480
    %2501 = vmatpush.xpose.msra.mxu0 %v2478
    %2502 = vmatmul.f32.gmra.mxu0 %v2476
    %v2503 = vpop.f32.mrf.mxu0
    %v2504 = vadd.f32 0.0, %v2503
    %2505 = vdwg.mxu0
    %v2506 = vsel %vm74, %v2504, -inf
    %2507 = vmax.xlane.f32.xlu0 %v2506
    %v2508 = vpop.xlane.xlu0 %2507
    %v2509 = vsub.f32 %v2504, %v2508
    %v2510 = vmul.f32 %v2509, 1.442695
    %v2511 = vpow.pop %v2510
    %v2513 = vsel %vm74, %v2511, 0
    %2515 = vmatpush.msra.mxu0 0.0
    %2516 = vmatpush.msra.mxu0 0.0
    %2517 = vmatpush.msra.mxu0 0.0
    %2518 = vmatpush.msra.mxu0 0.0
    %2519 = vmatpush.msra.mxu0 0.0
    %2520 = vmatpush.msra.mxu0 0.0
    %2521 = vmatpush.msra.mxu0 0.0
    %2522 = vmatpush.msra.mxu0 0.0
    %2523 = vmatpush.msra.mxu0 0.0
    %2524 = vmatpush.msra.mxu0 0.0
    %2525 = vmatpush.msra.mxu0 0.0
    %2526 = vmatpush.msra.mxu0 0.0
    %2527 = vmatpush.msra.mxu0 %v28
    %2528 = vmatpush.msra.mxu0 %v27
    %2529 = vmatpush.msra.mxu0 %v26
    %2530 = vmatpush.msra.mxu0 %v25
    %2531 = vmatmul.f32.gmra.mxu0 %v2513
    %v2532 = vpop.f32.mrf.mxu0
    %v2533 = vadd.f32 0.0, %v2532
    %2534 = vdwg.mxu0
    %v2535 = vrcp.pop %v2533
    %v2536 = vmul.f32 %v2511, %v2535
    %2541 = vrot.lane.b32.xlu0 %v2459, 64
    %v2542 = vpop.permute.xlu0 %2541
    %2543 = vrot.lane.b32.xlu0 %v2460, 64
    %v2544 = vpop.permute.xlu0 %2543
    %2545 = vrot.lane.b32.xlu0 %v2461, 64
    %v2546 = vpop.permute.xlu0 %2545
    %2547 = vrot.lane.b32.xlu0 %v2462, 64
    %v2548 = vpop.permute.xlu0 %2547
    %v2554 = vsel %vm74, %v2536, 0
    %2556 = vmatpush.msra.mxu0 0.0
    %2557 = vmatpush.msra.mxu0 0.0
    %2558 = vmatpush.msra.mxu0 0.0
    %2559 = vmatpush.msra.mxu0 0.0
    %2560 = vmatpush.msra.mxu0 0.0
    %2561 = vmatpush.msra.mxu0 0.0
    %2562 = vmatpush.msra.mxu0 0.0
    %2563 = vmatpush.msra.mxu0 0.0
    %2564 = vmatpush.msra.mxu0 0.0
    %2565 = vmatpush.msra.mxu0 0.0
    %2566 = vmatpush.msra.mxu0 0.0
    %2567 = vmatpush.msra.mxu0 0.0
    %2568 = vmatpush.msra.mxu0 %v2548
    %2569 = vmatpush.msra.mxu0 %v2546
    %2570 = vmatpush.msra.mxu0 %v2544
    %2571 = vmatpush.msra.mxu0 %v2542
    %2572 = vmatmul.f32.gmra.mxu0 %v2554
    %v2573 = vpop.f32.mrf.mxu0
    %v2574 = vadd.f32 0.0, %v2573
    %2575 = vdwg.mxu0
    %v2576 = vld [vmem:[%s2 + $0xb0] sm:$0xff]
    %v2577 = vld [vmem:[%s2 + $0xb8] sm:$0xff]
    %v2578 = vld [vmem:[%s2 + $0xc0] sm:$0xff]
    %v2579 = vld [vmem:[%s2 + $0xc8] sm:$0xff]
    %v2580 = vld [vmem:[%s2 + $0xd0] sm:$0x1]
    %v2581 = vperm.slane %v2580, 0
    %v2583 = vsel %vm74, %v2453, 0
    %v2586 = vsel %vm74, %v2574, 0
    %2588 = vmatpush.msra.mxu0 0.0
    %2589 = vmatpush.msra.mxu0 0.0
    %2590 = vmatpush.msra.mxu0 0.0
    %2591 = vmatpush.msra.mxu0 0.0
    %2592 = vmatpush.msra.mxu0 0.0
    %2593 = vmatpush.msra.mxu0 0.0
    %2594 = vmatpush.msra.mxu0 0.0
    %2595 = vmatpush.msra.mxu0 0.0
    %2596 = vmatpush.msra.mxu0 0.0
    %2597 = vmatpush.msra.mxu0 0.0
    %2598 = vmatpush.msra.mxu0 0.0
    %2599 = vmatpush.msra.mxu0 0.0
    %2600 = vmatpush.msra.mxu0 %v2579
    %2601 = vmatpush.msra.mxu0 %v2578
    %2602 = vmatpush.msra.mxu0 %v2577
    %2603 = vmatpush.msra.mxu0 %v2576
    %2604 = vmatmul.f32.gmra.mxu0 %v2583
    %v2605 = vpop.f32.mrf.mxu0
    %v2606 = vadd.f32 %v2581, %v2605
    %2607 = vmatmul.f32.gmra.mxu0 %v2586
    %v2608 = vpop.f32.mrf.mxu0
    %v2609 = vadd.f32 %v2581, %v2608
    %2610 = vdwg.mxu0
    %v2611 = vadd.f32 %v2297, %v2606
    %v2612 = vadd.f32 %v2298, %v2609
    %v2613 = vld [vmem:[%s2 + $0xd8] sm:$0x1]
    %v2614 = vld [vmem:[%s2 + $0xe0] sm:$0x1]
    %v2615 = vsel %vm74, %v2611, 0.0
    %2616 = vadd.xlane.f32.xlu0 %v2615
    %v2617 = vpop.xlane.xlu0 %2616
    %v2618 = vsel %vm74, %v2612, 0.0
    %2619 = vadd.xlane.f32.xlu0 %v2618
    %v2620 = vpop.xlane.xlu0 %2619
    %v2621 = vmul.f32 %v2617, %v425
    %v2622 = vmul.f32 %v2620, %v425
    %v2623 = vmul.f32 %v2611, %v2611
    %v2624 = vmul.f32 %v2612, %v2612
    %v2625 = vsel %vm74, %v2623, 0.0
    %2626 = vadd.xlane.f32.xlu0 %v2625
    %v2627 = vpop.xlane.xlu0 %2626
    %v2628 = vsel %vm74, %v2624, 0.0
    %2629 = vadd.xlane.f32.xlu0 %v2628
    %v2630 = vpop.xlane.xlu0 %2629
    %v2631 = vmul.f32 %v2627, %v425
    %v2632 = vmul.f32 %v2630, %v425
    %v2633 = vsub.f32 %v2611, %v2621
    %v2634 = vsub.f32 %v2612, %v2622
    %v2635 = vmul.f32 %v2621, %v2621
    %v2636 = vmul.f32 %v2622, %v2622
    %v2637 = vsub.f32 %v2631, %v2635
    %v2638 = vsub.f32 %v2632, %v2636
    %v2639 = vadd.f32 %v2637, 1e-05
    %v2640 = vadd.f32 %v2638, 1e-05
    %v2641 = vrsqrt.pop %v2639
    %v2642 = vmul.f32 %v2641, %v2639
    %v2643 = vmul.f32 %v2642, %v2641
    %v2644 = vmul.f32 0.5, %v2643
    %v2645 = vsub.f32 1.5, %v2644
    %v2646 = vmul.f32 %v2641, %v2645
    %vm2647 = vweird.f32 %v2639
    %vm2648 = vweird.f32 %v2641
    %vm2649 = vmor %vm2647, %vm2648
    %v2650 = vsel %vm2649, %v2641, %v2646
    %v2651 = vrsqrt.pop %v2640
    %v2652 = vmul.f32 %v2651, %v2640
    %v2653 = vmul.f32 %v2652, %v2651
    %v2654 = vmul.f32 0.5, %v2653
    %v2655 = vsub.f32 1.5, %v2654
    %v2656 = vmul.f32 %v2651, %v2655
    %vm2657 = vweird.f32 %v2640
    %vm2658 = vweird.f32 %v2651
    %vm2659 = vmor %vm2657, %vm2658
    %v2660 = vsel %vm2659, %v2651, %v2656
    %v2661 = vmul.f32 %v2633, %v2650
    %v2662 = vmul.f32 %v2634, %v2660
    %v2663 = vperm.slane %v2613, 0
    %v2664 = vmul.f32 %v2661, %v2663
    %v2665 = vmul.f32 %v2662, %v2663
    %v2666 = vperm.slane %v2614, 0
    %v2667 = vadd.f32 %v2664, %v2666
    %v2668 = vadd.f32 %v2665, %v2666
    %v2669 = vpack.c.bf16 %v2668, %v2667
    %s2670 = scalar_lea.vmem %s4, 256
    %v2671 = vld [vmem:[%s2670] sm:$0xff]
    %v2672 = vld [vmem:[%s2670 + $0x8] sm:$0xff]
    %v2673 = vld [vmem:[%s2670 + $0x40] sm:$0xff]
    %v2674 = vld [vmem:[%s2670 + $0x48] sm:$0xff]
    %v2675 = vld [vmem:[%s2670 + $0x80] sm:$0xff]
    %v2676 = vld [vmem:[%s2670 + $0x88] sm:$0xff]
    %v2677 = vld [vmem:[%s2670 + $0xc0] sm:$0xff]
    %v2678 = vld [vmem:[%s2670 + $0xc8] sm:$0xff]
    %s2679 = scalar_lea.vmem %s3, 1
    %v2680 = vld [vmem:[%s2679] ss:$2 sm:$0xf]
    %v2682 = vperm.slane %v2680, 0
    %v2683 = vperm.slane %v2680, 1
    %v2684 = vperm.slane %v2680, 2
    %v2685 = vperm.slane %v2680, 3
    %v2698 = vunpack.c.l.b16 %v2671
    %v2699 = vunpack.c.h.b16 %v2671
    %v2700 = vunpack.c.l.b16 %v2672
    %v2701 = vunpack.c.h.b16 %v2672
    %v2702 = vunpack.c.l.b16 %v2673
    %v2703 = vunpack.c.h.b16 %v2673
    %v2704 = vunpack.c.l.b16 %v2674
    %v2705 = vunpack.c.h.b16 %v2674
    %v2706 = vunpack.c.l.b16 %v2675
    %v2707 = vunpack.c.h.b16 %v2675
    %v2708 = vunpack.c.l.b16 %v2676
    %v2709 = vunpack.c.h.b16 %v2676
    %v2710 = vunpack.c.l.b16 %v2677
    %v2711 = vunpack.c.h.b16 %v2677
    %v2712 = vunpack.c.l.b16 %v2678
    %v2713 = vunpack.c.h.b16 %v2678
    %v2714 = vpack.c.b16 %v2702, %v2698
    %v2715 = vpack.c.b16 %v2703, %v2699
    %v2716 = vpack.c.b16 %v2704, %v2700
    %v2717 = vpack.c.b16 %v2705, %v2701
    %v2718 = vpack.c.b16 %v2710, %v2706
    %v2719 = vpack.c.b16 %v2711, %v2707
    %v2720 = vpack.c.b16 %v2712, %v2708
    %v2721 = vpack.c.b16 %v2713, %v2709
    %v2731 = vsel %vm74, %v2669, 0
    %2733 = vmatpush.bf16.msra.mxu0 0
    %2734 = vmatpush.bf16.msra.mxu0 0
    %2735 = vmatpush.bf16.msra.mxu0 0
    %2736 = vmatpush.bf16.msra.mxu0 0
    %2737 = vmatpush.bf16.msra.mxu0 0
    %2738 = vmatpush.bf16.msra.mxu0 0
    %2739 = vmatpush.bf16.msra.mxu0 %v2718
    %2740 = vmatpush.bf16.msra.mxu0 %v2714
    %2741 = vmatmul.bf16.gmra.mxu0 %v2731
    %v2742 = vpop.f32.mrf.mxu0
    %v2743 = vadd.f32 %v2682, %v2742
    %v2744 = vpop.f32.mrf.mxu0
    %v2745 = vadd.f32 %v2682, %v2744
    %2746 = vdwg.mxu0
    %2747 = vmatpush.bf16.msra.mxu0 0
    %2748 = vmatpush.bf16.msra.mxu0 0
    %2749 = vmatpush.bf16.msra.mxu0 0
    %2750 = vmatpush.bf16.msra.mxu0 0
    %2751 = vmatpush.bf16.msra.mxu0 0
    %2752 = vmatpush.bf16.msra.mxu0 0
    %2753 = vmatpush.bf16.msra.mxu0 %v2719
    %2754 = vmatpush.bf16.msra.mxu0 %v2715
    %2755 = vmatmul.bf16.gmra.mxu0 %v2731
    %v2756 = vpop.f32.mrf.mxu0
    %v2757 = vadd.f32 %v2683, %v2756
    %v2758 = vpop.f32.mrf.mxu0
    %v2759 = vadd.f32 %v2683, %v2758
    %2760 = vdwg.mxu0
    %2761 = vmatpush.bf16.msra.mxu0 0
    %2762 = vmatpush.bf16.msra.mxu0 0
    %2763 = vmatpush.bf16.msra.mxu0 0
    %2764 = vmatpush.bf16.msra.mxu0 0
    %2765 = vmatpush.bf16.msra.mxu0 0
    %2766 = vmatpush.bf16.msra.mxu0 0
    %2767 = vmatpush.bf16.msra.mxu0 %v2720
    %2768 = vmatpush.bf16.msra.mxu0 %v2716
    %2769 = vmatmul.bf16.gmra.mxu0 %v2731
    %v2770 = vpop.f32.mrf.mxu0
    %v2771 = vadd.f32 %v2684, %v2770
    %v2772 = vpop.f32.mrf.mxu0
    %v2773 = vadd.f32 %v2684, %v2772
    %2774 = vdwg.mxu0
    %2775 = vmatpush.bf16.msra.mxu0 0
    %2776 = vmatpush.bf16.msra.mxu0 0
    %2777 = vmatpush.bf16.msra.mxu0 0
    %2778 = vmatpush.bf16.msra.mxu0 0
    %2779 = vmatpush.bf16.msra.mxu0 0
    %2780 = vmatpush.bf16.msra.mxu0 0
    %2781 = vmatpush.bf16.msra.mxu0 %v2721
    %2782 = vmatpush.bf16.msra.mxu0 %v2717
    %2783 = vmatmul.bf16.gmra.mxu0 %v2731
    %v2784 = vpop.f32.mrf.mxu0
    %v2785 = vadd.f32 %v2685, %v2784
    %v2786 = vpop.f32.mrf.mxu0
    %v2787 = vadd.f32 %v2685, %v2786
    %2788 = vdwg.mxu0
    %v2789 = vmax.f32 %v2743, 0.0
    %v2790 = vmax.f32 %v2757, 0.0
    %v2791 = vmax.f32 %v2771, 0.0
    %v2792 = vmax.f32 %v2785, 0.0
    %v2793 = vmax.f32 %v2745, 0.0
    %v2794 = vmax.f32 %v2759, 0.0
    %v2795 = vmax.f32 %v2773, 0.0
    %v2796 = vmax.f32 %v2787, 0.0
    %v2797 = vpack.c.bf16 %v2793, %v2789
    %v2798 = vpack.c.bf16 %v2794, %v2790
    %v2799 = vpack.c.bf16 %v2795, %v2791
    %v2800 = vpack.c.bf16 %v2796, %v2792
    %s2801 = scalar_lea.vmem %s5, 1024
    %v2802 = vld [vmem:[%s2801] sm:$0xf]
    %v2803 = vld [vmem:[%s2801 + $0x4] sm:$0xf]
    %v2804 = vld [vmem:[%s2801 + $0x8] sm:$0xf]
    %v2805 = vld [vmem:[%s2801 + $0xc] sm:$0xf]
    %v2806 = vld [vmem:[%s2801 + $0x10] sm:$0xf]
    %v2807 = vld [vmem:[%s2801 + $0x14] sm:$0xf]
    %v2808 = vld [vmem:[%s2801 + $0x18] sm:$0xf]
    %v2809 = vld [vmem:[%s2801 + $0x1c] sm:$0xf]
    %v2810 = vld [vmem:[%s2801 + $0x20] sm:$0xf]
    %v2811 = vld [vmem:[%s2801 + $0x24] sm:$0xf]
    %v2812 = vld [vmem:[%s2801 + $0x28] sm:$0xf]
    %v2813 = vld [vmem:[%s2801 + $0x2c] sm:$0xf]
    %v2814 = vld [vmem:[%s2801 + $0x30] sm:$0xf]
    %v2815 = vld [vmem:[%s2801 + $0x34] sm:$0xf]
    %v2816 = vld [vmem:[%s2801 + $0x38] sm:$0xf]
    %v2817 = vld [vmem:[%s2801 + $0x3c] sm:$0xf]
    %v2818 = vld [vmem:[%s2801 + $0x40] sm:$0xf]
    %v2819 = vld [vmem:[%s2801 + $0x44] sm:$0xf]
    %v2820 = vld [vmem:[%s2801 + $0x48] sm:$0xf]
    %v2821 = vld [vmem:[%s2801 + $0x4c] sm:$0xf]
    %v2822 = vld [vmem:[%s2801 + $0x50] sm:$0xf]
    %v2823 = vld [vmem:[%s2801 + $0x54] sm:$0xf]
    %v2824 = vld [vmem:[%s2801 + $0x58] sm:$0xf]
    %v2825 = vld [vmem:[%s2801 + $0x5c] sm:$0xf]
    %v2826 = vld [vmem:[%s2801 + $0x60] sm:$0xf]
    %v2827 = vld [vmem:[%s2801 + $0x64] sm:$0xf]
    %v2828 = vld [vmem:[%s2801 + $0x68] sm:$0xf]
    %v2829 = vld [vmem:[%s2801 + $0x6c] sm:$0xf]
    %v2830 = vld [vmem:[%s2801 + $0x70] sm:$0xf]
    %v2831 = vld [vmem:[%s2801 + $0x74] sm:$0xf]
    %v2832 = vld [vmem:[%s2801 + $0x78] sm:$0xf]
    %v2833 = vld [vmem:[%s2801 + $0x7c] sm:$0xf]
    %v2834 = vld [vmem:[%s2801 + $0x80] sm:$0xf]
    %v2835 = vld [vmem:[%s2801 + $0x84] sm:$0xf]
    %v2836 = vld [vmem:[%s2801 + $0x88] sm:$0xf]
    %v2837 = vld [vmem:[%s2801 + $0x8c] sm:$0xf]
    %v2838 = vld [vmem:[%s2801 + $0x90] sm:$0xf]
    %v2839 = vld [vmem:[%s2801 + $0x94] sm:$0xf]
    %v2840 = vld [vmem:[%s2801 + $0x98] sm:$0xf]
    %v2841 = vld [vmem:[%s2801 + $0x9c] sm:$0xf]
    %v2842 = vld [vmem:[%s2801 + $0xa0] sm:$0xf]
    %v2843 = vld [vmem:[%s2801 + $0xa4] sm:$0xf]
    %v2844 = vld [vmem:[%s2801 + $0xa8] sm:$0xf]
    %v2845 = vld [vmem:[%s2801 + $0xac] sm:$0xf]
    %v2846 = vld [vmem:[%s2801 + $0xb0] sm:$0xf]
    %v2847 = vld [vmem:[%s2801 + $0xb4] sm:$0xf]
    %v2848 = vld [vmem:[%s2801 + $0xb8] sm:$0xf]
    %v2849 = vld [vmem:[%s2801 + $0xbc] sm:$0xf]
    %v2850 = vld [vmem:[%s2801 + $0xc0] sm:$0xf]
    %v2851 = vld [vmem:[%s2801 + $0xc4] sm:$0xf]
    %v2852 = vld [vmem:[%s2801 + $0xc8] sm:$0xf]
    %v2853 = vld [vmem:[%s2801 + $0xcc] sm:$0xf]
    %v2854 = vld [vmem:[%s2801 + $0xd0] sm:$0xf]
    %v2855 = vld [vmem:[%s2801 + $0xd4] sm:$0xf]
    %v2856 = vld [vmem:[%s2801 + $0xd8] sm:$0xf]
    %v2857 = vld [vmem:[%s2801 + $0xdc] sm:$0xf]
    %v2858 = vld [vmem:[%s2801 + $0xe0] sm:$0xf]
    %v2859 = vld [vmem:[%s2801 + $0xe4] sm:$0xf]
    %v2860 = vld [vmem:[%s2801 + $0xe8] sm:$0xf]
    %v2861 = vld [vmem:[%s2801 + $0xec] sm:$0xf]
    %v2862 = vld [vmem:[%s2801 + $0xf0] sm:$0xf]
    %v2863 = vld [vmem:[%s2801 + $0xf4] sm:$0xf]
    %v2864 = vld [vmem:[%s2801 + $0xf8] sm:$0xf]
    %v2865 = vld [vmem:[%s2801 + $0xfc] sm:$0xf]
    %v2866 = vld [vmem:[%s2670 + $0x10] sm:$0xff]
    %v2867 = vld [vmem:[%s2670 + $0x18] sm:$0xff]
    %v2868 = vld [vmem:[%s2670 + $0x50] sm:$0xff]
    %v2869 = vld [vmem:[%s2670 + $0x58] sm:$0xff]
    %v2870 = vld [vmem:[%s2670 + $0x90] sm:$0xff]
    %v2871 = vld [vmem:[%s2670 + $0x98] sm:$0xff]
    %v2872 = vld [vmem:[%s2670 + $0xd0] sm:$0xff]
    %v2873 = vld [vmem:[%s2670 + $0xd8] sm:$0xff]
    %s2874 = scalar_lea.vmem %s3, 9
    %v2875 = vld [vmem:[%s2874] ss:$2 sm:$0xf]
    %v2877 = vperm.slane %v2875, 0
    %v2878 = vperm.slane %v2875, 1
    %v2879 = vperm.slane %v2875, 2
    %v2880 = vperm.slane %v2875, 3
    %v2893 = vunpack.c.l.b16 %v2866
    %v2894 = vunpack.c.h.b16 %v2866
    %v2895 = vunpack.c.l.b16 %v2867
    %v2896 = vunpack.c.h.b16 %v2867
    %v2897 = vunpack.c.l.b16 %v2868
    %v2898 = vunpack.c.h.b16 %v2868
    %v2899 = vunpack.c.l.b16 %v2869
    %v2900 = vunpack.c.h.b16 %v2869
    %v2901 = vunpack.c.l.b16 %v2870
    %v2902 = vunpack.c.h.b16 %v2870
    %v2903 = vunpack.c.l.b16 %v2871
    %v2904 = vunpack.c.h.b16 %v2871
    %v2905 = vunpack.c.l.b16 %v2872
    %v2906 = vunpack.c.h.b16 %v2872
    %v2907 = vunpack.c.l.b16 %v2873
    %v2908 = vunpack.c.h.b16 %v2873
    %v2909 = vpack.c.b16 %v2897, %v2893
    %v2910 = vpack.c.b16 %v2898, %v2894
    %v2911 = vpack.c.b16 %v2899, %v2895
    %v2912 = vpack.c.b16 %v2900, %v2896
    %v2913 = vpack.c.b16 %v2905, %v2901
    %v2914 = vpack.c.b16 %v2906, %v2902
    %v2915 = vpack.c.b16 %v2907, %v2903
    %v2916 = vpack.c.b16 %v2908, %v2904
    %2925 = vmatpush.bf16.msra.mxu0 0
    %2926 = vmatpush.bf16.msra.mxu0 0
    %2927 = vmatpush.bf16.msra.mxu0 0
    %2928 = vmatpush.bf16.msra.mxu0 0
    %2929 = vmatpush.bf16.msra.mxu0 0
    %2930 = vmatpush.bf16.msra.mxu0 0
    %2931 = vmatpush.bf16.msra.mxu0 %v2913
    %2932 = vmatpush.bf16.msra.mxu0 %v2909
    %2933 = vmatmul.bf16.gmra.mxu0 %v2731
    %v2934 = vpop.f32.mrf.mxu0
    %v2935 = vadd.f32 %v2877, %v2934
    %v2936 = vpop.f32.mrf.mxu0
    %v2937 = vadd.f32 %v2877, %v2936
    %2938 = vdwg.mxu0
    %2939 = vmatpush.bf16.msra.mxu0 0
    %2940 = vmatpush.bf16.msra.mxu0 0
    %2941 = vmatpush.bf16.msra.mxu0 0
    %2942 = vmatpush.bf16.msra.mxu0 0
    %2943 = vmatpush.bf16.msra.mxu0 0
    %2944 = vmatpush.bf16.msra.mxu0 0
    %2945 = vmatpush.bf16.msra.mxu0 %v2914
    %2946 = vmatpush.bf16.msra.mxu0 %v2910
    %2947 = vmatmul.bf16.gmra.mxu0 %v2731
    %v2948 = vpop.f32.mrf.mxu0
    %v2949 = vadd.f32 %v2878, %v2948
    %v2950 = vpop.f32.mrf.mxu0
    %v2951 = vadd.f32 %v2878, %v2950
    %2952 = vdwg.mxu0
    %2953 = vmatpush.bf16.msra.mxu0 0
    %2954 = vmatpush.bf16.msra.mxu0 0
    %2955 = vmatpush.bf16.msra.mxu0 0
    %2956 = vmatpush.bf16.msra.mxu0 0
    %2957 = vmatpush.bf16.msra.mxu0 0
    %2958 = vmatpush.bf16.msra.mxu0 0
    %2959 = vmatpush.bf16.msra.mxu0 %v2915
    %2960 = vmatpush.bf16.msra.mxu0 %v2911
    %2961 = vmatmul.bf16.gmra.mxu0 %v2731
    %v2962 = vpop.f32.mrf.mxu0
    %v2963 = vadd.f32 %v2879, %v2962
    %v2964 = vpop.f32.mrf.mxu0
    %v2965 = vadd.f32 %v2879, %v2964
    %2966 = vdwg.mxu0
    %2967 = vmatpush.bf16.msra.mxu0 0
    %2968 = vmatpush.bf16.msra.mxu0 0
    %2969 = vmatpush.bf16.msra.mxu0 0
    %2970 = vmatpush.bf16.msra.mxu0 0
    %2971 = vmatpush.bf16.msra.mxu0 0
    %2972 = vmatpush.bf16.msra.mxu0 0
    %2973 = vmatpush.bf16.msra.mxu0 %v2916
    %2974 = vmatpush.bf16.msra.mxu0 %v2912
    %2975 = vmatmul.bf16.gmra.mxu0 %v2731
    %v2976 = vpop.f32.mrf.mxu0
    %v2977 = vadd.f32 %v2880, %v2976
    %v2978 = vpop.f32.mrf.mxu0
    %v2979 = vadd.f32 %v2880, %v2978
    %2980 = vdwg.mxu0
    %v2981 = vmax.f32 %v2935, 0.0
    %v2982 = vmax.f32 %v2949, 0.0
    %v2983 = vmax.f32 %v2963, 0.0
    %v2984 = vmax.f32 %v2977, 0.0
    %v2985 = vmax.f32 %v2937, 0.0
    %v2986 = vmax.f32 %v2951, 0.0
    %v2987 = vmax.f32 %v2965, 0.0
    %v2988 = vmax.f32 %v2979, 0.0
    %v2989 = vpack.c.bf16 %v2985, %v2981
    %v2990 = vpack.c.bf16 %v2986, %v2982
    %v2991 = vpack.c.bf16 %v2987, %v2983
    %v2992 = vpack.c.bf16 %v2988, %v2984
    %v2993 = vld [vmem:[%s2801 + $0x100] sm:$0xf]
    %v2994 = vld [vmem:[%s2801 + $0x104] sm:$0xf]
    %v2995 = vld [vmem:[%s2801 + $0x108] sm:$0xf]
    %v2996 = vld [vmem:[%s2801 + $0x10c] sm:$0xf]
    %v2997 = vld [vmem:[%s2801 + $0x110] sm:$0xf]
    %v2998 = vld [vmem:[%s2801 + $0x114] sm:$0xf]
    %v2999 = vld [vmem:[%s2801 + $0x118] sm:$0xf]
    %v3000 = vld [vmem:[%s2801 + $0x11c] sm:$0xf]
    %v3001 = vld [vmem:[%s2801 + $0x120] sm:$0xf]
    %v3002 = vld [vmem:[%s2801 + $0x124] sm:$0xf]
    %v3003 = vld [vmem:[%s2801 + $0x128] sm:$0xf]
    %v3004 = vld [vmem:[%s2801 + $0x12c] sm:$0xf]
    %v3005 = vld [vmem:[%s2801 + $0x130] sm:$0xf]
    %v3006 = vld [vmem:[%s2801 + $0x134] sm:$0xf]
    %v3007 = vld [vmem:[%s2801 + $0x138] sm:$0xf]
    %v3008 = vld [vmem:[%s2801 + $0x13c] sm:$0xf]
    %v3009 = vld [vmem:[%s2801 + $0x140] sm:$0xf]
    %v3010 = vld [vmem:[%s2801 + $0x144] sm:$0xf]
    %v3011 = vld [vmem:[%s2801 + $0x148] sm:$0xf]
    %v3012 = vld [vmem:[%s2801 + $0x14c] sm:$0xf]
    %v3013 = vld [vmem:[%s2801 + $0x150] sm:$0xf]
    %v3014 = vld [vmem:[%s2801 + $0x154] sm:$0xf]
    %v3015 = vld [vmem:[%s2801 + $0x158] sm:$0xf]
    %v3016 = vld [vmem:[%s2801 + $0x15c] sm:$0xf]
    %v3017 = vld [vmem:[%s2801 + $0x160] sm:$0xf]
    %v3018 = vld [vmem:[%s2801 + $0x164] sm:$0xf]
    %v3019 = vld [vmem:[%s2801 + $0x168] sm:$0xf]
    %v3020 = vld [vmem:[%s2801 + $0x16c] sm:$0xf]
    %v3021 = vld [vmem:[%s2801 + $0x170] sm:$0xf]
    %v3022 = vld [vmem:[%s2801 + $0x174] sm:$0xf]
    %v3023 = vld [vmem:[%s2801 + $0x178] sm:$0xf]
    %v3024 = vld [vmem:[%s2801 + $0x17c] sm:$0xf]
    %v3025 = vld [vmem:[%s2801 + $0x180] sm:$0xf]
    %v3026 = vld [vmem:[%s2801 + $0x184] sm:$0xf]
    %v3027 = vld [vmem:[%s2801 + $0x188] sm:$0xf]
    %v3028 = vld [vmem:[%s2801 + $0x18c] sm:$0xf]
    %v3029 = vld [vmem:[%s2801 + $0x190] sm:$0xf]
    %v3030 = vld [vmem:[%s2801 + $0x194] sm:$0xf]
    %v3031 = vld [vmem:[%s2801 + $0x198] sm:$0xf]
    %v3032 = vld [vmem:[%s2801 + $0x19c] sm:$0xf]
    %v3033 = vld [vmem:[%s2801 + $0x1a0] sm:$0xf]
    %v3034 = vld [vmem:[%s2801 + $0x1a4] sm:$0xf]
    %v3035 = vld [vmem:[%s2801 + $0x1a8] sm:$0xf]
    %v3036 = vld [vmem:[%s2801 + $0x1ac] sm:$0xf]
    %v3037 = vld [vmem:[%s2801 + $0x1b0] sm:$0xf]
    %v3038 = vld [vmem:[%s2801 + $0x1b4] sm:$0xf]
    %v3039 = vld [vmem:[%s2801 + $0x1b8] sm:$0xf]
    %v3040 = vld [vmem:[%s2801 + $0x1bc] sm:$0xf]
    %v3041 = vld [vmem:[%s2801 + $0x1c0] sm:$0xf]
    %v3042 = vld [vmem:[%s2801 + $0x1c4] sm:$0xf]
    %v3043 = vld [vmem:[%s2801 + $0x1c8] sm:$0xf]
    %v3044 = vld [vmem:[%s2801 + $0x1cc] sm:$0xf]
    %v3045 = vld [vmem:[%s2801 + $0x1d0] sm:$0xf]
    %v3046 = vld [vmem:[%s2801 + $0x1d4] sm:$0xf]
    %v3047 = vld [vmem:[%s2801 + $0x1d8] sm:$0xf]
    %v3048 = vld [vmem:[%s2801 + $0x1dc] sm:$0xf]
    %v3049 = vld [vmem:[%s2801 + $0x1e0] sm:$0xf]
    %v3050 = vld [vmem:[%s2801 + $0x1e4] sm:$0xf]
    %v3051 = vld [vmem:[%s2801 + $0x1e8] sm:$0xf]
    %v3052 = vld [vmem:[%s2801 + $0x1ec] sm:$0xf]
    %v3053 = vld [vmem:[%s2801 + $0x1f0] sm:$0xf]
    %v3054 = vld [vmem:[%s2801 + $0x1f4] sm:$0xf]
    %v3055 = vld [vmem:[%s2801 + $0x1f8] sm:$0xf]
    %v3056 = vld [vmem:[%s2801 + $0x1fc] sm:$0xf]
    %v3121 = vunpack.c.l.b16 %v2993
    %v3122 = vunpack.c.l.b16 %v2994
    %v3123 = vunpack.c.l.b16 %v2995
    %v3124 = vunpack.c.l.b16 %v2996
    %v3125 = vunpack.c.l.b16 %v2997
    %v3126 = vunpack.c.l.b16 %v2998
    %v3127 = vunpack.c.l.b16 %v2999
    %v3128 = vunpack.c.l.b16 %v3000
    %v3129 = vunpack.c.l.b16 %v3001
    %v3130 = vunpack.c.l.b16 %v3002
    %v3131 = vunpack.c.l.b16 %v3003
    %v3132 = vunpack.c.l.b16 %v3004
    %v3133 = vunpack.c.l.b16 %v3005
    %v3134 = vunpack.c.l.b16 %v3006
    %v3135 = vunpack.c.l.b16 %v3007
    %v3136 = vunpack.c.l.b16 %v3008
    %v3137 = vunpack.c.l.b16 %v3009
    %v3138 = vunpack.c.l.b16 %v3010
    %v3139 = vunpack.c.l.b16 %v3011
    %v3140 = vunpack.c.l.b16 %v3012
    %v3141 = vunpack.c.l.b16 %v3013
    %v3142 = vunpack.c.l.b16 %v3014
    %v3143 = vunpack.c.l.b16 %v3015
    %v3144 = vunpack.c.l.b16 %v3016
    %v3145 = vunpack.c.l.b16 %v3017
    %v3146 = vunpack.c.l.b16 %v3018
    %v3147 = vunpack.c.l.b16 %v3019
    %v3148 = vunpack.c.l.b16 %v3020
    %v3149 = vunpack.c.l.b16 %v3021
    %v3150 = vunpack.c.l.b16 %v3022
    %v3151 = vunpack.c.l.b16 %v3023
    %v3152 = vunpack.c.l.b16 %v3024
    %v3153 = vunpack.c.l.b16 %v3025
    %v3154 = vunpack.c.l.b16 %v3026
    %v3155 = vunpack.c.l.b16 %v3027
    %v3156 = vunpack.c.l.b16 %v3028
    %v3157 = vunpack.c.l.b16 %v3029
    %v3158 = vunpack.c.l.b16 %v3030
    %v3159 = vunpack.c.l.b16 %v3031
    %v3160 = vunpack.c.l.b16 %v3032
    %v3161 = vunpack.c.l.b16 %v3033
    %v3162 = vunpack.c.l.b16 %v3034
    %v3163 = vunpack.c.l.b16 %v3035
    %v3164 = vunpack.c.l.b16 %v3036
    %v3165 = vunpack.c.l.b16 %v3037
    %v3166 = vunpack.c.l.b16 %v3038
    %v3167 = vunpack.c.l.b16 %v3039
    %v3168 = vunpack.c.l.b16 %v3040
    %v3169 = vunpack.c.l.b16 %v3041
    %v3170 = vunpack.c.l.b16 %v3042
    %v3171 = vunpack.c.l.b16 %v3043
    %v3172 = vunpack.c.l.b16 %v3044
    %v3173 = vunpack.c.l.b16 %v3045
    %v3174 = vunpack.c.l.b16 %v3046
    %v3175 = vunpack.c.l.b16 %v3047
    %v3176 = vunpack.c.l.b16 %v3048
    %v3177 = vunpack.c.l.b16 %v3049
    %v3178 = vunpack.c.l.b16 %v3050
    %v3179 = vunpack.c.l.b16 %v3051
    %v3180 = vunpack.c.l.b16 %v3052
    %v3181 = vunpack.c.l.b16 %v3053
    %v3182 = vunpack.c.l.b16 %v3054
    %v3183 = vunpack.c.l.b16 %v3055
    %v3184 = vunpack.c.l.b16 %v3056
    %v3185 = vpack.c.b16 %v3122, %v3121
    %v3186 = vpack.c.b16 %v3124, %v3123
    %v3187 = vpack.c.b16 %v3126, %v3125
    %v3188 = vpack.c.b16 %v3128, %v3127
    %v3189 = vpack.c.b16 %v3130, %v3129
    %v3190 = vpack.c.b16 %v3132, %v3131
    %v3191 = vpack.c.b16 %v3134, %v3133
    %v3192 = vpack.c.b16 %v3136, %v3135
    %v3193 = vpack.c.b16 %v3138, %v3137
    %v3194 = vpack.c.b16 %v3140, %v3139
    %v3195 = vpack.c.b16 %v3142, %v3141
    %v3196 = vpack.c.b16 %v3144, %v3143
    %v3197 = vpack.c.b16 %v3146, %v3145
    %v3198 = vpack.c.b16 %v3148, %v3147
    %v3199 = vpack.c.b16 %v3150, %v3149
    %v3200 = vpack.c.b16 %v3152, %v3151
    %v3201 = vpack.c.b16 %v3154, %v3153
    %v3202 = vpack.c.b16 %v3156, %v3155
    %v3203 = vpack.c.b16 %v3158, %v3157
    %v3204 = vpack.c.b16 %v3160, %v3159
    %v3205 = vpack.c.b16 %v3162, %v3161
    %v3206 = vpack.c.b16 %v3164, %v3163
    %v3207 = vpack.c.b16 %v3166, %v3165
    %v3208 = vpack.c.b16 %v3168, %v3167
    %v3209 = vpack.c.b16 %v3170, %v3169
    %v3210 = vpack.c.b16 %v3172, %v3171
    %v3211 = vpack.c.b16 %v3174, %v3173
    %v3212 = vpack.c.b16 %v3176, %v3175
    %v3213 = vpack.c.b16 %v3178, %v3177
    %v3214 = vpack.c.b16 %v3180, %v3179
    %v3215 = vpack.c.b16 %v3182, %v3181
    %v3216 = vpack.c.b16 %v3184, %v3183
    %3249 = vmatpush.bf16.msra.mxu0 %v3192
    %3250 = vmatpush.bf16.msra.mxu0 %v3191
    %3251 = vmatpush.bf16.msra.mxu0 %v3190
    %3252 = vmatpush.bf16.msra.mxu0 %v3189
    %3253 = vmatpush.bf16.msra.mxu0 %v3188
    %3254 = vmatpush.bf16.msra.mxu0 %v3187
    %3255 = vmatpush.bf16.msra.mxu0 %v3186
    %3256 = vmatpush.bf16.msra.mxu0 %v3185
    %3257 = vmatmul.bf16.gmra.mxu0 %v2989
    %v3258 = vpop.f32.mrf.mxu0
    %v3259 = vadd.f32 0.0, %v3258
    %v3260 = vpop.f32.mrf.mxu0
    %v3261 = vadd.f32 0.0, %v3260
    %3262 = vdwg.mxu0
    %3263 = vmatpush.bf16.msra.mxu0 %v3200
    %3264 = vmatpush.bf16.msra.mxu0 %v3199
    %3265 = vmatpush.bf16.msra.mxu0 %v3198
    %3266 = vmatpush.bf16.msra.mxu0 %v3197
    %3267 = vmatpush.bf16.msra.mxu0 %v3196
    %3268 = vmatpush.bf16.msra.mxu0 %v3195
    %3269 = vmatpush.bf16.msra.mxu0 %v3194
    %3270 = vmatpush.bf16.msra.mxu0 %v3193
    %3271 = vmatmul.bf16.gmra.mxu0 %v2990
    %v3272 = vpop.f32.mrf.mxu0
    %v3273 = vadd.f32 %v3259, %v3272
    %v3274 = vpop.f32.mrf.mxu0
    %v3275 = vadd.f32 %v3261, %v3274
    %3276 = vdwg.mxu0
    %3277 = vmatpush.bf16.msra.mxu0 %v3208
    %3278 = vmatpush.bf16.msra.mxu0 %v3207
    %3279 = vmatpush.bf16.msra.mxu0 %v3206
    %3280 = vmatpush.bf16.msra.mxu0 %v3205
    %3281 = vmatpush.bf16.msra.mxu0 %v3204
    %3282 = vmatpush.bf16.msra.mxu0 %v3203
    %3283 = vmatpush.bf16.msra.mxu0 %v3202
    %3284 = vmatpush.bf16.msra.mxu0 %v3201
    %3285 = vmatmul.bf16.gmra.mxu0 %v2991
    %v3286 = vpop.f32.mrf.mxu0
    %v3287 = vadd.f32 %v3273, %v3286
    %v3288 = vpop.f32.mrf.mxu0
    %v3289 = vadd.f32 %v3275, %v3288
    %3290 = vdwg.mxu0
    %3291 = vmatpush.bf16.msra.mxu0 %v3216
    %3292 = vmatpush.bf16.msra.mxu0 %v3215
    %3293 = vmatpush.bf16.msra.mxu0 %v3214
    %3294 = vmatpush.bf16.msra.mxu0 %v3213
    %3295 = vmatpush.bf16.msra.mxu0 %v3212
    %3296 = vmatpush.bf16.msra.mxu0 %v3211
    %3297 = vmatpush.bf16.msra.mxu0 %v3210
    %3298 = vmatpush.bf16.msra.mxu0 %v3209
    %3299 = vmatmul.bf16.gmra.mxu0 %v2992
    %v3300 = vpop.f32.mrf.mxu0
    %v3301 = vadd.f32 %v3287, %v3300
    %v3302 = vpop.f32.mrf.mxu0
    %v3303 = vadd.f32 %v3289, %v3302
    %3304 = vdwg.mxu0
    %v3369 = vunpack.c.l.b16 %v2802
    %v3370 = vunpack.c.l.b16 %v2803
    %v3371 = vunpack.c.l.b16 %v2804
    %v3372 = vunpack.c.l.b16 %v2805
    %v3373 = vunpack.c.l.b16 %v2806
    %v3374 = vunpack.c.l.b16 %v2807
    %v3375 = vunpack.c.l.b16 %v2808
    %v3376 = vunpack.c.l.b16 %v2809
    %v3377 = vunpack.c.l.b16 %v2810
    %v3378 = vunpack.c.l.b16 %v2811
    %v3379 = vunpack.c.l.b16 %v2812
    %v3380 = vunpack.c.l.b16 %v2813
    %v3381 = vunpack.c.l.b16 %v2814
    %v3382 = vunpack.c.l.b16 %v2815
    %v3383 = vunpack.c.l.b16 %v2816
    %v3384 = vunpack.c.l.b16 %v2817
    %v3385 = vunpack.c.l.b16 %v2818
    %v3386 = vunpack.c.l.b16 %v2819
    %v3387 = vunpack.c.l.b16 %v2820
    %v3388 = vunpack.c.l.b16 %v2821
    %v3389 = vunpack.c.l.b16 %v2822
    %v3390 = vunpack.c.l.b16 %v2823
    %v3391 = vunpack.c.l.b16 %v2824
    %v3392 = vunpack.c.l.b16 %v2825
    %v3393 = vunpack.c.l.b16 %v2826
    %v3394 = vunpack.c.l.b16 %v2827
    %v3395 = vunpack.c.l.b16 %v2828
    %v3396 = vunpack.c.l.b16 %v2829
    %v3397 = vunpack.c.l.b16 %v2830
    %v3398 = vunpack.c.l.b16 %v2831
    %v3399 = vunpack.c.l.b16 %v2832
    %v3400 = vunpack.c.l.b16 %v2833
    %v3401 = vunpack.c.l.b16 %v2834
    %v3402 = vunpack.c.l.b16 %v2835
    %v3403 = vunpack.c.l.b16 %v2836
    %v3404 = vunpack.c.l.b16 %v2837
    %v3405 = vunpack.c.l.b16 %v2838
    %v3406 = vunpack.c.l.b16 %v2839
    %v3407 = vunpack.c.l.b16 %v2840
    %v3408 = vunpack.c.l.b16 %v2841
    %v3409 = vunpack.c.l.b16 %v2842
    %v3410 = vunpack.c.l.b16 %v2843
    %v3411 = vunpack.c.l.b16 %v2844
    %v3412 = vunpack.c.l.b16 %v2845
    %v3413 = vunpack.c.l.b16 %v2846
    %v3414 = vunpack.c.l.b16 %v2847
    %v3415 = vunpack.c.l.b16 %v2848
    %v3416 = vunpack.c.l.b16 %v2849
    %v3417 = vunpack.c.l.b16 %v2850
    %v3418 = vunpack.c.l.b16 %v2851
    %v3419 = vunpack.c.l.b16 %v2852
    %v3420 = vunpack.c.l.b16 %v2853
    %v3421 = vunpack.c.l.b16 %v2854
    %v3422 = vunpack.c.l.b16 %v2855
    %v3423 = vunpack.c.l.b16 %v2856
    %v3424 = vunpack.c.l.b16 %v2857
    %v3425 = vunpack.c.l.b16 %v2858
    %v3426 = vunpack.c.l.b16 %v2859
    %v3427 = vunpack.c.l.b16 %v2860
    %v3428 = vunpack.c.l.b16 %v2861
    %v3429 = vunpack.c.l.b16 %v2862
    %v3430 = vunpack.c.l.b16 %v2863
    %v3431 = vunpack.c.l.b16 %v2864
    %v3432 = vunpack.c.l.b16 %v2865
    %v3433 = vpack.c.b16 %v3370, %v3369
    %v3434 = vpack.c.b16 %v3372, %v3371
    %v3435 = vpack.c.b16 %v3374, %v3373
    %v3436 = vpack.c.b16 %v3376, %v3375
    %v3437 = vpack.c.b16 %v3378, %v3377
    %v3438 = vpack.c.b16 %v3380, %v3379
    %v3439 = vpack.c.b16 %v3382, %v3381
    %v3440 = vpack.c.b16 %v3384, %v3383
    %v3441 = vpack.c.b16 %v3386, %v3385
    %v3442 = vpack.c.b16 %v3388, %v3387
    %v3443 = vpack.c.b16 %v3390, %v3389
    %v3444 = vpack.c.b16 %v3392, %v3391
    %v3445 = vpack.c.b16 %v3394, %v3393
    %v3446 = vpack.c.b16 %v3396, %v3395
    %v3447 = vpack.c.b16 %v3398, %v3397
    %v3448 = vpack.c.b16 %v3400, %v3399
    %v3449 = vpack.c.b16 %v3402, %v3401
    %v3450 = vpack.c.b16 %v3404, %v3403
    %v3451 = vpack.c.b16 %v3406, %v3405
    %v3452 = vpack.c.b16 %v3408, %v3407
    %v3453 = vpack.c.b16 %v3410, %v3409
    %v3454 = vpack.c.b16 %v3412, %v3411
    %v3455 = vpack.c.b16 %v3414, %v3413
    %v3456 = vpack.c.b16 %v3416, %v3415
    %v3457 = vpack.c.b16 %v3418, %v3417
    %v3458 = vpack.c.b16 %v3420, %v3419
    %v3459 = vpack.c.b16 %v3422, %v3421
    %v3460 = vpack.c.b16 %v3424, %v3423
    %v3461 = vpack.c.b16 %v3426, %v3425
    %v3462 = vpack.c.b16 %v3428, %v3427
    %v3463 = vpack.c.b16 %v3430, %v3429
    %v3464 = vpack.c.b16 %v3432, %v3431
    %3497 = vmatpush.bf16.msra.mxu0 %v3440
    %3498 = vmatpush.bf16.msra.mxu0 %v3439
    %3499 = vmatpush.bf16.msra.mxu0 %v3438
    %3500 = vmatpush.bf16.msra.mxu0 %v3437
    %3501 = vmatpush.bf16.msra.mxu0 %v3436
    %3502 = vmatpush.bf16.msra.mxu0 %v3435
    %3503 = vmatpush.bf16.msra.mxu0 %v3434
    %3504 = vmatpush.bf16.msra.mxu0 %v3433
    %3505 = vmatmul.bf16.gmra.mxu0 %v2797
    %v3506 = vpop.f32.mrf.mxu0
    %v3507 = vadd.f32 %v3301, %v3506
    %v3508 = vpop.f32.mrf.mxu0
    %v3509 = vadd.f32 %v3303, %v3508
    %3510 = vdwg.mxu0
    %3511 = vmatpush.bf16.msra.mxu0 %v3448
    %3512 = vmatpush.bf16.msra.mxu0 %v3447
    %3513 = vmatpush.bf16.msra.mxu0 %v3446
    %3514 = vmatpush.bf16.msra.mxu0 %v3445
    %3515 = vmatpush.bf16.msra.mxu0 %v3444
    %3516 = vmatpush.bf16.msra.mxu0 %v3443
    %3517 = vmatpush.bf16.msra.mxu0 %v3442
    %3518 = vmatpush.bf16.msra.mxu0 %v3441
    %3519 = vmatmul.bf16.gmra.mxu0 %v2798
    %v3520 = vpop.f32.mrf.mxu0
    %v3521 = vadd.f32 %v3507, %v3520
    %v3522 = vpop.f32.mrf.mxu0
    %v3523 = vadd.f32 %v3509, %v3522
    %3524 = vdwg.mxu0
    %3525 = vmatpush.bf16.msra.mxu0 %v3456
    %3526 = vmatpush.bf16.msra.mxu0 %v3455
    %3527 = vmatpush.bf16.msra.mxu0 %v3454
    %3528 = vmatpush.bf16.msra.mxu0 %v3453
    %3529 = vmatpush.bf16.msra.mxu0 %v3452
    %3530 = vmatpush.bf16.msra.mxu0 %v3451
    %3531 = vmatpush.bf16.msra.mxu0 %v3450
    %3532 = vmatpush.bf16.msra.mxu0 %v3449
    %3533 = vmatmul.bf16.gmra.mxu0 %v2799
    %v3534 = vpop.f32.mrf.mxu0
    %v3535 = vadd.f32 %v3521, %v3534
    %v3536 = vpop.f32.mrf.mxu0
    %v3537 = vadd.f32 %v3523, %v3536
    %3538 = vdwg.mxu0
    %3539 = vmatpush.bf16.msra.mxu0 %v3464
    %3540 = vmatpush.bf16.msra.mxu0 %v3463
    %3541 = vmatpush.bf16.msra.mxu0 %v3462
    %3542 = vmatpush.bf16.msra.mxu0 %v3461
    %3543 = vmatpush.bf16.msra.mxu0 %v3460
    %3544 = vmatpush.bf16.msra.mxu0 %v3459
    %3545 = vmatpush.bf16.msra.mxu0 %v3458
    %3546 = vmatpush.bf16.msra.mxu0 %v3457
    %3547 = vmatmul.bf16.gmra.mxu0 %v2800
    %v3548 = vpop.f32.mrf.mxu0
    %v3549 = vadd.f32 %v3535, %v3548
    %v3550 = vpop.f32.mrf.mxu0
    %v3551 = vadd.f32 %v3537, %v3550
    %3552 = vdwg.mxu0
    %v3553 = vld [vmem:[%s2670 + $0x20] sm:$0xff]
    %v3554 = vld [vmem:[%s2670 + $0x28] sm:$0xff]
    %v3555 = vld [vmem:[%s2670 + $0x60] sm:$0xff]
    %v3556 = vld [vmem:[%s2670 + $0x68] sm:$0xff]
    %v3557 = vld [vmem:[%s2670 + $0xa0] sm:$0xff]
    %v3558 = vld [vmem:[%s2670 + $0xa8] sm:$0xff]
    %v3559 = vld [vmem:[%s2670 + $0xe0] sm:$0xff]
    %v3560 = vld [vmem:[%s2670 + $0xe8] sm:$0xff]
    %s3561 = scalar_lea.vmem %s3, 17
    %v3562 = vld [vmem:[%s3561] ss:$2 sm:$0xf]
    %v3564 = vperm.slane %v3562, 0
    %v3565 = vperm.slane %v3562, 1
    %v3566 = vperm.slane %v3562, 2
    %v3567 = vperm.slane %v3562, 3
    %v3580 = vunpack.c.l.b16 %v3553
    %v3581 = vunpack.c.h.b16 %v3553
    %v3582 = vunpack.c.l.b16 %v3554
    %v3583 = vunpack.c.h.b16 %v3554
    %v3584 = vunpack.c.l.b16 %v3555
    %v3585 = vunpack.c.h.b16 %v3555
    %v3586 = vunpack.c.l.b16 %v3556
    %v3587 = vunpack.c.h.b16 %v3556
    %v3588 = vunpack.c.l.b16 %v3557
    %v3589 = vunpack.c.h.b16 %v3557
    %v3590 = vunpack.c.l.b16 %v3558
    %v3591 = vunpack.c.h.b16 %v3558
    %v3592 = vunpack.c.l.b16 %v3559
    %v3593 = vunpack.c.h.b16 %v3559
    %v3594 = vunpack.c.l.b16 %v3560
    %v3595 = vunpack.c.h.b16 %v3560
    %v3596 = vpack.c.b16 %v3584, %v3580
    %v3597 = vpack.c.b16 %v3585, %v3581
    %v3598 = vpack.c.b16 %v3586, %v3582
    %v3599 = vpack.c.b16 %v3587, %v3583
    %v3600 = vpack.c.b16 %v3592, %v3588
    %v3601 = vpack.c.b16 %v3593, %v3589
    %v3602 = vpack.c.b16 %v3594, %v3590
    %v3603 = vpack.c.b16 %v3595, %v3591
    %3612 = vmatpush.bf16.msra.mxu0 0
    %3613 = vmatpush.bf16.msra.mxu0 0
    %3614 = vmatpush.bf16.msra.mxu0 0
    %3615 = vmatpush.bf16.msra.mxu0 0
    %3616 = vmatpush.bf16.msra.mxu0 0
    %3617 = vmatpush.bf16.msra.mxu0 0
    %3618 = vmatpush.bf16.msra.mxu0 %v3600
    %3619 = vmatpush.bf16.msra.mxu0 %v3596
    %3620 = vmatmul.bf16.gmra.mxu0 %v2731
    %v3621 = vpop.f32.mrf.mxu0
    %v3622 = vadd.f32 %v3564, %v3621
    %v3623 = vpop.f32.mrf.mxu0
    %v3624 = vadd.f32 %v3564, %v3623
    %3625 = vdwg.mxu0
    %3626 = vmatpush.bf16.msra.mxu0 0
    %3627 = vmatpush.bf16.msra.mxu0 0
    %3628 = vmatpush.bf16.msra.mxu0 0
    %3629 = vmatpush.bf16.msra.mxu0 0
    %3630 = vmatpush.bf16.msra.mxu0 0
    %3631 = vmatpush.bf16.msra.mxu0 0
    %3632 = vmatpush.bf16.msra.mxu0 %v3601
    %3633 = vmatpush.bf16.msra.mxu0 %v3597
    %3634 = vmatmul.bf16.gmra.mxu0 %v2731
    %v3635 = vpop.f32.mrf.mxu0
    %v3636 = vadd.f32 %v3565, %v3635
    %v3637 = vpop.f32.mrf.mxu0
    %v3638 = vadd.f32 %v3565, %v3637
    %3639 = vdwg.mxu0
    %3640 = vmatpush.bf16.msra.mxu0 0
    %3641 = vmatpush.bf16.msra.mxu0 0
    %3642 = vmatpush.bf16.msra.mxu0 0
    %3643 = vmatpush.bf16.msra.mxu0 0
    %3644 = vmatpush.bf16.msra.mxu0 0
    %3645 = vmatpush.bf16.msra.mxu0 0
    %3646 = vmatpush.bf16.msra.mxu0 %v3602
    %3647 = vmatpush.bf16.msra.mxu0 %v3598
    %3648 = vmatmul.bf16.gmra.mxu0 %v2731
    %v3649 = vpop.f32.mrf.mxu0
    %v3650 = vadd.f32 %v3566, %v3649
    %v3651 = vpop.f32.mrf.mxu0
    %v3652 = vadd.f32 %v3566, %v3651
    %3653 = vdwg.mxu0
    %3654 = vmatpush.bf16.msra.mxu0 0
    %3655 = vmatpush.bf16.msra.mxu0 0
    %3656 = vmatpush.bf16.msra.mxu0 0
    %3657 = vmatpush.bf16.msra.mxu0 0
    %3658 = vmatpush.bf16.msra.mxu0 0
    %3659 = vmatpush.bf16.msra.mxu0 0
    %3660 = vmatpush.bf16.msra.mxu0 %v3603
    %3661 = vmatpush.bf16.msra.mxu0 %v3599
    %3662 = vmatmul.bf16.gmra.mxu0 %v2731
    %v3663 = vpop.f32.mrf.mxu0
    %v3664 = vadd.f32 %v3567, %v3663
    %v3665 = vpop.f32.mrf.mxu0
    %v3666 = vadd.f32 %v3567, %v3665
    %3667 = vdwg.mxu0
    %v3668 = vmax.f32 %v3622, 0.0
    %v3669 = vmax.f32 %v3636, 0.0
    %v3670 = vmax.f32 %v3650, 0.0
    %v3671 = vmax.f32 %v3664, 0.0
    %v3672 = vmax.f32 %v3624, 0.0
    %v3673 = vmax.f32 %v3638, 0.0
    %v3674 = vmax.f32 %v3652, 0.0
    %v3675 = vmax.f32 %v3666, 0.0
    %v3676 = vpack.c.bf16 %v3672, %v3668
    %v3677 = vpack.c.bf16 %v3673, %v3669
    %v3678 = vpack.c.bf16 %v3674, %v3670
    %v3679 = vpack.c.bf16 %v3675, %v3671
    %v3680 = vld [vmem:[%s2801 + $0x200] sm:$0xf]
    %v3681 = vld [vmem:[%s2801 + $0x204] sm:$0xf]
    %v3682 = vld [vmem:[%s2801 + $0x208] sm:$0xf]
    %v3683 = vld [vmem:[%s2801 + $0x20c] sm:$0xf]
    %v3684 = vld [vmem:[%s2801 + $0x210] sm:$0xf]
    %v3685 = vld [vmem:[%s2801 + $0x214] sm:$0xf]
    %v3686 = vld [vmem:[%s2801 + $0x218] sm:$0xf]
    %v3687 = vld [vmem:[%s2801 + $0x21c] sm:$0xf]
    %v3688 = vld [vmem:[%s2801 + $0x220] sm:$0xf]
    %v3689 = vld [vmem:[%s2801 + $0x224] sm:$0xf]
    %v3690 = vld [vmem:[%s2801 + $0x228] sm:$0xf]
    %v3691 = vld [vmem:[%s2801 + $0x22c] sm:$0xf]
    %v3692 = vld [vmem:[%s2801 + $0x230] sm:$0xf]
    %v3693 = vld [vmem:[%s2801 + $0x234] sm:$0xf]
    %v3694 = vld [vmem:[%s2801 + $0x238] sm:$0xf]
    %v3695 = vld [vmem:[%s2801 + $0x23c] sm:$0xf]
    %v3696 = vld [vmem:[%s2801 + $0x240] sm:$0xf]
    %v3697 = vld [vmem:[%s2801 + $0x244] sm:$0xf]
    %v3698 = vld [vmem:[%s2801 + $0x248] sm:$0xf]
    %v3699 = vld [vmem:[%s2801 + $0x24c] sm:$0xf]
    %v3700 = vld [vmem:[%s2801 + $0x250] sm:$0xf]
    %v3701 = vld [vmem:[%s2801 + $0x254] sm:$0xf]
    %v3702 = vld [vmem:[%s2801 + $0x258] sm:$0xf]
    %v3703 = vld [vmem:[%s2801 + $0x25c] sm:$0xf]
    %v3704 = vld [vmem:[%s2801 + $0x260] sm:$0xf]
    %v3705 = vld [vmem:[%s2801 + $0x264] sm:$0xf]
    %v3706 = vld [vmem:[%s2801 + $0x268] sm:$0xf]
    %v3707 = vld [vmem:[%s2801 + $0x26c] sm:$0xf]
    %v3708 = vld [vmem:[%s2801 + $0x270] sm:$0xf]
    %v3709 = vld [vmem:[%s2801 + $0x274] sm:$0xf]
    %v3710 = vld [vmem:[%s2801 + $0x278] sm:$0xf]
    %v3711 = vld [vmem:[%s2801 + $0x27c] sm:$0xf]
    %v3712 = vld [vmem:[%s2801 + $0x280] sm:$0xf]
    %v3713 = vld [vmem:[%s2801 + $0x284] sm:$0xf]
    %v3714 = vld [vmem:[%s2801 + $0x288] sm:$0xf]
    %v3715 = vld [vmem:[%s2801 + $0x28c] sm:$0xf]
    %v3716 = vld [vmem:[%s2801 + $0x290] sm:$0xf]
    %v3717 = vld [vmem:[%s2801 + $0x294] sm:$0xf]
    %v3718 = vld [vmem:[%s2801 + $0x298] sm:$0xf]
    %v3719 = vld [vmem:[%s2801 + $0x29c] sm:$0xf]
    %v3720 = vld [vmem:[%s2801 + $0x2a0] sm:$0xf]
    %v3721 = vld [vmem:[%s2801 + $0x2a4] sm:$0xf]
    %v3722 = vld [vmem:[%s2801 + $0x2a8] sm:$0xf]
    %v3723 = vld [vmem:[%s2801 + $0x2ac] sm:$0xf]
    %v3724 = vld [vmem:[%s2801 + $0x2b0] sm:$0xf]
    %v3725 = vld [vmem:[%s2801 + $0x2b4] sm:$0xf]
    %v3726 = vld [vmem:[%s2801 + $0x2b8] sm:$0xf]
    %v3727 = vld [vmem:[%s2801 + $0x2bc] sm:$0xf]
    %v3728 = vld [vmem:[%s2801 + $0x2c0] sm:$0xf]
    %v3729 = vld [vmem:[%s2801 + $0x2c4] sm:$0xf]
    %v3730 = vld [vmem:[%s2801 + $0x2c8] sm:$0xf]
    %v3731 = vld [vmem:[%s2801 + $0x2cc] sm:$0xf]
    %v3732 = vld [vmem:[%s2801 + $0x2d0] sm:$0xf]
    %v3733 = vld [vmem:[%s2801 + $0x2d4] sm:$0xf]
    %v3734 = vld [vmem:[%s2801 + $0x2d8] sm:$0xf]
    %v3735 = vld [vmem:[%s2801 + $0x2dc] sm:$0xf]
    %v3736 = vld [vmem:[%s2801 + $0x2e0] sm:$0xf]
    %v3737 = vld [vmem:[%s2801 + $0x2e4] sm:$0xf]
    %v3738 = vld [vmem:[%s2801 + $0x2e8] sm:$0xf]
    %v3739 = vld [vmem:[%s2801 + $0x2ec] sm:$0xf]
    %v3740 = vld [vmem:[%s2801 + $0x2f0] sm:$0xf]
    %v3741 = vld [vmem:[%s2801 + $0x2f4] sm:$0xf]
    %v3742 = vld [vmem:[%s2801 + $0x2f8] sm:$0xf]
    %v3743 = vld [vmem:[%s2801 + $0x2fc] sm:$0xf]
    %v3808 = vunpack.c.l.b16 %v3680
    %v3809 = vunpack.c.l.b16 %v3681
    %v3810 = vunpack.c.l.b16 %v3682
    %v3811 = vunpack.c.l.b16 %v3683
    %v3812 = vunpack.c.l.b16 %v3684
    %v3813 = vunpack.c.l.b16 %v3685
    %v3814 = vunpack.c.l.b16 %v3686
    %v3815 = vunpack.c.l.b16 %v3687
    %v3816 = vunpack.c.l.b16 %v3688
    %v3817 = vunpack.c.l.b16 %v3689
    %v3818 = vunpack.c.l.b16 %v3690
    %v3819 = vunpack.c.l.b16 %v3691
    %v3820 = vunpack.c.l.b16 %v3692
    %v3821 = vunpack.c.l.b16 %v3693
    %v3822 = vunpack.c.l.b16 %v3694
    %v3823 = vunpack.c.l.b16 %v3695
    %v3824 = vunpack.c.l.b16 %v3696
    %v3825 = vunpack.c.l.b16 %v3697
    %v3826 = vunpack.c.l.b16 %v3698
    %v3827 = vunpack.c.l.b16 %v3699
    %v3828 = vunpack.c.l.b16 %v3700
    %v3829 = vunpack.c.l.b16 %v3701
    %v3830 = vunpack.c.l.b16 %v3702
    %v3831 = vunpack.c.l.b16 %v3703
    %v3832 = vunpack.c.l.b16 %v3704
    %v3833 = vunpack.c.l.b16 %v3705
    %v3834 = vunpack.c.l.b16 %v3706
    %v3835 = vunpack.c.l.b16 %v3707
    %v3836 = vunpack.c.l.b16 %v3708
    %v3837 = vunpack.c.l.b16 %v3709
    %v3838 = vunpack.c.l.b16 %v3710
    %v3839 = vunpack.c.l.b16 %v3711
    %v3840 = vunpack.c.l.b16 %v3712
    %v3841 = vunpack.c.l.b16 %v3713
    %v3842 = vunpack.c.l.b16 %v3714
    %v3843 = vunpack.c.l.b16 %v3715
    %v3844 = vunpack.c.l.b16 %v3716
    %v3845 = vunpack.c.l.b16 %v3717
    %v3846 = vunpack.c.l.b16 %v3718
    %v3847 = vunpack.c.l.b16 %v3719
    %v3848 = vunpack.c.l.b16 %v3720
    %v3849 = vunpack.c.l.b16 %v3721
    %v3850 = vunpack.c.l.b16 %v3722
    %v3851 = vunpack.c.l.b16 %v3723
    %v3852 = vunpack.c.l.b16 %v3724
    %v3853 = vunpack.c.l.b16 %v3725
    %v3854 = vunpack.c.l.b16 %v3726
    %v3855 = vunpack.c.l.b16 %v3727
    %v3856 = vunpack.c.l.b16 %v3728
    %v3857 = vunpack.c.l.b16 %v3729
    %v3858 = vunpack.c.l.b16 %v3730
    %v3859 = vunpack.c.l.b16 %v3731
    %v3860 = vunpack.c.l.b16 %v3732
    %v3861 = vunpack.c.l.b16 %v3733
    %v3862 = vunpack.c.l.b16 %v3734
    %v3863 = vunpack.c.l.b16 %v3735
    %v3864 = vunpack.c.l.b16 %v3736
    %v3865 = vunpack.c.l.b16 %v3737
    %v3866 = vunpack.c.l.b16 %v3738
    %v3867 = vunpack.c.l.b16 %v3739
    %v3868 = vunpack.c.l.b16 %v3740
    %v3869 = vunpack.c.l.b16 %v3741
    %v3870 = vunpack.c.l.b16 %v3742
    %v3871 = vunpack.c.l.b16 %v3743
    %v3872 = vpack.c.b16 %v3809, %v3808
    %v3873 = vpack.c.b16 %v3811, %v3810
    %v3874 = vpack.c.b16 %v3813, %v3812
    %v3875 = vpack.c.b16 %v3815, %v3814
    %v3876 = vpack.c.b16 %v3817, %v3816
    %v3877 = vpack.c.b16 %v3819, %v3818
    %v3878 = vpack.c.b16 %v3821, %v3820
    %v3879 = vpack.c.b16 %v3823, %v3822
    %v3880 = vpack.c.b16 %v3825, %v3824
    %v3881 = vpack.c.b16 %v3827, %v3826
    %v3882 = vpack.c.b16 %v3829, %v3828
    %v3883 = vpack.c.b16 %v3831, %v3830
    %v3884 = vpack.c.b16 %v3833, %v3832
    %v3885 = vpack.c.b16 %v3835, %v3834
    %v3886 = vpack.c.b16 %v3837, %v3836
    %v3887 = vpack.c.b16 %v3839, %v3838
    %v3888 = vpack.c.b16 %v3841, %v3840
    %v3889 = vpack.c.b16 %v3843, %v3842
    %v3890 = vpack.c.b16 %v3845, %v3844
    %v3891 = vpack.c.b16 %v3847, %v3846
    %v3892 = vpack.c.b16 %v3849, %v3848
    %v3893 = vpack.c.b16 %v3851, %v3850
    %v3894 = vpack.c.b16 %v3853, %v3852
    %v3895 = vpack.c.b16 %v3855, %v3854
    %v3896 = vpack.c.b16 %v3857, %v3856
    %v3897 = vpack.c.b16 %v3859, %v3858
    %v3898 = vpack.c.b16 %v3861, %v3860
    %v3899 = vpack.c.b16 %v3863, %v3862
    %v3900 = vpack.c.b16 %v3865, %v3864
    %v3901 = vpack.c.b16 %v3867, %v3866
    %v3902 = vpack.c.b16 %v3869, %v3868
    %v3903 = vpack.c.b16 %v3871, %v3870
    %3936 = vmatpush.bf16.msra.mxu0 %v3879
    %3937 = vmatpush.bf16.msra.mxu0 %v3878
    %3938 = vmatpush.bf16.msra.mxu0 %v3877
    %3939 = vmatpush.bf16.msra.mxu0 %v3876
    %3940 = vmatpush.bf16.msra.mxu0 %v3875
    %3941 = vmatpush.bf16.msra.mxu0 %v3874
    %3942 = vmatpush.bf16.msra.mxu0 %v3873
    %3943 = vmatpush.bf16.msra.mxu0 %v3872
    %3944 = vmatmul.bf16.gmra.mxu0 %v3676
    %v3945 = vpop.f32.mrf.mxu0
    %v3946 = vadd.f32 0.0, %v3945
    %v3947 = vpop.f32.mrf.mxu0
    %v3948 = vadd.f32 0.0, %v3947
    %3949 = vdwg.mxu0
    %3950 = vmatpush.bf16.msra.mxu0 %v3887
    %3951 = vmatpush.bf16.msra.mxu0 %v3886
    %3952 = vmatpush.bf16.msra.mxu0 %v3885
    %3953 = vmatpush.bf16.msra.mxu0 %v3884
    %3954 = vmatpush.bf16.msra.mxu0 %v3883
    %3955 = vmatpush.bf16.msra.mxu0 %v3882
    %3956 = vmatpush.bf16.msra.mxu0 %v3881
    %3957 = vmatpush.bf16.msra.mxu0 %v3880
    %3958 = vmatmul.bf16.gmra.mxu0 %v3677
    %v3959 = vpop.f32.mrf.mxu0
    %v3960 = vadd.f32 %v3946, %v3959
    %v3961 = vpop.f32.mrf.mxu0
    %v3962 = vadd.f32 %v3948, %v3961
    %3963 = vdwg.mxu0
    %3964 = vmatpush.bf16.msra.mxu0 %v3895
    %3965 = vmatpush.bf16.msra.mxu0 %v3894
    %3966 = vmatpush.bf16.msra.mxu0 %v3893
    %3967 = vmatpush.bf16.msra.mxu0 %v3892
    %3968 = vmatpush.bf16.msra.mxu0 %v3891
    %3969 = vmatpush.bf16.msra.mxu0 %v3890
    %3970 = vmatpush.bf16.msra.mxu0 %v3889
    %3971 = vmatpush.bf16.msra.mxu0 %v3888
    %3972 = vmatmul.bf16.gmra.mxu0 %v3678
    %v3973 = vpop.f32.mrf.mxu0
    %v3974 = vadd.f32 %v3960, %v3973
    %v3975 = vpop.f32.mrf.mxu0
    %v3976 = vadd.f32 %v3962, %v3975
    %3977 = vdwg.mxu0
    %3978 = vmatpush.bf16.msra.mxu0 %v3903
    %3979 = vmatpush.bf16.msra.mxu0 %v3902
    %3980 = vmatpush.bf16.msra.mxu0 %v3901
    %3981 = vmatpush.bf16.msra.mxu0 %v3900
    %3982 = vmatpush.bf16.msra.mxu0 %v3899
    %3983 = vmatpush.bf16.msra.mxu0 %v3898
    %3984 = vmatpush.bf16.msra.mxu0 %v3897
    %3985 = vmatpush.bf16.msra.mxu0 %v3896
    %3986 = vmatmul.bf16.gmra.mxu0 %v3679
    %v3987 = vpop.f32.mrf.mxu0
    %v3988 = vadd.f32 %v3974, %v3987
    %v3989 = vpop.f32.mrf.mxu0
    %v3990 = vadd.f32 %v3976, %v3989
    %3991 = vdwg.mxu0
    %v3992 = vadd.f32 %v3549, %v3988
    %v3993 = vadd.f32 %v3551, %v3990
    %v3994 = vld [vmem:[%s2670 + $0x30] sm:$0xff]
    %v3995 = vld [vmem:[%s2670 + $0x38] sm:$0xff]
    %v3996 = vld [vmem:[%s2670 + $0x70] sm:$0xff]
    %v3997 = vld [vmem:[%s2670 + $0x78] sm:$0xff]
    %v3998 = vld [vmem:[%s2670 + $0xb0] sm:$0xff]
    %v3999 = vld [vmem:[%s2670 + $0xb8] sm:$0xff]
    %v4000 = vld [vmem:[%s2670 + $0xf0] sm:$0xff]
    %v4001 = vld [vmem:[%s2670 + $0xf8] sm:$0xff]
    %s4002 = scalar_lea.vmem %s3, 25
    %v4003 = vld [vmem:[%s4002] ss:$2 sm:$0xf]
    %v4005 = vperm.slane %v4003, 0
    %v4006 = vperm.slane %v4003, 1
    %v4007 = vperm.slane %v4003, 2
    %v4008 = vperm.slane %v4003, 3
    %v4021 = vunpack.c.l.b16 %v3994
    %v4022 = vunpack.c.h.b16 %v3994
    %v4023 = vunpack.c.l.b16 %v3995
    %v4024 = vunpack.c.h.b16 %v3995
    %v4025 = vunpack.c.l.b16 %v3996
    %v4026 = vunpack.c.h.b16 %v3996
    %v4027 = vunpack.c.l.b16 %v3997
    %v4028 = vunpack.c.h.b16 %v3997
    %v4029 = vunpack.c.l.b16 %v3998
    %v4030 = vunpack.c.h.b16 %v3998
    %v4031 = vunpack.c.l.b16 %v3999
    %v4032 = vunpack.c.h.b16 %v3999
    %v4033 = vunpack.c.l.b16 %v4000
    %v4034 = vunpack.c.h.b16 %v4000
    %v4035 = vunpack.c.l.b16 %v4001
    %v4036 = vunpack.c.h.b16 %v4001
    %v4037 = vpack.c.b16 %v4025, %v4021
    %v4038 = vpack.c.b16 %v4026, %v4022
    %v4039 = vpack.c.b16 %v4027, %v4023
    %v4040 = vpack.c.b16 %v4028, %v4024
    %v4041 = vpack.c.b16 %v4033, %v4029
    %v4042 = vpack.c.b16 %v4034, %v4030
    %v4043 = vpack.c.b16 %v4035, %v4031
    %v4044 = vpack.c.b16 %v4036, %v4032
    %4053 = vmatpush.bf16.msra.mxu0 0
    %4054 = vmatpush.bf16.msra.mxu0 0
    %4055 = vmatpush.bf16.msra.mxu0 0
    %4056 = vmatpush.bf16.msra.mxu0 0
    %4057 = vmatpush.bf16.msra.mxu0 0
    %4058 = vmatpush.bf16.msra.mxu0 0
    %4059 = vmatpush.bf16.msra.mxu0 %v4041
    %4060 = vmatpush.bf16.msra.mxu0 %v4037
    %4061 = vmatmul.bf16.gmra.mxu0 %v2731
    %v4062 = vpop.f32.mrf.mxu0
    %v4063 = vadd.f32 %v4005, %v4062
    %v4064 = vpop.f32.mrf.mxu0
    %v4065 = vadd.f32 %v4005, %v4064
    %4066 = vdwg.mxu0
    %4067 = vmatpush.bf16.msra.mxu0 0
    %4068 = vmatpush.bf16.msra.mxu0 0
    %4069 = vmatpush.bf16.msra.mxu0 0
    %4070 = vmatpush.bf16.msra.mxu0 0
    %4071 = vmatpush.bf16.msra.mxu0 0
    %4072 = vmatpush.bf16.msra.mxu0 0
    %4073 = vmatpush.bf16.msra.mxu0 %v4042
    %4074 = vmatpush.bf16.msra.mxu0 %v4038
    %4075 = vmatmul.bf16.gmra.mxu0 %v2731
    %v4076 = vpop.f32.mrf.mxu0
    %v4077 = vadd.f32 %v4006, %v4076
    %v4078 = vpop.f32.mrf.mxu0
    %v4079 = vadd.f32 %v4006, %v4078
    %4080 = vdwg.mxu0
    %4081 = vmatpush.bf16.msra.mxu0 0
    %4082 = vmatpush.bf16.msra.mxu0 0
    %4083 = vmatpush.bf16.msra.mxu0 0
    %4084 = vmatpush.bf16.msra.mxu0 0
    %4085 = vmatpush.bf16.msra.mxu0 0
    %4086 = vmatpush.bf16.msra.mxu0 0
    %4087 = vmatpush.bf16.msra.mxu0 %v4043
    %4088 = vmatpush.bf16.msra.mxu0 %v4039
    %4089 = vmatmul.bf16.gmra.mxu0 %v2731
    %v4090 = vpop.f32.mrf.mxu0
    %v4091 = vadd.f32 %v4007, %v4090
    %v4092 = vpop.f32.mrf.mxu0
    %v4093 = vadd.f32 %v4007, %v4092
    %4094 = vdwg.mxu0
    %4095 = vmatpush.bf16.msra.mxu0 0
    %4096 = vmatpush.bf16.msra.mxu0 0
    %4097 = vmatpush.bf16.msra.mxu0 0
    %4098 = vmatpush.bf16.msra.mxu0 0
    %4099 = vmatpush.bf16.msra.mxu0 0
    %4100 = vmatpush.bf16.msra.mxu0 0
    %4101 = vmatpush.bf16.msra.mxu0 %v4044
    %4102 = vmatpush.bf16.msra.mxu0 %v4040
    %4103 = vmatmul.bf16.gmra.mxu0 %v2731
    %v4104 = vpop.f32.mrf.mxu0
    %v4105 = vadd.f32 %v4008, %v4104
    %v4106 = vpop.f32.mrf.mxu0
    %v4107 = vadd.f32 %v4008, %v4106
    %4108 = vdwg.mxu0
    %v4109 = vmax.f32 %v4063, 0.0
    %v4110 = vmax.f32 %v4077, 0.0
    %v4111 = vmax.f32 %v4091, 0.0
    %v4112 = vmax.f32 %v4105, 0.0
    %v4113 = vmax.f32 %v4065, 0.0
    %v4114 = vmax.f32 %v4079, 0.0
    %v4115 = vmax.f32 %v4093, 0.0
    %v4116 = vmax.f32 %v4107, 0.0
    %v4117 = vpack.c.bf16 %v4113, %v4109
    %v4118 = vpack.c.bf16 %v4114, %v4110
    %v4119 = vpack.c.bf16 %v4115, %v4111
    %v4120 = vpack.c.bf16 %v4116, %v4112
    %v4121 = vld [vmem:[%s2801 + $0x300] sm:$0xf]
    %v4122 = vld [vmem:[%s2801 + $0x304] sm:$0xf]
    %v4123 = vld [vmem:[%s2801 + $0x308] sm:$0xf]
    %v4124 = vld [vmem:[%s2801 + $0x30c] sm:$0xf]
    %v4125 = vld [vmem:[%s2801 + $0x310] sm:$0xf]
    %v4126 = vld [vmem:[%s2801 + $0x314] sm:$0xf]
    %v4127 = vld [vmem:[%s2801 + $0x318] sm:$0xf]
    %v4128 = vld [vmem:[%s2801 + $0x31c] sm:$0xf]
    %v4129 = vld [vmem:[%s2801 + $0x320] sm:$0xf]
    %v4130 = vld [vmem:[%s2801 + $0x324] sm:$0xf]
    %v4131 = vld [vmem:[%s2801 + $0x328] sm:$0xf]
    %v4132 = vld [vmem:[%s2801 + $0x32c] sm:$0xf]
    %v4133 = vld [vmem:[%s2801 + $0x330] sm:$0xf]
    %v4134 = vld [vmem:[%s2801 + $0x334] sm:$0xf]
    %v4135 = vld [vmem:[%s2801 + $0x338] sm:$0xf]
    %v4136 = vld [vmem:[%s2801 + $0x33c] sm:$0xf]
    %v4137 = vld [vmem:[%s2801 + $0x340] sm:$0xf]
    %v4138 = vld [vmem:[%s2801 + $0x344] sm:$0xf]
    %v4139 = vld [vmem:[%s2801 + $0x348] sm:$0xf]
    %v4140 = vld [vmem:[%s2801 + $0x34c] sm:$0xf]
    %v4141 = vld [vmem:[%s2801 + $0x350] sm:$0xf]
    %v4142 = vld [vmem:[%s2801 + $0x354] sm:$0xf]
    %v4143 = vld [vmem:[%s2801 + $0x358] sm:$0xf]
    %v4144 = vld [vmem:[%s2801 + $0x35c] sm:$0xf]
    %v4145 = vld [vmem:[%s2801 + $0x360] sm:$0xf]
    %v4146 = vld [vmem:[%s2801 + $0x364] sm:$0xf]
    %v4147 = vld [vmem:[%s2801 + $0x368] sm:$0xf]
    %v4148 = vld [vmem:[%s2801 + $0x36c] sm:$0xf]
    %v4149 = vld [vmem:[%s2801 + $0x370] sm:$0xf]
    %v4150 = vld [vmem:[%s2801 + $0x374] sm:$0xf]
    %v4151 = vld [vmem:[%s2801 + $0x378] sm:$0xf]
    %v4152 = vld [vmem:[%s2801 + $0x37c] sm:$0xf]
    %v4153 = vld [vmem:[%s2801 + $0x380] sm:$0xf]
    %v4154 = vld [vmem:[%s2801 + $0x384] sm:$0xf]
    %v4155 = vld [vmem:[%s2801 + $0x388] sm:$0xf]
    %v4156 = vld [vmem:[%s2801 + $0x38c] sm:$0xf]
    %v4157 = vld [vmem:[%s2801 + $0x390] sm:$0xf]
    %v4158 = vld [vmem:[%s2801 + $0x394] sm:$0xf]
    %v4159 = vld [vmem:[%s2801 + $0x398] sm:$0xf]
    %v4160 = vld [vmem:[%s2801 + $0x39c] sm:$0xf]
    %v4161 = vld [vmem:[%s2801 + $0x3a0] sm:$0xf]
    %v4162 = vld [vmem:[%s2801 + $0x3a4] sm:$0xf]
    %v4163 = vld [vmem:[%s2801 + $0x3a8] sm:$0xf]
    %v4164 = vld [vmem:[%s2801 + $0x3ac] sm:$0xf]
    %v4165 = vld [vmem:[%s2801 + $0x3b0] sm:$0xf]
    %v4166 = vld [vmem:[%s2801 + $0x3b4] sm:$0xf]
    %v4167 = vld [vmem:[%s2801 + $0x3b8] sm:$0xf]
    %v4168 = vld [vmem:[%s2801 + $0x3bc] sm:$0xf]
    %v4169 = vld [vmem:[%s2801 + $0x3c0] sm:$0xf]
    %v4170 = vld [vmem:[%s2801 + $0x3c4] sm:$0xf]
    %v4171 = vld [vmem:[%s2801 + $0x3c8] sm:$0xf]
    %v4172 = vld [vmem:[%s2801 + $0x3cc] sm:$0xf]
    %v4173 = vld [vmem:[%s2801 + $0x3d0] sm:$0xf]
    %v4174 = vld [vmem:[%s2801 + $0x3d4] sm:$0xf]
    %v4175 = vld [vmem:[%s2801 + $0x3d8] sm:$0xf]
    %v4176 = vld [vmem:[%s2801 + $0x3dc] sm:$0xf]
    %v4177 = vld [vmem:[%s2801 + $0x3e0] sm:$0xf]
    %v4178 = vld [vmem:[%s2801 + $0x3e4] sm:$0xf]
    %v4179 = vld [vmem:[%s2801 + $0x3e8] sm:$0xf]
    %v4180 = vld [vmem:[%s2801 + $0x3ec] sm:$0xf]
    %v4181 = vld [vmem:[%s2801 + $0x3f0] sm:$0xf]
    %v4182 = vld [vmem:[%s2801 + $0x3f4] sm:$0xf]
    %v4183 = vld [vmem:[%s2801 + $0x3f8] sm:$0xf]
    %v4184 = vld [vmem:[%s2801 + $0x3fc] sm:$0xf]
    %v4249 = vunpack.c.l.b16 %v4121
    %v4250 = vunpack.c.l.b16 %v4122
    %v4251 = vunpack.c.l.b16 %v4123
    %v4252 = vunpack.c.l.b16 %v4124
    %v4253 = vunpack.c.l.b16 %v4125
    %v4254 = vunpack.c.l.b16 %v4126
    %v4255 = vunpack.c.l.b16 %v4127
    %v4256 = vunpack.c.l.b16 %v4128
    %v4257 = vunpack.c.l.b16 %v4129
    %v4258 = vunpack.c.l.b16 %v4130
    %v4259 = vunpack.c.l.b16 %v4131
    %v4260 = vunpack.c.l.b16 %v4132
    %v4261 = vunpack.c.l.b16 %v4133
    %v4262 = vunpack.c.l.b16 %v4134
    %v4263 = vunpack.c.l.b16 %v4135
    %v4264 = vunpack.c.l.b16 %v4136
    %v4265 = vunpack.c.l.b16 %v4137
    %v4266 = vunpack.c.l.b16 %v4138
    %v4267 = vunpack.c.l.b16 %v4139
    %v4268 = vunpack.c.l.b16 %v4140
    %v4269 = vunpack.c.l.b16 %v4141
    %v4270 = vunpack.c.l.b16 %v4142
    %v4271 = vunpack.c.l.b16 %v4143
    %v4272 = vunpack.c.l.b16 %v4144
    %v4273 = vunpack.c.l.b16 %v4145
    %v4274 = vunpack.c.l.b16 %v4146
    %v4275 = vunpack.c.l.b16 %v4147
    %v4276 = vunpack.c.l.b16 %v4148
    %v4277 = vunpack.c.l.b16 %v4149
    %v4278 = vunpack.c.l.b16 %v4150
    %v4279 = vunpack.c.l.b16 %v4151
    %v4280 = vunpack.c.l.b16 %v4152
    %v4281 = vunpack.c.l.b16 %v4153
    %v4282 = vunpack.c.l.b16 %v4154
    %v4283 = vunpack.c.l.b16 %v4155
    %v4284 = vunpack.c.l.b16 %v4156
    %v4285 = vunpack.c.l.b16 %v4157
    %v4286 = vunpack.c.l.b16 %v4158
    %v4287 = vunpack.c.l.b16 %v4159
    %v4288 = vunpack.c.l.b16 %v4160
    %v4289 = vunpack.c.l.b16 %v4161
    %v4290 = vunpack.c.l.b16 %v4162
    %v4291 = vunpack.c.l.b16 %v4163
    %v4292 = vunpack.c.l.b16 %v4164
    %v4293 = vunpack.c.l.b16 %v4165
    %v4294 = vunpack.c.l.b16 %v4166
    %v4295 = vunpack.c.l.b16 %v4167
    %v4296 = vunpack.c.l.b16 %v4168
    %v4297 = vunpack.c.l.b16 %v4169
    %v4298 = vunpack.c.l.b16 %v4170
    %v4299 = vunpack.c.l.b16 %v4171
    %v4300 = vunpack.c.l.b16 %v4172
    %v4301 = vunpack.c.l.b16 %v4173
    %v4302 = vunpack.c.l.b16 %v4174
    %v4303 = vunpack.c.l.b16 %v4175
    %v4304 = vunpack.c.l.b16 %v4176
    %v4305 = vunpack.c.l.b16 %v4177
    %v4306 = vunpack.c.l.b16 %v4178
    %v4307 = vunpack.c.l.b16 %v4179
    %v4308 = vunpack.c.l.b16 %v4180
    %v4309 = vunpack.c.l.b16 %v4181
    %v4310 = vunpack.c.l.b16 %v4182
    %v4311 = vunpack.c.l.b16 %v4183
    %v4312 = vunpack.c.l.b16 %v4184
    %v4313 = vpack.c.b16 %v4250, %v4249
    %v4314 = vpack.c.b16 %v4252, %v4251
    %v4315 = vpack.c.b16 %v4254, %v4253
    %v4316 = vpack.c.b16 %v4256, %v4255
    %v4317 = vpack.c.b16 %v4258, %v4257
    %v4318 = vpack.c.b16 %v4260, %v4259
    %v4319 = vpack.c.b16 %v4262, %v4261
    %v4320 = vpack.c.b16 %v4264, %v4263
    %v4321 = vpack.c.b16 %v4266, %v4265
    %v4322 = vpack.c.b16 %v4268, %v4267
    %v4323 = vpack.c.b16 %v4270, %v4269
    %v4324 = vpack.c.b16 %v4272, %v4271
    %v4325 = vpack.c.b16 %v4274, %v4273
    %v4326 = vpack.c.b16 %v4276, %v4275
    %v4327 = vpack.c.b16 %v4278, %v4277
    %v4328 = vpack.c.b16 %v4280, %v4279
    %v4329 = vpack.c.b16 %v4282, %v4281
    %v4330 = vpack.c.b16 %v4284, %v4283
    %v4331 = vpack.c.b16 %v4286, %v4285
    %v4332 = vpack.c.b16 %v4288, %v4287
    %v4333 = vpack.c.b16 %v4290, %v4289
    %v4334 = vpack.c.b16 %v4292, %v4291
    %v4335 = vpack.c.b16 %v4294, %v4293
    %v4336 = vpack.c.b16 %v4296, %v4295
    %v4337 = vpack.c.b16 %v4298, %v4297
    %v4338 = vpack.c.b16 %v4300, %v4299
    %v4339 = vpack.c.b16 %v4302, %v4301
    %v4340 = vpack.c.b16 %v4304, %v4303
    %v4341 = vpack.c.b16 %v4306, %v4305
    %v4342 = vpack.c.b16 %v4308, %v4307
    %v4343 = vpack.c.b16 %v4310, %v4309
    %v4344 = vpack.c.b16 %v4312, %v4311
    %4377 = vmatpush.bf16.msra.mxu0 %v4320
    %4378 = vmatpush.bf16.msra.mxu0 %v4319
    %4379 = vmatpush.bf16.msra.mxu0 %v4318
    %4380 = vmatpush.bf16.msra.mxu0 %v4317
    %4381 = vmatpush.bf16.msra.mxu0 %v4316
    %4382 = vmatpush.bf16.msra.mxu0 %v4315
    %4383 = vmatpush.bf16.msra.mxu0 %v4314
    %4384 = vmatpush.bf16.msra.mxu0 %v4313
    %4385 = vmatmul.bf16.gmra.mxu0 %v4117
    %v4386 = vpop.f32.mrf.mxu0
    %v4387 = vadd.f32 0.0, %v4386
    %v4388 = vpop.f32.mrf.mxu0
    %v4389 = vadd.f32 0.0, %v4388
    %4390 = vdwg.mxu0
    %4391 = vmatpush.bf16.msra.mxu0 %v4328
    %4392 = vmatpush.bf16.msra.mxu0 %v4327
    %4393 = vmatpush.bf16.msra.mxu0 %v4326
    %4394 = vmatpush.bf16.msra.mxu0 %v4325
    %4395 = vmatpush.bf16.msra.mxu0 %v4324
    %4396 = vmatpush.bf16.msra.mxu0 %v4323
    %4397 = vmatpush.bf16.msra.mxu0 %v4322
    %4398 = vmatpush.bf16.msra.mxu0 %v4321
    %4399 = vmatmul.bf16.gmra.mxu0 %v4118
    %v4400 = vpop.f32.mrf.mxu0
    %v4401 = vadd.f32 %v4387, %v4400
    %v4402 = vpop.f32.mrf.mxu0
    %v4403 = vadd.f32 %v4389, %v4402
    %4404 = vdwg.mxu0
    %4405 = vmatpush.bf16.msra.mxu0 %v4336
    %4406 = vmatpush.bf16.msra.mxu0 %v4335
    %4407 = vmatpush.bf16.msra.mxu0 %v4334
    %4408 = vmatpush.bf16.msra.mxu0 %v4333
    %4409 = vmatpush.bf16.msra.mxu0 %v4332
    %4410 = vmatpush.bf16.msra.mxu0 %v4331
    %4411 = vmatpush.bf16.msra.mxu0 %v4330
    %4412 = vmatpush.bf16.msra.mxu0 %v4329
    %4413 = vmatmul.bf16.gmra.mxu0 %v4119
    %v4414 = vpop.f32.mrf.mxu0
    %v4415 = vadd.f32 %v4401, %v4414
    %v4416 = vpop.f32.mrf.mxu0
    %v4417 = vadd.f32 %v4403, %v4416
    %4418 = vdwg.mxu0
    %4419 = vmatpush.bf16.msra.mxu0 %v4344
    %4420 = vmatpush.bf16.msra.mxu0 %v4343
    %4421 = vmatpush.bf16.msra.mxu0 %v4342
    %4422 = vmatpush.bf16.msra.mxu0 %v4341
    %4423 = vmatpush.bf16.msra.mxu0 %v4340
    %4424 = vmatpush.bf16.msra.mxu0 %v4339
    %4425 = vmatpush.bf16.msra.mxu0 %v4338
    %4426 = vmatpush.bf16.msra.mxu0 %v4337
    %4427 = vmatmul.bf16.gmra.mxu0 %v4120
    %v4428 = vpop.f32.mrf.mxu0
    %v4429 = vadd.f32 %v4415, %v4428
    %v4430 = vpop.f32.mrf.mxu0
    %v4431 = vadd.f32 %v4417, %v4430
    %4432 = vdwg.mxu0
    %v4433 = vadd.f32 %v3992, %v4429
    %v4434 = vadd.f32 %v3993, %v4431
    %v4435 = vadd.f32 %v2667, %v4433
    %v4436 = vadd.f32 %v2668, %v4434
    %v4437 = vld [vmem:[%s2 + $0xe8] sm:$0x1]
    %v4438 = vperm.slane %v4437, 0
    %v4439 = vadd.f32 %v4435, %v4438
    %v4440 = vadd.f32 %v4436, %v4438
    %v4441 = vld [vmem:[%s2 + $0xf0] sm:$0x1]
    %v4442 = vld [vmem:[%s2 + $0xf8] sm:$0x1]
    %v4443 = vsel %vm74, %v4439, 0.0
    %4444 = vadd.xlane.f32.xlu0 %v4443
    %v4445 = vpop.xlane.xlu0 %4444
    %v4446 = vsel %vm74, %v4440, 0.0
    %4447 = vadd.xlane.f32.xlu0 %v4446
    %v4448 = vpop.xlane.xlu0 %4447
    %v4449 = vmul.f32 %v4445, %v425
    %v4450 = vmul.f32 %v4448, %v425
    %v4451 = vmul.f32 %v4439, %v4439
    %v4452 = vmul.f32 %v4440, %v4440
    %v4453 = vsel %vm74, %v4451, 0.0
    %4454 = vadd.xlane.f32.xlu0 %v4453
    %v4455 = vpop.xlane.xlu0 %4454
    %v4456 = vsel %vm74, %v4452, 0.0
    %4457 = vadd.xlane.f32.xlu0 %v4456
    %v4458 = vpop.xlane.xlu0 %4457
    %v4459 = vmul.f32 %v4455, %v425
    %v4460 = vmul.f32 %v4458, %v425
    %v4461 = vsub.f32 %v4439, %v4449
    %v4462 = vsub.f32 %v4440, %v4450
    %v4463 = vmul.f32 %v4449, %v4449
    %v4464 = vmul.f32 %v4450, %v4450
    %v4465 = vsub.f32 %v4459, %v4463
    %v4466 = vsub.f32 %v4460, %v4464
    %v4467 = vadd.f32 %v4465, 1e-05
    %v4468 = vadd.f32 %v4466, 1e-05
    %v4469 = vrsqrt.pop %v4467
    %v4470 = vmul.f32 %v4469, %v4467
    %v4471 = vmul.f32 %v4470, %v4469
    %v4472 = vmul.f32 0.5, %v4471
    %v4473 = vsub.f32 1.5, %v4472
    %v4474 = vmul.f32 %v4469, %v4473
    %vm4475 = vweird.f32 %v4467
    %vm4476 = vweird.f32 %v4469
    %vm4477 = vmor %vm4475, %vm4476
    %v4478 = vsel %vm4477, %v4469, %v4474
    %v4479 = vrsqrt.pop %v4468
    %v4480 = vmul.f32 %v4479, %v4468
    %v4481 = vmul.f32 %v4480, %v4479
    %v4482 = vmul.f32 0.5, %v4481
    %v4483 = vsub.f32 1.5, %v4482
    %v4484 = vmul.f32 %v4479, %v4483
    %vm4485 = vweird.f32 %v4468
    %vm4486 = vweird.f32 %v4479
    %vm4487 = vmor %vm4485, %vm4486
    %v4488 = vsel %vm4487, %v4479, %v4484
    %v4489 = vmul.f32 %v4461, %v4478
    %v4490 = vmul.f32 %v4462, %v4488
    %v4491 = vperm.slane %v4441, 0
    %v4492 = vmul.f32 %v4489, %v4491
    %v4493 = vmul.f32 %v4490, %v4491
    %v4494 = vperm.slane %v4442, 0
    %v4495 = vadd.f32 %v4492, %v4494
    %v4496 = vadd.f32 %v4493, %v4494
    %v4497 = vld [vmem:[%s2 + $0x168] sm:$0x3]
    %vm4498 = vcmask 130048
    %v4500 = vsel %vm4498, %v4497, 0
    %4502 = vmatpush.msra.mxu0 0.0
    %4503 = vmatpush.msra.mxu0 0.0
    %4504 = vmatpush.msra.mxu0 0.0
    %4505 = vmatpush.msra.mxu0 0.0
    %4506 = vmatpush.msra.mxu0 0.0
    %4507 = vmatpush.msra.mxu0 0.0
    %4508 = vmatpush.msra.mxu0 0.0
    %4509 = vmatpush.msra.mxu0 0.0
    %4510 = vmatpush.msra.mxu0 0.0
    %4511 = vmatpush.msra.mxu0 0.0
    %4512 = vmatpush.msra.mxu0 0.0
    %4513 = vmatpush.msra.mxu0 0.0
    %4514 = vmatpush.msra.mxu0 0.0
    %4515 = vmatpush.msra.mxu0 0.0
    %4516 = vmatpush.msra.mxu0 %v4496
    %4517 = vmatpush.msra.mxu0 %v4495
    %4518 = vmatmul.f32.gmra.mxu0 %v4500
    %v4519 = vpop.f32.mrf.mxu0
    %v4520 = vadd.f32 0.0, %v4519
    %4521 = vdwg.mxu0
    %v4522 = vld [vmem:[%s2 + $0x100] sm:$0xff]
    %v4523 = vld [vmem:[%s2 + $0x108] sm:$0xff]
    %v4524 = vld [vmem:[%s2 + $0x110] sm:$0xff]
    %v4525 = vld [vmem:[%s2 + $0x118] sm:$0xff]
    %v4526 = vld [vmem:[%s1] sm:$0x3]
    %v4527 = vld [vmem:[%s2 + $0x120] sm:$0xff]
    %v4528 = vld [vmem:[%s2 + $0x128] sm:$0xff]
    %v4529 = vld [vmem:[%s2 + $0x130] sm:$0xff]
    %v4530 = vld [vmem:[%s2 + $0x138] sm:$0xff]
    %v4532 = vsel %vm74, %v4526, 0
    %4534 = vmatpush.msra.mxu0 0.0
    %4535 = vmatpush.msra.mxu0 0.0
    %4536 = vmatpush.msra.mxu0 0.0
    %4537 = vmatpush.msra.mxu0 0.0
    %4538 = vmatpush.msra.mxu0 0.0
    %4539 = vmatpush.msra.mxu0 0.0
    %4540 = vmatpush.msra.mxu0 0.0
    %4541 = vmatpush.msra.mxu0 0.0
    %4542 = vmatpush.msra.mxu0 0.0
    %4543 = vmatpush.msra.mxu0 0.0
    %4544 = vmatpush.msra.mxu0 0.0
    %4545 = vmatpush.msra.mxu0 0.0
    %4546 = vmatpush.msra.mxu0 %v4530
    %4547 = vmatpush.msra.mxu0 %v4529
    %4548 = vmatpush.msra.mxu0 %v4528
    %4549 = vmatpush.msra.mxu0 %v4527
    %4550 = vmatmul.f32.gmra.mxu0 %v4532
    %v4551 = vpop.f32.mrf.mxu0
    %v4552 = vadd.f32 0.0, %v4551
    %4553 = vdwg.mxu0
    %v4555 = vsel %vm74, %v4520, 0
    %4557 = vmatpush.msra.mxu0 0.0
    %4558 = vmatpush.msra.mxu0 0.0
    %4559 = vmatpush.msra.mxu0 0.0
    %4560 = vmatpush.msra.mxu0 0.0
    %4561 = vmatpush.msra.mxu0 0.0
    %4562 = vmatpush.msra.mxu0 0.0
    %4563 = vmatpush.msra.mxu0 0.0
    %4564 = vmatpush.msra.mxu0 0.0
    %4565 = vmatpush.msra.mxu0 0.0
    %4566 = vmatpush.msra.mxu0 0.0
    %4567 = vmatpush.msra.mxu0 0.0
    %4568 = vmatpush.msra.mxu0 0.0
    %4569 = vmatpush.msra.mxu0 %v4525
    %4570 = vmatpush.msra.mxu0 %v4524
    %4571 = vmatpush.msra.mxu0 %v4523
    %4572 = vmatpush.msra.mxu0 %v4522
    %4573 = vmatmul.f32.gmra.mxu0 %v4555
    %v4574 = vpop.f32.mrf.mxu0
    %v4575 = vadd.f32 %v4552, %v4574
    %4576 = vdwg.mxu0
    %v4577 = vld [vmem:[%s2 + $0x140] sm:$0x1]
    %v4578 = vperm.slane %v4577, 0
    %v4579 = vadd.f32 %v4575, %v4578
    %vm4580 = vcmask 123904
    %4581 = vst.msk [vmem:[#allocation2] sm:$0x3] %vm4580, %v4579
    // Predicated region
    $region26: #{encoder_fwd.1} parent=1 // pred_check
      _
    $region27: #{encoder_fwd.1} parent=1 // pred_check_branch
      %4583 = sbr.rel (0) target = $region29
    $region28: #{encoder_fwd.1} parent=1 // pred_region
      %4585 = vsyncadd [#allocation3], 0
      %s4587 = sshll.u32 [#allocation2], 4
      %s4588 = int_to_ptr.vmem [resolvable:$true] %s4587
      %s4589 = sshll.u32 %s6, 4
      %s4590 = int_to_ptr.hbm [resolvable:$true] %s4589
      %4592 = dma.vmem_to_hbm [thread:$0]  %s4588, 32, %s4590, [#allocation3]
    $region29: #{encoder_fwd.1} parent=1 // pred_fallthru
      _
    // Predicated region
    $region30: #{encoder_fwd.1} parent=1 // pred_check
      _
    $region31: #{encoder_fwd.1} parent=1 // pred_check_branch
      %4594 = sbr.rel (0) target = $region33
    $region32: #{encoder_fwd.1} parent=1 // pred_region
      %4596 = dma.done [#allocation3], 32
    $region33: #{encoder_fwd.1} parent=1 // pred_fallthru
      _
    %4597 = vsyncpa [#allocation3], 1

</llo_original>
